<compile_context>
chip_gen: v7x
topology: tpu7x:2x2x1
jax: 0.10.0
libtpu: 0.0.40
codegen_flags: <defaults>
</compile_context>

<pallas_src>
import functools

import jax
import jax.numpy as jnp
from jax.experimental import pallas as pl
from jax.experimental.pallas import tpu as pltpu


# ----------------------------- in-kernel helpers -----------------------------

def _erf_approx(x):
    # Abramowitz & Stegun 7.1.26 (|err| <= 1.5e-7); the 1/(1+p*|x|) term goes to the
    # EUP via pl.reciprocal(approx=True) instead of a true VALU divide.
    a1, a2, a3, a4, a5 = 0.254829592, -0.284496736, 1.421413741, -1.453152027, 1.061405429
    p = 0.3275911
    sign = jnp.where(x >= 0.0, 1.0, -1.0)
    ax = jnp.abs(x)
    t = pl.reciprocal(1.0 + p * ax, approx=True)
    poly = ((((a5 * t + a4) * t + a3) * t + a2) * t + a1) * t
    return sign * (1.0 - poly * jnp.exp(-ax * ax))


def _gelu_exact(x):
    # nn.GELU() default in PyTorch is the exact (erf-based) GELU.
    return 0.5 * x * (1.0 + _erf_approx(x * 0.7071067811865476))


def _layernorm(x, w, b, eps):
    mu = jnp.mean(x, axis=-1, keepdims=True)
    var = jnp.mean((x - mu) ** 2, axis=-1, keepdims=True)
    return (x - mu) * jax.lax.rsqrt(var + eps) * w + b


# ------------------------- stage 1: patch-embed kernel -------------------------

def _embed_kernel(patches_ref, patch_w_ref, patch_b_ref, cls_ref, pos_ref, o_ref,
                  *, B, P, N, Npad, D):
    # tokens = patches @ W + b  (bf16 x bf16 -> f32 accumulate)
    tok = (jnp.dot(patches_ref[...], patch_w_ref[...],
                   preferred_element_type=jnp.float32) + patch_b_ref[...])   # [B*P, D]
    pos = pos_ref[...]                                   # [N, D]
    cls_row = cls_ref[...] + pos[0:1, :]                 # [1, D]
    pos_tok = pos[1:N, :]                                # [P, D]
    pad = jnp.zeros((Npad - N, D), jnp.float32) if Npad > N else None
    imgs = []
    for b in range(B):
        parts = [cls_row, tok[b * P:(b + 1) * P, :] + pos_tok]
        if pad is not None:
            parts.append(pad)
        imgs.append(jnp.concatenate(parts, axis=0))      # [Npad, D] per image
    o_ref[...] = jnp.concatenate(imgs, axis=0)           # [B*Npad, D], single store


# --------------------- stage 2: fused transformer-blocks kernel -----------------

def _dinov2_blocks_kernel(
    # constant-index inputs (fetched once, small)
    x0_ref, normw_ref, normb_ref,
    # per-block weights stacked along a leading depth axis (block index = grid step)
    ln1w_ref, ln1b_ref, qkvw_ref, qkvb_ref, projw_ref, projb_ref, g1_ref,
    ln2w_ref, ln2b_ref, fc1w_ref, fc1b_ref, fc2w_ref, fc2b_ref, g2_ref,
    # output + scratch
    o_ref, x_vmem, ctx_vmem,
    *, B, N, Npad, D, num_heads, eps):
    l = pl.program_id(0)
    hd = D // num_heads
    scale = float(hd) ** -0.5
    bf16 = jnp.bfloat16
    f32 = jnp.float32

    # ---- grid step 0: load the embedded (padded) tokens into the resident residual ----
    @pl.when(l == 0)
    def _():
        x_vmem[...] = x0_ref[...]

    x = x_vmem[...]                                                   # [B*Npad, D] f32

    # ---- attention branch (pre-LN, per-image attention, LayerScale) ----
    h1 = _layernorm(x, ln1w_ref[0], ln1b_ref[0], eps)
    qkv = (jnp.dot(h1.astype(bf16), qkvw_ref[0],
                   preferred_element_type=f32) + qkvb_ref[0])         # [B*Npad, 3D]
    q = qkv[:, 0 * D:1 * D] * scale
    k = qkv[:, 1 * D:2 * D]
    v = qkv[:, 2 * D:3 * D]

    # Tiny additive key-padding mask (pad key columns >= N inside each image).
    col = jax.lax.broadcasted_iota(jnp.int32, (1, Npad), 1)
    key_mask = jnp.where(col < N, 0.0, -1e30).astype(f32)             # [1, Npad]

    # Per-image, per-head attention on [Npad, Npad] tiles; head outputs are written to
    # their column slot in ctx_vmem so the output projection is one K=D matmul.
    for b in range(B):
        rs = slice(b * Npad, (b + 1) * Npad)
        qb, kb, vb = q[rs], k[rs], v[rs]
        for hh in range(num_heads):
            cs = slice(hh * hd, (hh + 1) * hd)
            s = jax.lax.dot_general(qb[:, cs].astype(bf16), kb[:, cs].astype(bf16),
                                    (((1,), (1,)), ((), ())),          # q @ k^T
                                    preferred_element_type=f32)        # [Npad, Npad] f32
            s = s + key_mask
            s = s - jnp.max(s, axis=-1, keepdims=True)
            p = jnp.exp(s)
            inv = pl.reciprocal(jnp.sum(p, axis=-1, keepdims=True), approx=True)
            probs = (p * inv).astype(bf16)
            ctx_vmem[rs, cs] = jnp.dot(probs, vb[:, cs].astype(bf16),
                                       preferred_element_type=f32)     # [Npad, hd]

    attn = (jnp.dot(ctx_vmem[...].astype(bf16), projw_ref[0],          # one [BNp,D]@[D,D]
                    preferred_element_type=f32) + projb_ref[0])
    x = x + g1_ref[0] * attn

    # ---- MLP branch (pre-LN, exact GELU, LayerScale) ----
    h2 = _layernorm(x, ln2w_ref[0], ln2b_ref[0], eps)
    m = (jnp.dot(h2.astype(bf16), fc1w_ref[0],
                 preferred_element_type=f32) + fc1b_ref[0])            # [B*Npad, Hm]
    m = _gelu_exact(m)
    m = (jnp.dot(m.astype(bf16), fc2w_ref[0],
                 preferred_element_type=f32) + fc2b_ref[0])            # [B*Npad, D]
    x = x + g2_ref[0] * m

    x_vmem[...] = x

    # ---- last grid step: final LayerNorm on the CLS rows only (head=None output) ----
    @pl.when(l == pl.num_programs(0) - 1)
    def _():
        cls_rows = jnp.concatenate([x[b * Npad:b * Npad + 1, :] for b in range(B)],
                                   axis=0)                             # [B, D]
        o_ref[...] = _layernorm(cls_rows, normw_ref[...], normb_ref[...],
                                eps).astype(o_ref.dtype)


# ------------------------------- wrapper / glue --------------------------------

def patchify(x, patch):
    # NCHW -> [B*num_patches, C*patch*patch] in (C, ph, pw) order, matching the
    # flattening of a PyTorch Conv2d(kernel=patch, stride=patch) weight.
    B, C, H, W = x.shape
    hp, wp = H // patch, W // patch
    x = x.reshape(B, C, hp, patch, wp, patch)
    x = x.transpose(0, 2, 4, 1, 3, 5)
    return x.reshape(B * hp * wp, C * patch * patch)


def _pick_vmem_limit():
    # ~96 MiB on v5e/v6e (128 MiB physical VMEM), ~48 MiB on v7x (64 MiB physical).
    try:
        cap = pltpu.get_tpu_info().vmem_capacity_bytes
    except Exception:
        cap = 128 * 1024 * 1024
    return int(min(96 * 1024 * 1024, cap * 3 // 4))


def dinov2_forward(params, x, *, patch, num_heads):
    # x: NCHW float32. head=None -> output is the final-LayerNorm CLS token [B, D].
    B, C, Hi, Wi = x.shape
    patch_dim, D = params["patch_w"].shape
    P = (Hi // patch) * (Wi // patch)
    N = P + 1
    Npad = ((N + 7) // 8) * 8            # 8-aligned per-image token count
    depth = params["qkv_w"].shape[0]
    Hm = params["fc1_w"].shape[2]

    patches = patchify(x, patch).astype(jnp.bfloat16)     # [B*P, C*p*p]

    # --- stage 1: patch embed + CLS prepend + pos embed + per-image padding ---
    x0 = pl.pallas_call(
        functools.partial(_embed_kernel, B=B, P=P, N=N, Npad=Npad, D=D),
        out_shape=jax.ShapeDtypeStruct((B * Npad, D), jnp.float32),
    )(patches, params["patch_w"], params["patch_b"],
      params["cls_token"], params["pos_embed"])

    # --- stage 2: fused transformer blocks + final CLS LayerNorm ---
    def const2(r, c):
        return pl.BlockSpec((r, c), lambda l: (0, 0))

    def stacked(r, c):
        return pl.BlockSpec((1, r, c), lambda l: (l, 0, 0))

    kernel = functools.partial(_dinov2_blocks_kernel, B=B, N=N, Npad=Npad, D=D,
                               num_heads=num_heads, eps=1e-6)

    return pl.pallas_call(
        kernel,
        out_shape=jax.ShapeDtypeStruct((B, D), jnp.float32),
        grid=(depth,),
        in_specs=[
            const2(B * Npad, D),             # x0 (embedded tokens, read at l==0)
            const2(1, D), const2(1, D),      # final norm w, b
            stacked(1, D), stacked(1, D),    # ln1 w, b
            stacked(D, 3 * D),               # qkv_w (bf16)
            stacked(1, 3 * D),               # qkv_b
            stacked(D, D),                   # proj_w (bf16)
            stacked(1, D),                   # proj_b
            stacked(1, D),                   # gamma1 (LayerScale)
            stacked(1, D), stacked(1, D),    # ln2 w, b
            stacked(D, Hm),                  # fc1_w (bf16)
            stacked(1, Hm),                  # fc1_b
            stacked(Hm, D),                  # fc2_w (bf16)
            stacked(1, D),                   # fc2_b
            stacked(1, D),                   # gamma2 (LayerScale)
        ],
        out_specs=pl.BlockSpec((B, D), lambda l: (0, 0)),
        scratch_shapes=[pltpu.VMEM((B * Npad, D), jnp.float32),   # resident residual
                        pltpu.VMEM((B * Npad, D), jnp.float32)],  # concatenated head ctx
        compiler_params=pltpu.CompilerParams(
            dimension_semantics=("arbitrary",),     # depth is a sequential carry
            vmem_limit_bytes=_pick_vmem_limit()),
    )(x0,
      params["norm_w"], params["norm_b"],
      params["ln1_w"], params["ln1_b"],
      params["qkv_w"], params["qkv_b"],
      params["proj_w"], params["proj_b"],
      params["gamma1"],
      params["ln2_w"], params["ln2_b"],
      params["fc1_w"], params["fc1_b"],
      params["fc2_w"], params["fc2_b"],
      params["gamma2"])


def init_params(key, *, in_chans, patch, embed_dim, depth, mlp_ratio, num_patches):
    hidden = int(embed_dim * mlp_ratio)
    patch_dim = in_chans * patch * patch
    n_tokens = num_patches + 1
    ki = iter(jax.random.split(key, 8))
    nrm = lambda k, shape: (0.02 * jax.random.normal(k, shape)).astype(jnp.float32)

    return {
        "patch_w": nrm(next(ki), (patch_dim, embed_dim)),
        "patch_b": jnp.zeros((1, embed_dim), jnp.float32),
        "cls_token": nrm(next(ki), (1, embed_dim)),
        "pos_embed": nrm(next(ki), (n_tokens, embed_dim)),
        "norm_w": jnp.ones((1, embed_dim), jnp.float32),
        "norm_b": jnp.zeros((1, embed_dim), jnp.float32),
        # per-block weights stacked along a leading depth axis
        "ln1_w": jnp.ones((depth, 1, embed_dim), jnp.float32),
        "ln1_b": jnp.zeros((depth, 1, embed_dim), jnp.float32),
        "qkv_w": nrm(next(ki), (depth, embed_dim, 3 * embed_dim)),
        "qkv_b": jnp.zeros((depth, 1, 3 * embed_dim), jnp.float32),
        "proj_w": nrm(next(ki), (depth, embed_dim, embed_dim)),
        "proj_b": jnp.zeros((depth, 1, embed_dim), jnp.float32),
        "gamma1": jnp.full((depth, 1, embed_dim), 0.1, jnp.float32),   # LayerScale
        "ln2_w": jnp.ones((depth, 1, embed_dim), jnp.float32),
        "ln2_b": jnp.zeros((depth, 1, embed_dim), jnp.float32),
        "fc1_w": nrm(next(ki), (depth, embed_dim, hidden)),
        "fc1_b": jnp.zeros((depth, 1, hidden), jnp.float32),
        "fc2_w": nrm(next(ki), (depth, hidden, embed_dim)),
        "fc2_b": jnp.zeros((depth, 1, embed_dim), jnp.float32),
        "gamma2": jnp.full((depth, 1, embed_dim), 0.1, jnp.float32),   # LayerScale
    }


def prepare_params(params):
    # Pre-cast the matmul weight matrices to bf16 ONCE (outside the jitted forward)
    # so every call does not re-read f32 weights and write bf16 copies in HBM.
    out = dict(params)
    for name in ("patch_w", "qkv_w", "proj_w", "fc1_w", "fc2_w"):
        out[name] = params[name].astype(jnp.bfloat16)
    return out


# ------------------------------------ main --------------------------------------

if __name__ == "__main__":
    # Small config consistent with the DINOv2 ViT forward (patch 14, CLS-token output).
    B, C, H, W = 2, 3, 28, 28
    PATCH = 14
    EMBED_DIM = 128
    DEPTH = 2
    NUM_HEADS = 2
    MLP_RATIO = 4
    NUM_PATCHES = (H // PATCH) * (W // PATCH)

    key = jax.random.PRNGKey(0)
    k_x, k_p = jax.random.split(key)
    x = jax.random.normal(k_x, (B, C, H, W), dtype=jnp.float32)

    params = prepare_params(
        init_params(k_p, in_chans=C, patch=PATCH, embed_dim=EMBED_DIM,
                    depth=DEPTH, mlp_ratio=MLP_RATIO, num_patches=NUM_PATCHES))

    fwd = jax.jit(functools.partial(dinov2_forward, patch=PATCH, num_heads=NUM_HEADS))
    out = jax.block_until_ready(fwd(params, x))
    assert out.shape == (B, EMBED_DIM), out.shape
    assert bool(jnp.all(jnp.isfinite(out)))
    print("KERNEL_OK")
</pallas_src>

<mosaic_0001>
module attributes {stable_mosaic.version = 11 : i64} {
  func.func @_embed_kernel(%arg0: memref<8x588xbf16, #tpu.memory_space<vmem>>, %arg1: memref<588x128xbf16, #tpu.memory_space<vmem>>, %arg2: memref<1x128xf32, #tpu.memory_space<vmem>>, %arg3: memref<1x128xf32, #tpu.memory_space<vmem>>, %arg4: memref<5x128xf32, #tpu.memory_space<vmem>>, %arg5: memref<16x128xf32, #tpu.memory_space<vmem>>) attributes {dimension_semantics = [], scalar_prefetch = 0 : i64, scratch_operands = 0 : i64, tpu.core_type = #tpu.core_type<tc>} {
    %c0 = arith.constant 0 : index
    %c0_0 = arith.constant 0 : index
    %0 = vector.load %arg0[%c0, %c0_0] : memref<8x588xbf16, #tpu.memory_space<vmem>>, vector<8x588xbf16>
    %c0_1 = arith.constant 0 : index
    %c0_2 = arith.constant 0 : index
    %1 = vector.load %arg1[%c0_1, %c0_2] : memref<588x128xbf16, #tpu.memory_space<vmem>>, vector<588x128xbf16>
    %cst = arith.constant dense<0.000000e+00> : vector<8x128xf32>
    %2 = tpu.matmul %0, %1, %cst {dimension_numbers = #tpu.dot_dimension_numbers<[1], [0], [0], [1], [0, 0, 1, 1], [], []>} : vector<8x588xbf16>, vector<588x128xbf16>, vector<8x128xf32> -> vector<8x128xf32>
    %c0_3 = arith.constant 0 : index
    %c0_4 = arith.constant 0 : index
    %3 = vector.load %arg2[%c0_3, %c0_4] : memref<1x128xf32, #tpu.memory_space<vmem>>, vector<1x128xf32>
    %4 = vector.broadcast %3 : vector<1x128xf32> to vector<8x128xf32>
    %5 = arith.addf %2, %4 : vector<8x128xf32>
    %c0_5 = arith.constant 0 : index
    %c0_6 = arith.constant 0 : index
    %6 = vector.load %arg4[%c0_5, %c0_6] : memref<5x128xf32, #tpu.memory_space<vmem>>, vector<5x128xf32>
    %c0_7 = arith.constant 0 : index
    %c0_8 = arith.constant 0 : index
    %7 = vector.load %arg3[%c0_7, %c0_8] : memref<1x128xf32, #tpu.memory_space<vmem>>, vector<1x128xf32>
    %8 = vector.extract_strided_slice %6 {offsets = [0, 0], sizes = [1, 128], strides = [1, 1]} : vector<5x128xf32> to vector<1x128xf32>
    %9 = arith.addf %7, %8 : vector<1x128xf32>
    %10 = vector.extract_strided_slice %6 {offsets = [1, 0], sizes = [4, 128], strides = [1, 1]} : vector<5x128xf32> to vector<4x128xf32>
    %cst_9 = arith.constant 0.000000e+00 : f32
    %11 = vector.broadcast %cst_9 : f32 to vector<3x128xf32>
    %12 = vector.extract_strided_slice %5 {offsets = [0, 0], sizes = [4, 128], strides = [1, 1]} : vector<8x128xf32> to vector<4x128xf32>
    %13 = arith.addf %12, %10 : vector<4x128xf32>
    %14 = tpu.concatenate %9, %13, %11 in 0 : vector<1x128xf32>, vector<4x128xf32>, vector<3x128xf32> -> vector<8x128xf32>
    %15 = vector.extract_strided_slice %5 {offsets = [4, 0], sizes = [4, 128], strides = [1, 1]} : vector<8x128xf32> to vector<4x128xf32>
    %16 = arith.addf %15, %10 : vector<4x128xf32>
    %17 = tpu.concatenate %9, %16, %11 in 0 : vector<1x128xf32>, vector<4x128xf32>, vector<3x128xf32> -> vector<8x128xf32>
    %18 = tpu.concatenate %14, %17 in 0 : vector<8x128xf32>, vector<8x128xf32> -> vector<16x128xf32>
    %c0_10 = arith.constant 0 : index
    %c0_11 = arith.constant 0 : index
    %19 = vector.load %arg5[%c0_10, %c0_11] : memref<16x128xf32, #tpu.memory_space<vmem>>, vector<16x128xf32>
    tpu.vector_store %arg5[%c0_10, %c0_11], %18 {strides = array<i32>} : memref<16x128xf32, #tpu.memory_space<vmem>>, vector<16x128xf32>,
    return
  }
}

module attributes {stable_mosaic.version = 11 : i64} {
  func.func @_dinov2_blocks_kernel(%arg0: i32, %arg1: memref<16x128xf32, #tpu.memory_space<vmem>>, %arg2: memref<1x128xf32, #tpu.memory_space<vmem>>, %arg3: memref<1x128xf32, #tpu.memory_space<vmem>>, %arg4: memref<1x1x128xf32, #tpu.memory_space<vmem>>, %arg5: memref<1x1x128xf32, #tpu.memory_space<vmem>>, %arg6: memref<1x128x384xbf16, #tpu.memory_space<vmem>>, %arg7: memref<1x1x384xf32, #tpu.memory_space<vmem>>, %arg8: memref<1x128x128xbf16, #tpu.memory_space<vmem>>, %arg9: memref<1x1x128xf32, #tpu.memory_space<vmem>>, %arg10: memref<1x1x128xf32, #tpu.memory_space<vmem>>, %arg11: memref<1x1x128xf32, #tpu.memory_space<vmem>>, %arg12: memref<1x1x128xf32, #tpu.memory_space<vmem>>, %arg13: memref<1x128x512xbf16, #tpu.memory_space<vmem>>, %arg14: memref<1x1x512xf32, #tpu.memory_space<vmem>>, %arg15: memref<1x512x128xbf16, #tpu.memory_space<vmem>>, %arg16: memref<1x1x128xf32, #tpu.memory_space<vmem>>, %arg17: memref<1x1x128xf32, #tpu.memory_space<vmem>>, %arg18: memref<2x128xf32, #tpu.memory_space<vmem>>, %arg19: memref<16x128xf32, #tpu.memory_space<vmem>>, %arg20: memref<16x128xf32, #tpu.memory_space<vmem>>) attributes {dimension_semantics = [#tpu.dimension_semantics<arbitrary>], iteration_bounds = array<i64: 2>, scalar_prefetch = 0 : i64, scratch_operands = 2 : i64, tpu.core_type = #tpu.core_type<tc>, window_params = [{pipeline_mode = #tpu.pipeline_mode<synchronous>, transform_indices = @transform_0, window_bounds = array<i64: 16, 128>}, {pipeline_mode = #tpu.pipeline_mode<synchronous>, transform_indices = @transform_1, window_bounds = array<i64: 1, 128>}, {pipeline_mode = #tpu.pipeline_mode<synchronous>, transform_indices = @transform_2, window_bounds = array<i64: 1, 128>}, {transform_indices = @transform_3, window_bounds = array<i64: 1, 1, 128>}, {transform_indices = @transform_4, window_bounds = array<i64: 1, 1, 128>}, {transform_indices = @transform_5, window_bounds = array<i64: 1, 128, 384>}, {transform_indices = @transform_6, window_bounds = array<i64: 1, 1, 384>}, {transform_indices = @transform_7, window_bounds = array<i64: 1, 128, 128>}, {transform_indices = @transform_8, window_bounds = array<i64: 1, 1, 128>}, {transform_indices = @transform_9, window_bounds = array<i64: 1, 1, 128>}, {transform_indices = @transform_10, window_bounds = array<i64: 1, 1, 128>}, {transform_indices = @transform_11, window_bounds = array<i64: 1, 1, 128>}, {transform_indices = @transform_12, window_bounds = array<i64: 1, 128, 512>}, {transform_indices = @transform_13, window_bounds = array<i64: 1, 1, 512>}, {transform_indices = @transform_14, window_bounds = array<i64: 1, 512, 128>}, {transform_indices = @transform_15, window_bounds = array<i64: 1, 1, 128>}, {transform_indices = @transform_16, window_bounds = array<i64: 1, 1, 128>}, {pipeline_mode = #tpu.pipeline_mode<synchronous>, transform_indices = @transform_17, window_bounds = array<i64: 2, 128>}]} {
    %c0_i32 = arith.constant 0 : i32
    %0 = arith.cmpi eq, %arg0, %c0_i32 : i32
    %1 = arith.extui %0 : i1 to i32
    %c0_i32_0 = arith.constant 0 : i32
    %2 = arith.cmpi ne, %1, %c0_i32_0 : i32
    scf.if %2 {
      %c0_102 = arith.constant 0 : index
      %c0_103 = arith.constant 0 : index
      %248 = vector.load %arg1[%c0_102, %c0_103] : memref<16x128xf32, #tpu.memory_space<vmem>>, vector<16x128xf32>
      %c0_104 = arith.constant 0 : index
      %c0_105 = arith.constant 0 : index
      %249 = vector.load %arg19[%c0_104, %c0_105] : memref<16x128xf32, #tpu.memory_space<vmem>>, vector<16x128xf32>
      tpu.vector_store %arg19[%c0_104, %c0_105], %248 {strides = array<i32>} : memref<16x128xf32, #tpu.memory_space<vmem>>, vector<16x128xf32>,
    } else {
    }
    %c0 = arith.constant 0 : index
    %c0_1 = arith.constant 0 : index
    %3 = vector.load %arg19[%c0, %c0_1] : memref<16x128xf32, #tpu.memory_space<vmem>>, vector<16x128xf32>
    %c0_2 = arith.constant 0 : index
    %c0_3 = arith.constant 0 : index
    %c0_4 = arith.constant 0 : index
    %4 = vector.load %arg4[%c0_2, %c0_3, %c0_4] : memref<1x1x128xf32, #tpu.memory_space<vmem>>, vector<1x1x128xf32>
    %5 = vector.shape_cast %4 : vector<1x1x128xf32> to vector<1x128xf32>
    %c0_5 = arith.constant 0 : index
    %c0_6 = arith.constant 0 : index
    %c0_7 = arith.constant 0 : index
    %6 = vector.load %arg5[%c0_5, %c0_6, %c0_7] : memref<1x1x128xf32, #tpu.memory_space<vmem>>, vector<1x1x128xf32>
    %7 = vector.shape_cast %6 : vector<1x1x128xf32> to vector<1x128xf32>
    %cst = arith.constant dense<0.000000e+00> : vector<16xf32>
    %8 = vector.multi_reduction <add>, %3, %cst [1] : vector<16x128xf32> to vector<16xf32>
    %9 = vector.shape_cast %8 : vector<16xf32> to vector<16x1xf32>
    %cst_8 = arith.constant 1.280000e+02 : f32
    %10 = vector.broadcast %cst_8 : f32 to vector<16x1xf32>
    %11 = arith.divf %9, %10 : vector<16x1xf32>
    %12 = vector.broadcast %11 : vector<16x1xf32> to vector<16x128xf32>
    %13 = arith.subf %3, %12 : vector<16x128xf32>
    %14 = arith.mulf %13, %13 : vector<16x128xf32>
    %cst_9 = arith.constant dense<0.000000e+00> : vector<16xf32>
    %15 = vector.multi_reduction <add>, %14, %cst_9 [1] : vector<16x128xf32> to vector<16xf32>
    %16 = vector.shape_cast %15 : vector<16xf32> to vector<16x1xf32>
    %cst_10 = arith.constant 1.280000e+02 : f32
    %17 = vector.broadcast %cst_10 : f32 to vector<16x1xf32>
    %18 = arith.divf %16, %17 : vector<16x1xf32>
    %19 = vector.broadcast %11 : vector<16x1xf32> to vector<16x128xf32>
    %20 = arith.subf %3, %19 : vector<16x128xf32>
    %cst_11 = arith.constant 9.99999997E-7 : f32
    %21 = vector.broadcast %cst_11 : f32 to vector<16x1xf32>
    %22 = arith.addf %18, %21 : vector<16x1xf32>
    %23 = math.rsqrt %22 : vector<16x1xf32>
    %24 = vector.broadcast %23 : vector<16x1xf32> to vector<16x128xf32>
    %25 = arith.mulf %20, %24 : vector<16x128xf32>
    %26 = vector.broadcast %5 : vector<1x128xf32> to vector<16x128xf32>
    %27 = arith.mulf %25, %26 : vector<16x128xf32>
    %28 = vector.broadcast %7 : vector<1x128xf32> to vector<16x128xf32>
    %29 = arith.addf %27, %28 : vector<16x128xf32>
    %30 = arith.truncf %29 : vector<16x128xf32> to vector<16x128xbf16>
    %c0_12 = arith.constant 0 : index
    %c0_13 = arith.constant 0 : index
    %c0_14 = arith.constant 0 : index
    %31 = vector.load %arg6[%c0_12, %c0_13, %c0_14] : memref<1x128x384xbf16, #tpu.memory_space<vmem>>, vector<1x128x384xbf16>
    %32 = vector.shape_cast %31 : vector<1x128x384xbf16> to vector<128x384xbf16>
    %cst_15 = arith.constant dense<0.000000e+00> : vector<16x384xf32>
    %33 = tpu.matmul %30, %32, %cst_15 {dimension_numbers = #tpu.dot_dimension_numbers<[1], [0], [0], [1], [0, 0, 1, 1], [], []>} : vector<16x128xbf16>, vector<128x384xbf16>, vector<16x384xf32> -> vector<16x384xf32>
    %c0_16 = arith.constant 0 : index
    %c0_17 = arith.constant 0 : index
    %c0_18 = arith.constant 0 : index
    %34 = vector.load %arg7[%c0_16, %c0_17, %c0_18] : memref<1x1x384xf32, #tpu.memory_space<vmem>>, vector<1x1x384xf32>
    %35 = vector.shape_cast %34 : vector<1x1x384xf32> to vector<1x384xf32>
    %36 = vector.broadcast %35 : vector<1x384xf32> to vector<16x384xf32>
    %37 = arith.addf %33, %36 : vector<16x384xf32>
    %38 = vector.extract_strided_slice %37 {offsets = [0, 0], sizes = [16, 128], strides = [1, 1]} : vector<16x384xf32> to vector<16x128xf32>
    %cst_19 = arith.constant 1.250000e-01 : f32
    %39 = vector.broadcast %cst_19 : f32 to vector<16x128xf32>
    %40 = arith.mulf %38, %39 : vector<16x128xf32>
    %41 = vector.extract_strided_slice %37 {offsets = [0, 128], sizes = [16, 128], strides = [1, 1]} : vector<16x384xf32> to vector<16x128xf32>
    %42 = vector.extract_strided_slice %37 {offsets = [0, 256], sizes = [16, 128], strides = [1, 1]} : vector<16x384xf32> to vector<16x128xf32>
    %43 = tpu.iota {dimensions = array<i32: 1>} : vector<1x8xi32>
    %c5_i32 = arith.constant 5 : i32
    %44 = vector.broadcast %c5_i32 : i32 to vector<1x8xi32>
    %45 = arith.cmpi slt, %43, %44 : vector<1x8xi32>
    %cst_20 = arith.constant 0.000000e+00 : f32
    %cst_21 = arith.constant -1.000000e+30 : f32
    %46 = vector.broadcast %cst_20 : f32 to vector<1x8xf32>
    %47 = vector.broadcast %cst_21 : f32 to vector<1x8xf32>
    %48 = arith.select %45, %46, %47 : vector<1x8xi1>, vector<1x8xf32>
    %49 = vector.extract_strided_slice %40 {offsets = [0, 0], sizes = [8, 128], strides = [1, 1]} : vector<16x128xf32> to vector<8x128xf32>
    %50 = vector.extract_strided_slice %41 {offsets = [0, 0], sizes = [8, 128], strides = [1, 1]} : vector<16x128xf32> to vector<8x128xf32>
    %51 = vector.extract_strided_slice %42 {offsets = [0, 0], sizes = [8, 128], strides = [1, 1]} : vector<16x128xf32> to vector<8x128xf32>
    %52 = vector.extract_strided_slice %49 {offsets = [0, 0], sizes = [8, 64], strides = [1, 1]} : vector<8x128xf32> to vector<8x64xf32>
    %53 = arith.truncf %52 : vector<8x64xf32> to vector<8x64xbf16>
    %54 = vector.extract_strided_slice %50 {offsets = [0, 0], sizes = [8, 64], strides = [1, 1]} : vector<8x128xf32> to vector<8x64xf32>
    %55 = arith.truncf %54 : vector<8x64xf32> to vector<8x64xbf16>
    %cst_22 = arith.constant dense<0.000000e+00> : vector<8x8xf32>
    %56 = tpu.matmul %53, %55, %cst_22 {dimension_numbers = #tpu.dot_dimension_numbers<[1], [1], [0], [0], [0, 0, 1, 0], [], []>} : vector<8x64xbf16>, vector<8x64xbf16>, vector<8x8xf32> -> vector<8x8xf32>
    %57 = vector.broadcast %48 : vector<1x8xf32> to vector<8x8xf32>
    %58 = arith.addf %56, %57 : vector<8x8xf32>
    %cst_23 = arith.constant dense<0xFF800000> : vector<8xf32>
    %59 = vector.multi_reduction <maximumf>, %58, %cst_23 [1] : vector<8x8xf32> to vector<8xf32>
    %60 = vector.shape_cast %59 : vector<8xf32> to vector<8x1xf32>
    %61 = vector.broadcast %60 : vector<8x1xf32> to vector<8x8xf32>
    %62 = arith.subf %58, %61 : vector<8x8xf32>
    %63 = math.exp %62 : vector<8x8xf32>
    %cst_24 = arith.constant dense<0.000000e+00> : vector<8xf32>
    %64 = vector.multi_reduction <add>, %63, %cst_24 [1] : vector<8x8xf32> to vector<8xf32>
    %65 = vector.shape_cast %64 : vector<8xf32> to vector<8x1xf32>
    %66 = tpu.reciprocal %65 {approx = true} : vector<8x1xf32> -> vector<8x1xf32>
    %67 = vector.broadcast %66 : vector<8x1xf32> to vector<8x8xf32>
    %68 = arith.mulf %63, %67 : vector<8x8xf32>
    %69 = arith.truncf %68 : vector<8x8xf32> to vector<8x8xbf16>
    %70 = vector.extract_strided_slice %51 {offsets = [0, 0], sizes = [8, 64], strides = [1, 1]} : vector<8x128xf32> to vector<8x64xf32>
    %71 = arith.truncf %70 : vector<8x64xf32> to vector<8x64xbf16>
    %cst_25 = arith.constant dense<0.000000e+00> : vector<8x64xf32>
    %72 = tpu.matmul %69, %71, %cst_25 {dimension_numbers = #tpu.dot_dimension_numbers<[1], [0], [0], [1], [0, 0, 1, 1], [], []>} : vector<8x8xbf16>, vector<8x64xbf16>, vector<8x64xf32> -> vector<8x64xf32>
    %c0_26 = arith.constant 0 : index
    %c0_27 = arith.constant 0 : index
    %73 = vector.load %arg20[%c0_26, %c0_27] : memref<16x128xf32, #tpu.memory_space<vmem>>, vector<8x64xf32>
    tpu.vector_store %arg20[%c0_26, %c0_27], %72 {strides = array<i32>} : memref<16x128xf32, #tpu.memory_space<vmem>>, vector<8x64xf32>,
    %74 = vector.extract_strided_slice %49 {offsets = [0, 64], sizes = [8, 64], strides = [1, 1]} : vector<8x128xf32> to vector<8x64xf32>
    %75 = arith.truncf %74 : vector<8x64xf32> to vector<8x64xbf16>
    %76 = vector.extract_strided_slice %50 {offsets = [0, 64], sizes = [8, 64], strides = [1, 1]} : vector<8x128xf32> to vector<8x64xf32>
    %77 = arith.truncf %76 : vector<8x64xf32> to vector<8x64xbf16>
    %cst_28 = arith.constant dense<0.000000e+00> : vector<8x8xf32>
    %78 = tpu.matmul %75, %77, %cst_28 {dimension_numbers = #tpu.dot_dimension_numbers<[1], [1], [0], [0], [0, 0, 1, 0], [], []>} : vector<8x64xbf16>, vector<8x64xbf16>, vector<8x8xf32> -> vector<8x8xf32>
    %79 = vector.broadcast %48 : vector<1x8xf32> to vector<8x8xf32>
    %80 = arith.addf %78, %79 : vector<8x8xf32>
    %cst_29 = arith.constant dense<0xFF800000> : vector<8xf32>
    %81 = vector.multi_reduction <maximumf>, %80, %cst_29 [1] : vector<8x8xf32> to vector<8xf32>
    %82 = vector.shape_cast %81 : vector<8xf32> to vector<8x1xf32>
    %83 = vector.broadcast %82 : vector<8x1xf32> to vector<8x8xf32>
    %84 = arith.subf %80, %83 : vector<8x8xf32>
    %85 = math.exp %84 : vector<8x8xf32>
    %cst_30 = arith.constant dense<0.000000e+00> : vector<8xf32>
    %86 = vector.multi_reduction <add>, %85, %cst_30 [1] : vector<8x8xf32> to vector<8xf32>
    %87 = vector.shape_cast %86 : vector<8xf32> to vector<8x1xf32>
    %88 = tpu.reciprocal %87 {approx = true} : vector<8x1xf32> -> vector<8x1xf32>
    %89 = vector.broadcast %88 : vector<8x1xf32> to vector<8x8xf32>
    %90 = arith.mulf %85, %89 : vector<8x8xf32>
    %91 = arith.truncf %90 : vector<8x8xf32> to vector<8x8xbf16>
    %92 = vector.extract_strided_slice %51 {offsets = [0, 64], sizes = [8, 64], strides = [1, 1]} : vector<8x128xf32> to vector<8x64xf32>
    %93 = arith.truncf %92 : vector<8x64xf32> to vector<8x64xbf16>
    %cst_31 = arith.constant dense<0.000000e+00> : vector<8x64xf32>
    %94 = tpu.matmul %91, %93, %cst_31 {dimension_numbers = #tpu.dot_dimension_numbers<[1], [0], [0], [1], [0, 0, 1, 1], [], []>} : vector<8x8xbf16>, vector<8x64xbf16>, vector<8x64xf32> -> vector<8x64xf32>
    %c0_32 = arith.constant 0 : index
    %c64 = arith.constant 64 : index
    %95 = vector.load %arg20[%c0_32, %c64] : memref<16x128xf32, #tpu.memory_space<vmem>>, vector<8x64xf32>
    tpu.vector_store %arg20[%c0_32, %c64], %94 {strides = array<i32>} : memref<16x128xf32, #tpu.memory_space<vmem>>, vector<8x64xf32>,
    %96 = vector.extract_strided_slice %40 {offsets = [8, 0], sizes = [8, 128], strides = [1, 1]} : vector<16x128xf32> to vector<8x128xf32>
    %97 = vector.extract_strided_slice %41 {offsets = [8, 0], sizes = [8, 128], strides = [1, 1]} : vector<16x128xf32> to vector<8x128xf32>
    %98 = vector.extract_strided_slice %42 {offsets = [8, 0], sizes = [8, 128], strides = [1, 1]} : vector<16x128xf32> to vector<8x128xf32>
    %99 = vector.extract_strided_slice %96 {offsets = [0, 0], sizes = [8, 64], strides = [1, 1]} : vector<8x128xf32> to vector<8x64xf32>
    %100 = arith.truncf %99 : vector<8x64xf32> to vector<8x64xbf16>
    %101 = vector.extract_strided_slice %97 {offsets = [0, 0], sizes = [8, 64], strides = [1, 1]} : vector<8x128xf32> to vector<8x64xf32>
    %102 = arith.truncf %101 : vector<8x64xf32> to vector<8x64xbf16>
    %cst_33 = arith.constant dense<0.000000e+00> : vector<8x8xf32>
    %103 = tpu.matmul %100, %102, %cst_33 {dimension_numbers = #tpu.dot_dimension_numbers<[1], [1], [0], [0], [0, 0, 1, 0], [], []>} : vector<8x64xbf16>, vector<8x64xbf16>, vector<8x8xf32> -> vector<8x8xf32>
    %104 = vector.broadcast %48 : vector<1x8xf32> to vector<8x8xf32>
    %105 = arith.addf %103, %104 : vector<8x8xf32>
    %cst_34 = arith.constant dense<0xFF800000> : vector<8xf32>
    %106 = vector.multi_reduction <maximumf>, %105, %cst_34 [1] : vector<8x8xf32> to vector<8xf32>
    %107 = vector.shape_cast %106 : vector<8xf32> to vector<8x1xf32>
    %108 = vector.broadcast %107 : vector<8x1xf32> to vector<8x8xf32>
    %109 = arith.subf %105, %108 : vector<8x8xf32>
    %110 = math.exp %109 : vector<8x8xf32>
    %cst_35 = arith.constant dense<0.000000e+00> : vector<8xf32>
    %111 = vector.multi_reduction <add>, %110, %cst_35 [1] : vector<8x8xf32> to vector<8xf32>
    %112 = vector.shape_cast %111 : vector<8xf32> to vector<8x1xf32>
    %113 = tpu.reciprocal %112 {approx = true} : vector<8x1xf32> -> vector<8x1xf32>
    %114 = vector.broadcast %113 : vector<8x1xf32> to vector<8x8xf32>
    %115 = arith.mulf %110, %114 : vector<8x8xf32>
    %116 = arith.truncf %115 : vector<8x8xf32> to vector<8x8xbf16>
    %117 = vector.extract_strided_slice %98 {offsets = [0, 0], sizes = [8, 64], strides = [1, 1]} : vector<8x128xf32> to vector<8x64xf32>
    %118 = arith.truncf %117 : vector<8x64xf32> to vector<8x64xbf16>
    %cst_36 = arith.constant dense<0.000000e+00> : vector<8x64xf32>
    %119 = tpu.matmul %116, %118, %cst_36 {dimension_numbers = #tpu.dot_dimension_numbers<[1], [0], [0], [1], [0, 0, 1, 1], [], []>} : vector<8x8xbf16>, vector<8x64xbf16>, vector<8x64xf32> -> vector<8x64xf32>
    %c8 = arith.constant 8 : index
    %c0_37 = arith.constant 0 : index
    %120 = vector.load %arg20[%c8, %c0_37] : memref<16x128xf32, #tpu.memory_space<vmem>>, vector<8x64xf32>
    tpu.vector_store %arg20[%c8, %c0_37], %119 {strides = array<i32>} : memref<16x128xf32, #tpu.memory_space<vmem>>, vector<8x64xf32>,
    %121 = vector.extract_strided_slice %96 {offsets = [0, 64], sizes = [8, 64], strides = [1, 1]} : vector<8x128xf32> to vector<8x64xf32>
    %122 = arith.truncf %121 : vector<8x64xf32> to vector<8x64xbf16>
    %123 = vector.extract_strided_slice %97 {offsets = [0, 64], sizes = [8, 64], strides = [1, 1]} : vector<8x128xf32> to vector<8x64xf32>
    %124 = arith.truncf %123 : vector<8x64xf32> to vector<8x64xbf16>
    %cst_38 = arith.constant dense<0.000000e+00> : vector<8x8xf32>
    %125 = tpu.matmul %122, %124, %cst_38 {dimension_numbers = #tpu.dot_dimension_numbers<[1], [1], [0], [0], [0, 0, 1, 0], [], []>} : vector<8x64xbf16>, vector<8x64xbf16>, vector<8x8xf32> -> vector<8x8xf32>
    %126 = vector.broadcast %48 : vector<1x8xf32> to vector<8x8xf32>
    %127 = arith.addf %125, %126 : vector<8x8xf32>
    %cst_39 = arith.constant dense<0xFF800000> : vector<8xf32>
    %128 = vector.multi_reduction <maximumf>, %127, %cst_39 [1] : vector<8x8xf32> to vector<8xf32>
    %129 = vector.shape_cast %128 : vector<8xf32> to vector<8x1xf32>
    %130 = vector.broadcast %129 : vector<8x1xf32> to vector<8x8xf32>
    %131 = arith.subf %127, %130 : vector<8x8xf32>
    %132 = math.exp %131 : vector<8x8xf32>
    %cst_40 = arith.constant dense<0.000000e+00> : vector<8xf32>
    %133 = vector.multi_reduction <add>, %132, %cst_40 [1] : vector<8x8xf32> to vector<8xf32>
    %134 = vector.shape_cast %133 : vector<8xf32> to vector<8x1xf32>
    %135 = tpu.reciprocal %134 {approx = true} : vector<8x1xf32> -> vector<8x1xf32>
    %136 = vector.broadcast %135 : vector<8x1xf32> to vector<8x8xf32>
    %137 = arith.mulf %132, %136 : vector<8x8xf32>
    %138 = arith.truncf %137 : vector<8x8xf32> to vector<8x8xbf16>
    %139 = vector.extract_strided_slice %98 {offsets = [0, 64], sizes = [8, 64], strides = [1, 1]} : vector<8x128xf32> to vector<8x64xf32>
    %140 = arith.truncf %139 : vector<8x64xf32> to vector<8x64xbf16>
    %cst_41 = arith.constant dense<0.000000e+00> : vector<8x64xf32>
    %141 = tpu.matmul %138, %140, %cst_41 {dimension_numbers = #tpu.dot_dimension_numbers<[1], [0], [0], [1], [0, 0, 1, 1], [], []>} : vector<8x8xbf16>, vector<8x64xbf16>, vector<8x64xf32> -> vector<8x64xf32>
    %c8_42 = arith.constant 8 : index
    %c64_43 = arith.constant 64 : index
    %142 = vector.load %arg20[%c8_42, %c64_43] : memref<16x128xf32, #tpu.memory_space<vmem>>, vector<8x64xf32>
    tpu.vector_store %arg20[%c8_42, %c64_43], %141 {strides = array<i32>} : memref<16x128xf32, #tpu.memory_space<vmem>>, vector<8x64xf32>,
    %c0_44 = arith.constant 0 : index
    %c0_45 = arith.constant 0 : index
    %143 = vector.load %arg20[%c0_44, %c0_45] : memref<16x128xf32, #tpu.memory_space<vmem>>, vector<16x128xf32>
    %144 = arith.truncf %143 : vector<16x128xf32> to vector<16x128xbf16>
    %c0_46 = arith.constant 0 : index
    %c0_47 = arith.constant 0 : index
    %c0_48 = arith.constant 0 : index
    %145 = vector.load %arg8[%c0_46, %c0_47, %c0_48] : memref<1x128x128xbf16, #tpu.memory_space<vmem>>, vector<1x128x128xbf16>
    %146 = vector.shape_cast %145 : vector<1x128x128xbf16> to vector<128x128xbf16>
    %cst_49 = arith.constant dense<0.000000e+00> : vector<16x128xf32>
    %147 = tpu.matmul %144, %146, %cst_49 {dimension_numbers = #tpu.dot_dimension_numbers<[1], [0], [0], [1], [0, 0, 1, 1], [], []>} : vector<16x128xbf16>, vector<128x128xbf16>, vector<16x128xf32> -> vector<16x128xf32>
    %c0_50 = arith.constant 0 : index
    %c0_51 = arith.constant 0 : index
    %c0_52 = arith.constant 0 : index
    %148 = vector.load %arg9[%c0_50, %c0_51, %c0_52] : memref<1x1x128xf32, #tpu.memory_space<vmem>>, vector<1x1x128xf32>
    %149 = vector.shape_cast %148 : vector<1x1x128xf32> to vector<1x128xf32>
    %150 = vector.broadcast %149 : vector<1x128xf32> to vector<16x128xf32>
    %151 = arith.addf %147, %150 : vector<16x128xf32>
    %c0_53 = arith.constant 0 : index
    %c0_54 = arith.constant 0 : index
    %c0_55 = arith.constant 0 : index
    %152 = vector.load %arg10[%c0_53, %c0_54, %c0_55] : memref<1x1x128xf32, #tpu.memory_space<vmem>>, vector<1x1x128xf32>
    %153 = vector.shape_cast %152 : vector<1x1x128xf32> to vector<1x128xf32>
    %154 = vector.broadcast %153 : vector<1x128xf32> to vector<16x128xf32>
    %155 = arith.mulf %154, %151 : vector<16x128xf32>
    %156 = arith.addf %3, %155 : vector<16x128xf32>
    %c0_56 = arith.constant 0 : index
    %c0_57 = arith.constant 0 : index
    %c0_58 = arith.constant 0 : index
    %157 = vector.load %arg11[%c0_56, %c0_57, %c0_58] : memref<1x1x128xf32, #tpu.memory_space<vmem>>, vector<1x1x128xf32>
    %158 = vector.shape_cast %157 : vector<1x1x128xf32> to vector<1x128xf32>
    %c0_59 = arith.constant 0 : index
    %c0_60 = arith.constant 0 : index
    %c0_61 = arith.constant 0 : index
    %159 = vector.load %arg12[%c0_59, %c0_60, %c0_61] : memref<1x1x128xf32, #tpu.memory_space<vmem>>, vector<1x1x128xf32>
    %160 = vector.shape_cast %159 : vector<1x1x128xf32> to vector<1x128xf32>
    %cst_62 = arith.constant dense<0.000000e+00> : vector<16xf32>
    %161 = vector.multi_reduction <add>, %156, %cst_62 [1] : vector<16x128xf32> to vector<16xf32>
    %162 = vector.shape_cast %161 : vector<16xf32> to vector<16x1xf32>
    %cst_63 = arith.constant 1.280000e+02 : f32
    %163 = vector.broadcast %cst_63 : f32 to vector<16x1xf32>
    %164 = arith.divf %162, %163 : vector<16x1xf32>
    %165 = vector.broadcast %164 : vector<16x1xf32> to vector<16x128xf32>
    %166 = arith.subf %156, %165 : vector<16x128xf32>
    %167 = arith.mulf %166, %166 : vector<16x128xf32>
    %cst_64 = arith.constant dense<0.000000e+00> : vector<16xf32>
    %168 = vector.multi_reduction <add>, %167, %cst_64 [1] : vector<16x128xf32> to vector<16xf32>
    %169 = vector.shape_cast %168 : vector<16xf32> to vector<16x1xf32>
    %cst_65 = arith.constant 1.280000e+02 : f32
    %170 = vector.broadcast %cst_65 : f32 to vector<16x1xf32>
    %171 = arith.divf %169, %170 : vector<16x1xf32>
    %172 = vector.broadcast %164 : vector<16x1xf32> to vector<16x128xf32>
    %173 = arith.subf %156, %172 : vector<16x128xf32>
    %cst_66 = arith.constant 9.99999997E-7 : f32
    %174 = vector.broadcast %cst_66 : f32 to vector<16x1xf32>
    %175 = arith.addf %171, %174 : vector<16x1xf32>
    %176 = math.rsqrt %175 : vector<16x1xf32>
    %177 = vector.broadcast %176 : vector<16x1xf32> to vector<16x128xf32>
    %178 = arith.mulf %173, %177 : vector<16x128xf32>
    %179 = vector.broadcast %158 : vector<1x128xf32> to vector<16x128xf32>
    %180 = arith.mulf %178, %179 : vector<16x128xf32>
    %181 = vector.broadcast %160 : vector<1x128xf32> to vector<16x128xf32>
    %182 = arith.addf %180, %181 : vector<16x128xf32>
    %183 = arith.truncf %182 : vector<16x128xf32> to vector<16x128xbf16>
    %c0_67 = arith.constant 0 : index
    %c0_68 = arith.constant 0 : index
    %c0_69 = arith.constant 0 : index
    %184 = vector.load %arg13[%c0_67, %c0_68, %c0_69] : memref<1x128x512xbf16, #tpu.memory_space<vmem>>, vector<1x128x512xbf16>
    %185 = vector.shape_cast %184 : vector<1x128x512xbf16> to vector<128x512xbf16>
    %cst_70 = arith.constant dense<0.000000e+00> : vector<16x512xf32>
    %186 = tpu.matmul %183, %185, %cst_70 {dimension_numbers = #tpu.dot_dimension_numbers<[1], [0], [0], [1], [0, 0, 1, 1], [], []>} : vector<16x128xbf16>, vector<128x512xbf16>, vector<16x512xf32> -> vector<16x512xf32>
    %c0_71 = arith.constant 0 : index
    %c0_72 = arith.constant 0 : index
    %c0_73 = arith.constant 0 : index
    %187 = vector.load %arg14[%c0_71, %c0_72, %c0_73] : memref<1x1x512xf32, #tpu.memory_space<vmem>>, vector<1x1x512xf32>
    %188 = vector.shape_cast %187 : vector<1x1x512xf32> to vector<1x512xf32>
    %189 = vector.broadcast %188 : vector<1x512xf32> to vector<16x512xf32>
    %190 = arith.addf %186, %189 : vector<16x512xf32>
    %cst_74 = arith.constant 5.000000e-01 : f32
    %191 = vector.broadcast %cst_74 : f32 to vector<16x512xf32>
    %192 = arith.mulf %191, %190 : vector<16x512xf32>
    %cst_75 = arith.constant 0.707106769 : f32
    %193 = vector.broadcast %cst_75 : f32 to vector<16x512xf32>
    %194 = arith.mulf %190, %193 : vector<16x512xf32>
    %cst_76 = arith.constant 0.000000e+00 : f32
    %195 = vector.broadcast %cst_76 : f32 to vector<16x512xf32>
    %196 = arith.cmpf oge, %194, %195 : vector<16x512xf32>
    %cst_77 = arith.constant 1.000000e+00 : f32
    %cst_78 = arith.constant -1.000000e+00 : f32
    %197 = vector.broadcast %cst_77 : f32 to vector<16x512xf32>
    %198 = vector.broadcast %cst_78 : f32 to vector<16x512xf32>
    %199 = arith.select %196, %197, %198 : vector<16x512xi1>, vector<16x512xf32>
    %200 = math.absf %194 : vector<16x512xf32>
    %cst_79 = arith.constant 0.327591091 : f32
    %201 = vector.broadcast %cst_79 : f32 to vector<16x512xf32>
    %202 = arith.mulf %201, %200 : vector<16x512xf32>
    %cst_80 = arith.constant 1.000000e+00 : f32
    %203 = vector.broadcast %cst_80 : f32 to vector<16x512xf32>
    %204 = arith.addf %203, %202 : vector<16x512xf32>
    %205 = tpu.reciprocal %204 {approx = true} : vector<16x512xf32> -> vector<16x512xf32>
    %cst_81 = arith.constant 1.06140542 : f32
    %206 = vector.broadcast %cst_81 : f32 to vector<16x512xf32>
    %207 = arith.mulf %206, %205 : vector<16x512xf32>
    %cst_82 = arith.constant -1.45315206 : f32
    %208 = vector.broadcast %cst_82 : f32 to vector<16x512xf32>
    %209 = arith.addf %207, %208 : vector<16x512xf32>
    %210 = arith.mulf %209, %205 : vector<16x512xf32>
    %cst_83 = arith.constant 1.42141378 : f32
    %211 = vector.broadcast %cst_83 : f32 to vector<16x512xf32>
    %212 = arith.addf %210, %211 : vector<16x512xf32>
    %213 = arith.mulf %212, %205 : vector<16x512xf32>
    %cst_84 = arith.constant -0.284496725 : f32
    %214 = vector.broadcast %cst_84 : f32 to vector<16x512xf32>
    %215 = arith.addf %213, %214 : vector<16x512xf32>
    %216 = arith.mulf %215, %205 : vector<16x512xf32>
    %cst_85 = arith.constant 0.254829586 : f32
    %217 = vector.broadcast %cst_85 : f32 to vector<16x512xf32>
    %218 = arith.addf %216, %217 : vector<16x512xf32>
    %219 = arith.mulf %218, %205 : vector<16x512xf32>
    %cst_86 = arith.constant 0.000000e+00 : f32
    %220 = vector.broadcast %cst_86 : f32 to vector<16x512xf32>
    %221 = arith.subf %220, %200 : vector<16x512xf32>
    %222 = arith.mulf %221, %200 : vector<16x512xf32>
    %223 = math.exp %222 : vector<16x512xf32>
    %224 = arith.mulf %219, %223 : vector<16x512xf32>
    %cst_87 = arith.constant 1.000000e+00 : f32
    %225 = vector.broadcast %cst_87 : f32 to vector<16x512xf32>
    %226 = arith.subf %225, %224 : vector<16x512xf32>
    %227 = arith.mulf %199, %226 : vector<16x512xf32>
    %cst_88 = arith.constant 1.000000e+00 : f32
    %228 = vector.broadcast %cst_88 : f32 to vector<16x512xf32>
    %229 = arith.addf %228, %227 : vector<16x512xf32>
    %230 = arith.mulf %192, %229 : vector<16x512xf32>
    %231 = arith.truncf %230 : vector<16x512xf32> to vector<16x512xbf16>
    %c0_89 = arith.constant 0 : index
    %c0_90 = arith.constant 0 : index
    %c0_91 = arith.constant 0 : index
    %232 = vector.load %arg15[%c0_89, %c0_90, %c0_91] : memref<1x512x128xbf16, #tpu.memory_space<vmem>>, vector<1x512x128xbf16>
    %233 = vector.shape_cast %232 : vector<1x512x128xbf16> to vector<512x128xbf16>
    %cst_92 = arith.constant dense<0.000000e+00> : vector<16x128xf32>
    %234 = tpu.matmul %231, %233, %cst_92 {dimension_numbers = #tpu.dot_dimension_numbers<[1], [0], [0], [1], [0, 0, 1, 1], [], []>} : vector<16x512xbf16>, vector<512x128xbf16>, vector<16x128xf32> -> vector<16x128xf32>
    %c0_93 = arith.constant 0 : index
    %c0_94 = arith.constant 0 : index
    %c0_95 = arith.constant 0 : index
    %235 = vector.load %arg16[%c0_93, %c0_94, %c0_95] : memref<1x1x128xf32, #tpu.memory_space<vmem>>, vector<1x1x128xf32>
    %236 = vector.shape_cast %235 : vector<1x1x128xf32> to vector<1x128xf32>
    %237 = vector.broadcast %236 : vector<1x128xf32> to vector<16x128xf32>
    %238 = arith.addf %234, %237 : vector<16x128xf32>
    %c0_96 = arith.constant 0 : index
    %c0_97 = arith.constant 0 : index
    %c0_98 = arith.constant 0 : index
    %239 = vector.load %arg17[%c0_96, %c0_97, %c0_98] : memref<1x1x128xf32, #tpu.memory_space<vmem>>, vector<1x1x128xf32>
    %240 = vector.shape_cast %239 : vector<1x1x128xf32> to vector<1x128xf32>
    %241 = vector.broadcast %240 : vector<1x128xf32> to vector<16x128xf32>
    %242 = arith.mulf %241, %238 : vector<16x128xf32>
    %243 = arith.addf %156, %242 : vector<16x128xf32>
    %c0_99 = arith.constant 0 : index
    %c0_100 = arith.constant 0 : index
    %244 = vector.load %arg19[%c0_99, %c0_100] : memref<16x128xf32, #tpu.memory_space<vmem>>, vector<16x128xf32>
    tpu.vector_store %arg19[%c0_99, %c0_100], %243 {strides = array<i32>} : memref<16x128xf32, #tpu.memory_space<vmem>>, vector<16x128xf32>,
    %c1_i32 = arith.constant 1 : i32
    %245 = arith.cmpi eq, %arg0, %c1_i32 : i32
    %246 = arith.extui %245 : i1 to i32
    %c0_i32_101 = arith.constant 0 : i32
    %247 = arith.cmpi ne, %246, %c0_i32_101 : i32
    scf.if %247 {
      %248 = vector.extract_strided_slice %243 {offsets = [0, 0], sizes = [1, 128], strides = [1, 1]} : vector<16x128xf32> to vector<1x128xf32>
      %249 = vector.extract_strided_slice %243 {offsets = [8, 0], sizes = [1, 128], strides = [1, 1]} : vector<16x128xf32> to vector<1x128xf32>
      %250 = tpu.concatenate %248, %249 in 0 : vector<1x128xf32>, vector<1x128xf32> -> vector<2x128xf32>
      %c0_102 = arith.constant 0 : index
      %c0_103 = arith.constant 0 : index
      %251 = vector.load %arg2[%c0_102, %c0_103] : memref<1x128xf32, #tpu.memory_space<vmem>>, vector<1x128xf32>
      %c0_104 = arith.constant 0 : index
      %c0_105 = arith.constant 0 : index
      %252 = vector.load %arg3[%c0_104, %c0_105] : memref<1x128xf32, #tpu.memory_space<vmem>>, vector<1x128xf32>
      %cst_106 = arith.constant dense<0.000000e+00> : vector<2xf32>
      %253 = vector.multi_reduction <add>, %250, %cst_106 [1] : vector<2x128xf32> to vector<2xf32>
      %254 = vector.shape_cast %253 : vector<2xf32> to vector<2x1xf32>
      %cst_107 = arith.constant 1.280000e+02 : f32
      %255 = vector.broadcast %cst_107 : f32 to vector<2x1xf32>
      %256 = arith.divf %254, %255 : vector<2x1xf32>
      %257 = vector.broadcast %256 : vector<2x1xf32> to vector<2x128xf32>
      %258 = arith.subf %250, %257 : vector<2x128xf32>
      %259 = arith.mulf %258, %258 : vector<2x128xf32>
      %cst_108 = arith.constant dense<0.000000e+00> : vector<2xf32>
      %260 = vector.multi_reduction <add>, %259, %cst_108 [1] : vector<2x128xf32> to vector<2xf32>
      %261 = vector.shape_cast %260 : vector<2xf32> to vector<2x1xf32>
      %cst_109 = arith.constant 1.280000e+02 : f32
      %262 = vector.broadcast %cst_109 : f32 to vector<2x1xf32>
      %263 = arith.divf %261, %262 : vector<2x1xf32>
      %264 = vector.broadcast %256 : vector<2x1xf32> to vector<2x128xf32>
      %265 = arith.subf %250, %264 : vector<2x128xf32>
      %cst_110 = arith.constant 9.99999997E-7 : f32
      %266 = vector.broadcast %cst_110 : f32 to vector<2x1xf32>
      %267 = arith.addf %263, %266 : vector<2x1xf32>
      %268 = math.rsqrt %267 : vector<2x1xf32>
      %269 = vector.broadcast %268 : vector<2x1xf32> to vector<2x128xf32>
      %270 = arith.mulf %265, %269 : vector<2x128xf32>
      %271 = vector.broadcast %251 : vector<1x128xf32> to vector<2x128xf32>
      %272 = arith.mulf %270, %271 : vector<2x128xf32>
      %273 = vector.broadcast %252 : vector<1x128xf32> to vector<2x128xf32>
      %274 = arith.addf %272, %273 : vector<2x128xf32>
      %c0_111 = arith.constant 0 : index
      %c0_112 = arith.constant 0 : index
      %275 = vector.load %arg18[%c0_111, %c0_112] : memref<2x128xf32, #tpu.memory_space<vmem>>, vector<2x128xf32>
      tpu.vector_store %arg18[%c0_111, %c0_112], %274 {strides = array<i32>} : memref<2x128xf32, #tpu.memory_space<vmem>>, vector<2x128xf32>,
    } else {
    }
    return
  }
  func.func @transform_0(%arg0: i32) -> (i32, i32) {
    %c0_i32 = arith.constant 0 : i32
    %c0_i32_0 = arith.constant 0 : i32
    %c0_i32_1 = arith.constant 0 : i32
    return %c0_i32, %c0_i32_0 : i32, i32
  }
  func.func @transform_1(%arg0: i32) -> (i32, i32) {
    %c0_i32 = arith.constant 0 : i32
    %c0_i32_0 = arith.constant 0 : i32
    %c0_i32_1 = arith.constant 0 : i32
    return %c0_i32, %c0_i32_0 : i32, i32
  }
  func.func @transform_2(%arg0: i32) -> (i32, i32) {
    %c0_i32 = arith.constant 0 : i32
    %c0_i32_0 = arith.constant 0 : i32
    %c0_i32_1 = arith.constant 0 : i32
    return %c0_i32, %c0_i32_0 : i32, i32
  }
  func.func @transform_3(%arg0: i32) -> (i32, i32, i32) {
    %c0_i32 = arith.constant 0 : i32
    %c0_i32_0 = arith.constant 0 : i32
    %c0_i32_1 = arith.constant 0 : i32
    return %arg0, %c0_i32, %c0_i32_0 : i32, i32, i32
  }
  func.func @transform_4(%arg0: i32) -> (i32, i32, i32) {
    %c0_i32 = arith.constant 0 : i32
    %c0_i32_0 = arith.constant 0 : i32
    %c0_i32_1 = arith.constant 0 : i32
    return %arg0, %c0_i32, %c0_i32_0 : i32, i32, i32
  }
  func.func @transform_5(%arg0: i32) -> (i32, i32, i32) {
    %c0_i32 = arith.constant 0 : i32
    %c0_i32_0 = arith.constant 0 : i32
    %c0_i32_1 = arith.constant 0 : i32
    return %arg0, %c0_i32, %c0_i32_0 : i32, i32, i32
  }
  func.func @transform_6(%arg0: i32) -> (i32, i32, i32) {
    %c0_i32 = arith.constant 0 : i32
    %c0_i32_0 = arith.constant 0 : i32
    %c0_i32_1 = arith.constant 0 : i32
    return %arg0, %c0_i32, %c0_i32_0 : i32, i32, i32
  }
  func.func @transform_7(%arg0: i32) -> (i32, i32, i32) {
    %c0_i32 = arith.constant 0 : i32
    %c0_i32_0 = arith.constant 0 : i32
    %c0_i32_1 = arith.constant 0 : i32
    return %arg0, %c0_i32, %c0_i32_0 : i32, i32, i32
  }
  func.func @transform_8(%arg0: i32) -> (i32, i32, i32) {
    %c0_i32 = arith.constant 0 : i32
    %c0_i32_0 = arith.constant 0 : i32
    %c0_i32_1 = arith.constant 0 : i32
    return %arg0, %c0_i32, %c0_i32_0 : i32, i32, i32
  }
  func.func @transform_9(%arg0: i32) -> (i32, i32, i32) {
    %c0_i32 = arith.constant 0 : i32
    %c0_i32_0 = arith.constant 0 : i32
    %c0_i32_1 = arith.constant 0 : i32
    return %arg0, %c0_i32, %c0_i32_0 : i32, i32, i32
  }
  func.func @transform_10(%arg0: i32) -> (i32, i32, i32) {
    %c0_i32 = arith.constant 0 : i32
    %c0_i32_0 = arith.constant 0 : i32
    %c0_i32_1 = arith.constant 0 : i32
    return %arg0, %c0_i32, %c0_i32_0 : i32, i32, i32
  }
  func.func @transform_11(%arg0: i32) -> (i32, i32, i32) {
    %c0_i32 = arith.constant 0 : i32
    %c0_i32_0 = arith.constant 0 : i32
    %c0_i32_1 = arith.constant 0 : i32
    return %arg0, %c0_i32, %c0_i32_0 : i32, i32, i32
  }
  func.func @transform_12(%arg0: i32) -> (i32, i32, i32) {
    %c0_i32 = arith.constant 0 : i32
    %c0_i32_0 = arith.constant 0 : i32
    %c0_i32_1 = arith.constant 0 : i32
    return %arg0, %c0_i32, %c0_i32_0 : i32, i32, i32
  }
  func.func @transform_13(%arg0: i32) -> (i32, i32, i32) {
    %c0_i32 = arith.constant 0 : i32
    %c0_i32_0 = arith.constant 0 : i32
    %c0_i32_1 = arith.constant 0 : i32
    return %arg0, %c0_i32, %c0_i32_0 : i32, i32, i32
  }
  func.func @transform_14(%arg0: i32) -> (i32, i32, i32) {
    %c0_i32 = arith.constant 0 : i32
    %c0_i32_0 = arith.constant 0 : i32
    %c0_i32_1 = arith.constant 0 : i32
    return %arg0, %c0_i32, %c0_i32_0 : i32, i32, i32
  }
  func.func @transform_15(%arg0: i32) -> (i32, i32, i32) {
    %c0_i32 = arith.constant 0 : i32
    %c0_i32_0 = arith.constant 0 : i32
    %c0_i32_1 = arith.constant 0 : i32
    return %arg0, %c0_i32, %c0_i32_0 : i32, i32, i32
  }
  func.func @transform_16(%arg0: i32) -> (i32, i32, i32) {
    %c0_i32 = arith.constant 0 : i32
    %c0_i32_0 = arith.constant 0 : i32
    %c0_i32_1 = arith.constant 0 : i32
    return %arg0, %c0_i32, %c0_i32_0 : i32, i32, i32
  }
  func.func @transform_17(%arg0: i32) -> (i32, i32) {
    %c0_i32 = arith.constant 0 : i32
    %c0_i32_0 = arith.constant 0 : i32
    %c0_i32_1 = arith.constant 0 : i32
    return %c0_i32, %c0_i32_0 : i32, i32
  }
}

</mosaic_0001>

<llo_original>
// kernel: dinov2_forward.2
$region0: #{dinov2_forward.2}
  #allocation0 [shape = 'u32[]', space=smem, size = 0x4, offset = 0x4, fixed_abs, tag = 'smem constant byte address 0x4 - core index']
  #allocation1 [shape = 'u32[144,128]{1,0:T(1,128)}', space=vmem, size = 0x12000, scoped, tag = 'internal scratch']
  %s0 = inlined_call_operand.vmem [shape: bf16[8,588], index: 0, kind: input, shape index: {}]
  %s1 = inlined_call_operand.vmem [shape: bf16[588,128], index: 1, kind: input, shape index: {}]
  %s2 = inlined_call_operand.vmem [shape: f32[1,128], index: 2, kind: input, shape index: {}]
  %s3 = inlined_call_operand.vmem [shape: f32[1,128], index: 3, kind: input, shape index: {}]
  %s4 = inlined_call_operand.vmem [shape: f32[5,128], index: 4, kind: input, shape index: {}]
  %s5 = inlined_call_operand.hbm [shape: f32[16,128], index: 5, kind: output, shape index: {}]
  %s6 = sld [smem:[#allocation0]]
  $region30: #{dinov2_forward.2} parent=0
    _
  %s8 = ssub.s32 1, %s6
  %s9 = scalar_select 0, %s8, %s6
  $region1: #{dinov2_forward.2} parent=0
    #allocation2 [shape = 'u8[8192]{0}', space=vmem, size = 0x2000, scoped, tag = 'output window, operand 0, single buffered']
    #allocation3 [shape = 's32[1]{0}', space=sflag, size = 0x4, scoped, tag = 'scoped memory for dinov2_forward.2']
    %10 = vsyncpa [#allocation3], 0
    // Predicated region
    $region2: #{dinov2_forward.2} parent=1 // pred_check
      _
    $region3: #{dinov2_forward.2} parent=1 // pred_check_branch
      %12 = sbr.rel (0) target = $region5
    $region4: #{dinov2_forward.2} parent=1 // pred_region
      _
    $region5: #{dinov2_forward.2} parent=1 // pred_fallthru
      _
    // Predicated region
    $region6: #{dinov2_forward.2} parent=1 // pred_check
      _
    $region7: #{dinov2_forward.2} parent=1 // pred_check_branch
      %14 = sbr.rel (0) target = $region9
    $region8: #{dinov2_forward.2} parent=1 // pred_region
      _
    $region9: #{dinov2_forward.2} parent=1 // pred_fallthru
      _
    // Predicated region
    $region10: #{dinov2_forward.2} parent=1 // pred_check
      _
    $region11: #{dinov2_forward.2} parent=1 // pred_check_branch
      %16 = sbr.rel (0) target = $region13
    $region12: #{dinov2_forward.2} parent=1 // pred_region
      _
    $region13: #{dinov2_forward.2} parent=1 // pred_fallthru
      _
    // Predicated region
    $region14: #{dinov2_forward.2} parent=1 // pred_check
      _
    $region15: #{dinov2_forward.2} parent=1 // pred_check_branch
      %18 = sbr.rel (0) target = $region17
    $region16: #{dinov2_forward.2} parent=1 // pred_region
      _
    $region17: #{dinov2_forward.2} parent=1 // pred_fallthru
      _
    // Predicated region
    $region18: #{dinov2_forward.2} parent=1 // pred_check
      _
    $region19: #{dinov2_forward.2} parent=1 // pred_check_branch
      %20 = sbr.rel (0) target = $region21
    $region20: #{dinov2_forward.2} parent=1 // pred_region
      _
    $region21: #{dinov2_forward.2} parent=1 // pred_fallthru
      _
    %v22 = vld [vmem:[%s0] sm:$0xff]
    %v23 = vld [vmem:[%s0 + $0x8] sm:$0xff]
    %v24 = vld [vmem:[%s0 + $0x10] sm:$0xf]
    %v25 = vld [vmem:[%s1] sm:$0xf]
    %v26 = vld [vmem:[%s1 + $0x4] sm:$0xf]
    %v27 = vld [vmem:[%s1 + $0x8] sm:$0xf]
    %v28 = vld [vmem:[%s1 + $0xc] sm:$0xf]
    %v29 = vld [vmem:[%s1 + $0x10] sm:$0xf]
    %v30 = vld [vmem:[%s1 + $0x14] sm:$0xf]
    %v31 = vld [vmem:[%s1 + $0x18] sm:$0xf]
    %v32 = vld [vmem:[%s1 + $0x1c] sm:$0xf]
    %v33 = vld [vmem:[%s1 + $0x20] sm:$0xf]
    %v34 = vld [vmem:[%s1 + $0x24] sm:$0xf]
    %v35 = vld [vmem:[%s1 + $0x28] sm:$0xf]
    %v36 = vld [vmem:[%s1 + $0x2c] sm:$0xf]
    %v37 = vld [vmem:[%s1 + $0x30] sm:$0xf]
    %v38 = vld [vmem:[%s1 + $0x34] sm:$0xf]
    %v39 = vld [vmem:[%s1 + $0x38] sm:$0xf]
    %v40 = vld [vmem:[%s1 + $0x3c] sm:$0xf]
    %v41 = vld [vmem:[%s1 + $0x40] sm:$0xf]
    %v42 = vld [vmem:[%s1 + $0x44] sm:$0xf]
    %v43 = vld [vmem:[%s1 + $0x48] sm:$0xf]
    %v44 = vld [vmem:[%s1 + $0x4c] sm:$0xf]
    %v45 = vld [vmem:[%s1 + $0x50] sm:$0xf]
    %v46 = vld [vmem:[%s1 + $0x54] sm:$0xf]
    %v47 = vld [vmem:[%s1 + $0x58] sm:$0xf]
    %v48 = vld [vmem:[%s1 + $0x5c] sm:$0xf]
    %v49 = vld [vmem:[%s1 + $0x60] sm:$0xf]
    %v50 = vld [vmem:[%s1 + $0x64] sm:$0xf]
    %v51 = vld [vmem:[%s1 + $0x68] sm:$0xf]
    %v52 = vld [vmem:[%s1 + $0x6c] sm:$0xf]
    %v53 = vld [vmem:[%s1 + $0x70] sm:$0xf]
    %v54 = vld [vmem:[%s1 + $0x74] sm:$0xf]
    %v55 = vld [vmem:[%s1 + $0x78] sm:$0xf]
    %v56 = vld [vmem:[%s1 + $0x7c] sm:$0xf]
    %v57 = vld [vmem:[%s1 + $0x80] sm:$0xf]
    %v58 = vld [vmem:[%s1 + $0x84] sm:$0xf]
    %v59 = vld [vmem:[%s1 + $0x88] sm:$0xf]
    %v60 = vld [vmem:[%s1 + $0x8c] sm:$0xf]
    %v61 = vld [vmem:[%s1 + $0x90] sm:$0xf]
    %v62 = vld [vmem:[%s1 + $0x94] sm:$0xf]
    %v63 = vld [vmem:[%s1 + $0x98] sm:$0xf]
    %v64 = vld [vmem:[%s1 + $0x9c] sm:$0xf]
    %v65 = vld [vmem:[%s1 + $0xa0] sm:$0xf]
    %v66 = vld [vmem:[%s1 + $0xa4] sm:$0xf]
    %v67 = vld [vmem:[%s1 + $0xa8] sm:$0xf]
    %v68 = vld [vmem:[%s1 + $0xac] sm:$0xf]
    %v69 = vld [vmem:[%s1 + $0xb0] sm:$0xf]
    %v70 = vld [vmem:[%s1 + $0xb4] sm:$0xf]
    %v71 = vld [vmem:[%s1 + $0xb8] sm:$0xf]
    %v72 = vld [vmem:[%s1 + $0xbc] sm:$0xf]
    %v73 = vld [vmem:[%s1 + $0xc0] sm:$0xf]
    %v74 = vld [vmem:[%s1 + $0xc4] sm:$0xf]
    %v75 = vld [vmem:[%s1 + $0xc8] sm:$0xf]
    %v76 = vld [vmem:[%s1 + $0xcc] sm:$0xf]
    %v77 = vld [vmem:[%s1 + $0xd0] sm:$0xf]
    %v78 = vld [vmem:[%s1 + $0xd4] sm:$0xf]
    %v79 = vld [vmem:[%s1 + $0xd8] sm:$0xf]
    %v80 = vld [vmem:[%s1 + $0xdc] sm:$0xf]
    %v81 = vld [vmem:[%s1 + $0xe0] sm:$0xf]
    %v82 = vld [vmem:[%s1 + $0xe4] sm:$0xf]
    %v83 = vld [vmem:[%s1 + $0xe8] sm:$0xf]
    %v84 = vld [vmem:[%s1 + $0xec] sm:$0xf]
    %v85 = vld [vmem:[%s1 + $0xf0] sm:$0xf]
    %v86 = vld [vmem:[%s1 + $0xf4] sm:$0xf]
    %v87 = vld [vmem:[%s1 + $0xf8] sm:$0xf]
    %v88 = vld [vmem:[%s1 + $0xfc] sm:$0xf]
    %v89 = vld [vmem:[%s1 + $0x100] sm:$0xf]
    %v90 = vld [vmem:[%s1 + $0x104] sm:$0xf]
    %v91 = vld [vmem:[%s1 + $0x108] sm:$0xf]
    %v92 = vld [vmem:[%s1 + $0x10c] sm:$0xf]
    %v93 = vld [vmem:[%s1 + $0x110] sm:$0xf]
    %v94 = vld [vmem:[%s1 + $0x114] sm:$0xf]
    %v95 = vld [vmem:[%s1 + $0x118] sm:$0xf]
    %v96 = vld [vmem:[%s1 + $0x11c] sm:$0xf]
    %v97 = vld [vmem:[%s1 + $0x120] sm:$0xf]
    %v98 = vld [vmem:[%s1 + $0x124] sm:$0x3]
    %v99 = vld [vmem:[%s2] sm:$0x1]
    %v101 = vlaneseq
    %v102 = vshrl.u32 %v101, 7
    %v103 = vsub.s32 0, %v102
    %v104 = vrot.slane %v99, %v103
    %v109 = vunpack.c.l.b16 %v22
    %v110 = vunpack.c.h.b16 %v22
    %v111 = vunpack.c.l.b16 %v23
    %v112 = vunpack.c.h.b16 %v23
    %v113 = vunpack.c.l.b16 %v24
    %v114 = vpack.c.b16 %v109, %v109
    %v115 = vpack.c.b16 %v110, %v110
    %v116 = vpack.c.b16 %v111, %v111
    %v117 = vpack.c.b16 %v112, %v112
    %v118 = vpack.c.b16 %v113, %v113
    %v197 = vunpack.c.l.b16 %v25
    %v198 = vunpack.c.l.b16 %v26
    %v199 = vunpack.c.l.b16 %v27
    %v200 = vunpack.c.l.b16 %v28
    %v201 = vunpack.c.l.b16 %v29
    %v202 = vunpack.c.l.b16 %v30
    %v203 = vunpack.c.l.b16 %v31
    %v204 = vunpack.c.l.b16 %v32
    %v205 = vunpack.c.l.b16 %v33
    %v206 = vunpack.c.l.b16 %v34
    %v207 = vunpack.c.l.b16 %v35
    %v208 = vunpack.c.l.b16 %v36
    %v209 = vunpack.c.l.b16 %v37
    %v210 = vunpack.c.l.b16 %v38
    %v211 = vunpack.c.l.b16 %v39
    %v212 = vunpack.c.l.b16 %v40
    %v213 = vunpack.c.l.b16 %v41
    %v214 = vunpack.c.l.b16 %v42
    %v215 = vunpack.c.l.b16 %v43
    %v216 = vunpack.c.l.b16 %v44
    %v217 = vunpack.c.l.b16 %v45
    %v218 = vunpack.c.l.b16 %v46
    %v219 = vunpack.c.l.b16 %v47
    %v220 = vunpack.c.l.b16 %v48
    %v221 = vunpack.c.l.b16 %v49
    %v222 = vunpack.c.l.b16 %v50
    %v223 = vunpack.c.l.b16 %v51
    %v224 = vunpack.c.l.b16 %v52
    %v225 = vunpack.c.l.b16 %v53
    %v226 = vunpack.c.l.b16 %v54
    %v227 = vunpack.c.l.b16 %v55
    %v228 = vunpack.c.l.b16 %v56
    %v229 = vunpack.c.l.b16 %v57
    %v230 = vunpack.c.l.b16 %v58
    %v231 = vunpack.c.l.b16 %v59
    %v232 = vunpack.c.l.b16 %v60
    %v233 = vunpack.c.l.b16 %v61
    %v234 = vunpack.c.l.b16 %v62
    %v235 = vunpack.c.l.b16 %v63
    %v236 = vunpack.c.l.b16 %v64
    %v237 = vunpack.c.l.b16 %v65
    %v238 = vunpack.c.l.b16 %v66
    %v239 = vunpack.c.l.b16 %v67
    %v240 = vunpack.c.l.b16 %v68
    %v241 = vunpack.c.l.b16 %v69
    %v242 = vunpack.c.l.b16 %v70
    %v243 = vunpack.c.l.b16 %v71
    %v244 = vunpack.c.l.b16 %v72
    %v245 = vunpack.c.l.b16 %v73
    %v246 = vunpack.c.l.b16 %v74
    %v247 = vunpack.c.l.b16 %v75
    %v248 = vunpack.c.l.b16 %v76
    %v249 = vunpack.c.l.b16 %v77
    %v250 = vunpack.c.l.b16 %v78
    %v251 = vunpack.c.l.b16 %v79
    %v252 = vunpack.c.l.b16 %v80
    %v253 = vunpack.c.l.b16 %v81
    %v254 = vunpack.c.l.b16 %v82
    %v255 = vunpack.c.l.b16 %v83
    %v256 = vunpack.c.l.b16 %v84
    %v257 = vunpack.c.l.b16 %v85
    %v258 = vunpack.c.l.b16 %v86
    %v259 = vunpack.c.l.b16 %v87
    %v260 = vunpack.c.l.b16 %v88
    %v261 = vunpack.c.l.b16 %v89
    %v262 = vunpack.c.l.b16 %v90
    %v263 = vunpack.c.l.b16 %v91
    %v264 = vunpack.c.l.b16 %v92
    %v265 = vunpack.c.l.b16 %v93
    %v266 = vunpack.c.l.b16 %v94
    %v267 = vunpack.c.l.b16 %v95
    %v268 = vunpack.c.l.b16 %v96
    %v269 = vunpack.c.l.b16 %v97
    %v270 = vunpack.c.l.b16 %v98
    %v271 = vpack.c.b16 %v198, %v197
    %v272 = vpack.c.b16 %v200, %v199
    %v273 = vpack.c.b16 %v202, %v201
    %v274 = vpack.c.b16 %v204, %v203
    %v275 = vpack.c.b16 %v206, %v205
    %v276 = vpack.c.b16 %v208, %v207
    %v277 = vpack.c.b16 %v210, %v209
    %v278 = vpack.c.b16 %v212, %v211
    %v279 = vpack.c.b16 %v214, %v213
    %v280 = vpack.c.b16 %v216, %v215
    %v281 = vpack.c.b16 %v218, %v217
    %v282 = vpack.c.b16 %v220, %v219
    %v283 = vpack.c.b16 %v222, %v221
    %v284 = vpack.c.b16 %v224, %v223
    %v285 = vpack.c.b16 %v226, %v225
    %v286 = vpack.c.b16 %v228, %v227
    %v287 = vpack.c.b16 %v230, %v229
    %v288 = vpack.c.b16 %v232, %v231
    %v289 = vpack.c.b16 %v234, %v233
    %v290 = vpack.c.b16 %v236, %v235
    %v291 = vpack.c.b16 %v238, %v237
    %v292 = vpack.c.b16 %v240, %v239
    %v293 = vpack.c.b16 %v242, %v241
    %v294 = vpack.c.b16 %v244, %v243
    %v295 = vpack.c.b16 %v246, %v245
    %v296 = vpack.c.b16 %v248, %v247
    %v297 = vpack.c.b16 %v250, %v249
    %v298 = vpack.c.b16 %v252, %v251
    %v299 = vpack.c.b16 %v254, %v253
    %v300 = vpack.c.b16 %v256, %v255
    %v301 = vpack.c.b16 %v258, %v257
    %v302 = vpack.c.b16 %v260, %v259
    %v303 = vpack.c.b16 %v262, %v261
    %v304 = vpack.c.b16 %v264, %v263
    %v305 = vpack.c.b16 %v266, %v265
    %v306 = vpack.c.b16 %v268, %v267
    %v307 = vpack.c.b16 %v270, %v269
    %vm344 = vcmask 621568
    %v346 = vsel %vm344, %v118, 0
    %vm348 = vcmask 1045504
    %v350 = vsel %vm348, %v307, 0
    %352 = vmatprep.subr.bf16.mxu0 0
    %353 = vmatpush1.bf16.msra.mxu0 %v271
    %354 = vmatprep.subr.bf16.mxu0 0
    %355 = vmatpush1.bf16.msra.mxu0 %v272
    %356 = vmatprep.subr.bf16.mxu0 0
    %357 = vmatpush1.bf16.msra.mxu0 %v273
    %358 = vmatprep.subr.bf16.mxu0 0
    %359 = vmatpush1.bf16.msra.mxu0 %v274
    %360 = vmatprep.subr.bf16.mxu0 0
    %361 = vmatpush1.bf16.msra.mxu0 %v275
    %362 = vmatprep.subr.bf16.mxu0 0
    %363 = vmatpush1.bf16.msra.mxu0 %v276
    %364 = vmatprep.subr.bf16.mxu0 0
    %365 = vmatpush1.bf16.msra.mxu0 %v277
    %366 = vmatprep.subr.bf16.mxu0 0
    %367 = vmatpush1.bf16.msra.mxu0 %v278
    %368 = vmatprep.subr.bf16.mxu0 0
    %369 = vmatpush1.bf16.msra.mxu0 %v279
    %370 = vmatprep.subr.bf16.mxu0 0
    %371 = vmatpush1.bf16.msra.mxu0 %v280
    %372 = vmatprep.subr.bf16.mxu0 0
    %373 = vmatpush1.bf16.msra.mxu0 %v281
    %374 = vmatprep.subr.bf16.mxu0 0
    %375 = vmatpush1.bf16.msra.mxu0 %v282
    %376 = vmatprep.subr.bf16.mxu0 0
    %377 = vmatpush1.bf16.msra.mxu0 %v283
    %378 = vmatprep.subr.bf16.mxu0 0
    %379 = vmatpush1.bf16.msra.mxu0 %v284
    %380 = vmatprep.subr.bf16.mxu0 0
    %381 = vmatpush1.bf16.msra.mxu0 %v285
    %382 = vmatprep.subr.bf16.mxu0 0
    %383 = vmatpush1.bf16.msra.mxu0 %v286
    %384 = vmatprep.mubr.bf16.mxu0 %v115
    %385 = vmatmul.mubr.bf16.gmra.mrb[0].mxu0 %v114
    %v386 = vpop.f32.mrb[0].mxu0
    %v387 = vadd.f32 %v104, %v386
    %v388 = vpop.f32.mrb[0].mxu0
    %v389 = vpop.f32.mrb[0].mxu0
    %v390 = vpop.f32.mrb[0].mxu0
    %391 = vdwg.mxu0
    %392 = vmatprep.subr.bf16.mxu0 0
    %393 = vmatpush1.bf16.msra.mxu0 %v287
    %394 = vmatprep.subr.bf16.mxu0 0
    %395 = vmatpush1.bf16.msra.mxu0 %v288
    %396 = vmatprep.subr.bf16.mxu0 0
    %397 = vmatpush1.bf16.msra.mxu0 %v289
    %398 = vmatprep.subr.bf16.mxu0 0
    %399 = vmatpush1.bf16.msra.mxu0 %v290
    %400 = vmatprep.subr.bf16.mxu0 0
    %401 = vmatpush1.bf16.msra.mxu0 %v291
    %402 = vmatprep.subr.bf16.mxu0 0
    %403 = vmatpush1.bf16.msra.mxu0 %v292
    %404 = vmatprep.subr.bf16.mxu0 0
    %405 = vmatpush1.bf16.msra.mxu0 %v293
    %406 = vmatprep.subr.bf16.mxu0 0
    %407 = vmatpush1.bf16.msra.mxu0 %v294
    %408 = vmatprep.subr.bf16.mxu0 0
    %409 = vmatpush1.bf16.msra.mxu0 %v295
    %410 = vmatprep.subr.bf16.mxu0 0
    %411 = vmatpush1.bf16.msra.mxu0 %v296
    %412 = vmatprep.subr.bf16.mxu0 0
    %413 = vmatpush1.bf16.msra.mxu0 %v297
    %414 = vmatprep.subr.bf16.mxu0 0
    %415 = vmatpush1.bf16.msra.mxu0 %v298
    %416 = vmatprep.subr.bf16.mxu0 0
    %417 = vmatpush1.bf16.msra.mxu0 %v299
    %418 = vmatprep.subr.bf16.mxu0 0
    %419 = vmatpush1.bf16.msra.mxu0 %v300
    %420 = vmatprep.subr.bf16.mxu0 0
    %421 = vmatpush1.bf16.msra.mxu0 %v301
    %422 = vmatprep.subr.bf16.mxu0 0
    %423 = vmatpush1.bf16.msra.mxu0 %v302
    %424 = vmatprep.mubr.bf16.mxu0 %v117
    %425 = vmatmul.mubr.bf16.gmra.mrb[0].mxu0 %v116
    %v426 = vpop.f32.mrb[0].mxu0
    %v427 = vadd.f32 %v387, %v426
    %v428 = vpop.f32.mrb[0].mxu0
    %v429 = vpop.f32.mrb[0].mxu0
    %v430 = vpop.f32.mrb[0].mxu0
    %431 = vdwg.mxu0
    %432 = vmatprep.subr.bf16.mxu0 0
    %433 = vmatpush1.bf16.msra.mxu0 %v303
    %434 = vmatprep.subr.bf16.mxu0 0
    %435 = vmatpush1.bf16.msra.mxu0 %v304
    %436 = vmatprep.subr.bf16.mxu0 0
    %437 = vmatpush1.bf16.msra.mxu0 %v305
    %438 = vmatprep.subr.bf16.mxu0 0
    %439 = vmatpush1.bf16.msra.mxu0 %v306
    %440 = vmatprep.subr.bf16.mxu0 0
    %441 = vmatpush1.bf16.msra.mxu0 %v350
    %442 = vmatprep.subr.bf16.mxu0 0
    %443 = vmatpush1.bf16.msra.mxu0 0
    %444 = vmatprep.subr.bf16.mxu0 0
    %445 = vmatpush1.bf16.msra.mxu0 0
    %446 = vmatprep.subr.bf16.mxu0 0
    %447 = vmatpush1.bf16.msra.mxu0 0
    %448 = vmatprep.subr.bf16.mxu0 0
    %449 = vmatpush1.bf16.msra.mxu0 0
    %450 = vmatprep.subr.bf16.mxu0 0
    %451 = vmatpush1.bf16.msra.mxu0 0
    %452 = vmatprep.subr.bf16.mxu0 0
    %453 = vmatpush1.bf16.msra.mxu0 0
    %454 = vmatprep.subr.bf16.mxu0 0
    %455 = vmatpush1.bf16.msra.mxu0 0
    %456 = vmatprep.subr.bf16.mxu0 0
    %457 = vmatpush1.bf16.msra.mxu0 0
    %458 = vmatprep.subr.bf16.mxu0 0
    %459 = vmatpush1.bf16.msra.mxu0 0
    %460 = vmatprep.subr.bf16.mxu0 0
    %461 = vmatpush1.bf16.msra.mxu0 0
    %462 = vmatprep.subr.bf16.mxu0 0
    %463 = vmatpush1.bf16.msra.mxu0 0
    %464 = vmatprep.mubr.bf16.mxu0 0
    %465 = vmatmul.mubr.bf16.gmra.mrb[0].mxu0 %v346
    %v466 = vpop.f32.mrb[0].mxu0
    %v467 = vadd.f32 %v427, %v466
    %v468 = vpop.f32.mrb[0].mxu0
    %v469 = vpop.f32.mrb[0].mxu0
    %v470 = vpop.f32.mrb[0].mxu0
    %471 = vdwg.mxu0
    %v472 = vld [vmem:[%s4] sm:$0x1f]
    %v473 = vld [vmem:[%s3] sm:$0x1]
    %v474 = vadd.f32 %v473, %v472
    %v476 = vrot.slane %v472, 1
    %v478 = vadd.f32 %v467, %v476
    %v480 = vrot.slane %v478, 7
    %vm482 = vcmask 1040384
    %v483 = vsel %vm482, %v474, %v480
    %vm484 = vcmask 1044480
    %v485 = vsel %vm484, %v483, 0.0
    %v486 = vrot.slane %v472, 5
    %v488 = vadd.f32 %v467, %v486
    %v490 = vrot.slane %v488, 3
    %v492 = vsel %vm482, %v474, %v490
    %v493 = vsel %vm484, %v492, 0.0
    %494 = vst [vmem:[#allocation2] sm:$0xff] %v485
    %495 = vst [vmem:[#allocation2 + $0x8] sm:$0xff] %v493
    // Predicated region
    $region22: #{dinov2_forward.2} parent=1 // pred_check
      _
    $region23: #{dinov2_forward.2} parent=1 // pred_check_branch
      %497 = sbr.rel (0) target = $region25
    $region24: #{dinov2_forward.2} parent=1 // pred_region
      %s499 = ssub.s32 256, 256
      %500 = vsyncadd [#allocation3], %s499
      %s501 = sshll.u32 [#allocation2], 4
      %s502 = int_to_ptr.vmem [resolvable:$true] %s501
      %507 = dma.vmem_to_hbm [thread:$0]  %s502, 256, %s5, [#allocation3], 128, 128, 8
    $region25: #{dinov2_forward.2} parent=1 // pred_fallthru
      _
    // Predicated region
    $region26: #{dinov2_forward.2} parent=1 // pred_check
      _
    $region27: #{dinov2_forward.2} parent=1 // pred_check_branch
      %509 = sbr.rel (0) target = $region29
    $region28: #{dinov2_forward.2} parent=1 // pred_region
      %510 = dma.done [#allocation3], 256
    $region29: #{dinov2_forward.2} parent=1 // pred_fallthru
      _
    %511 = vsyncpa [#allocation3], 1

// kernel: dinov2_forward.3
$region0: #{dinov2_forward.3}
  #allocation0 [shape = 'u32[]', space=smem, size = 0x4, offset = 0x4, fixed_abs, tag = 'smem constant byte address 0x4 - core index']
  #allocation1 [shape = 'u32[144,128]{1,0:T(1,128)}', space=vmem, size = 0x12000, scoped, tag = 'internal scratch']
  #allocation2 [shape = 'f32[16,128]{1,0:T(8,128)}', space=vmem, size = 0x2000, scoped, tag = 'scratch operand']
  #allocation3 [shape = 'f32[16,128]{1,0:T(8,128)}', space=vmem, size = 0x2000, scoped, tag = 'scratch operand']
  %s0 = inlined_call_operand.hbm [shape: f32[16,128], index: 0, kind: input, shape index: {}]
  %s1 = inlined_call_operand.hbm [shape: f32[1,128], index: 1, kind: input, shape index: {}]
  %s2 = inlined_call_operand.hbm [shape: f32[1,128], index: 2, kind: input, shape index: {}]
  %s3 = inlined_call_operand.hbm [shape: f32[2,1,128], index: 3, kind: input, shape index: {}]
  %s4 = inlined_call_operand.hbm [shape: f32[2,1,128], index: 4, kind: input, shape index: {}]
  %s5 = inlined_call_operand.hbm [shape: bf16[2,128,384], index: 5, kind: input, shape index: {}]
  %s6 = inlined_call_operand.hbm [shape: f32[2,1,384], index: 6, kind: input, shape index: {}]
  %s7 = inlined_call_operand.hbm [shape: bf16[2,128,128], index: 7, kind: input, shape index: {}]
  %s8 = inlined_call_operand.hbm [shape: f32[2,1,128], index: 8, kind: input, shape index: {}]
  %s9 = inlined_call_operand.hbm [shape: f32[2,1,128], index: 9, kind: input, shape index: {}]
  %s10 = inlined_call_operand.hbm [shape: f32[2,1,128], index: 10, kind: input, shape index: {}]
  %s11 = inlined_call_operand.hbm [shape: f32[2,1,128], index: 11, kind: input, shape index: {}]
  %s12 = inlined_call_operand.hbm [shape: bf16[2,128,512], index: 12, kind: input, shape index: {}]
  %s13 = inlined_call_operand.hbm [shape: f32[2,1,512], index: 13, kind: input, shape index: {}]
  %s14 = inlined_call_operand.hbm [shape: bf16[2,512,128], index: 14, kind: input, shape index: {}]
  %s15 = inlined_call_operand.hbm [shape: f32[2,1,128], index: 15, kind: input, shape index: {}]
  %s16 = inlined_call_operand.hbm [shape: f32[2,1,128], index: 16, kind: input, shape index: {}]
  %s17 = inlined_call_operand.hbm [shape: f32[2,128], index: 17, kind: output, shape index: {}]
  %s18 = sld [smem:[#allocation0]]
  $region177: #{dinov2_forward.3} parent=0
    _
  %s20 = ssub.s32 1, %s18
  %s21 = scalar_select 0, %s20, %s18
  $region1: #{dinov2_forward.3} parent=0
    #allocation4 [shape = 'u8[8192]{0}', space=vmem, size = 0x2000, scoped, tag = 'input window, operand 0, single buffered']
    #allocation5 [shape = 's32[2]{0}', space=sflag, size = 0x8, scoped, tag = 'scoped memory for dinov2_forward.3']
    #allocation6 [shape = 's32[2]{0}', space=sflag, size = 0x8, scoped, tag = 'scoped memory for dinov2_forward.3']
    #allocation7 [shape = 'u8[512]{0}', space=vmem, size = 0x400, scoped, tag = 'input window, operand 1, single buffered']
    #allocation8 [shape = 's32[1]{0}', space=sflag, size = 0x4, scoped, tag = 'scoped memory for dinov2_forward.3']
    #allocation9 [shape = 'u8[512]{0}', space=vmem, size = 0x400, scoped, tag = 'input window, operand 2, single buffered']
    #allocation10 [shape = 'u8[1024]{0}', space=vmem, size = 0x400, scoped, tag = 'input window, operand 3']
    #allocation11 [shape = 's32[2]{0}', space=sflag, size = 0x8, scoped, tag = 'scoped memory for dinov2_forward.3']
    #allocation12 [shape = 'u8[1024]{0}', space=vmem, size = 0x400, scoped, tag = 'input window, operand 4']
    #allocation13 [shape = 'u8[196608]{0}', space=vmem, size = 0x30000, scoped, tag = 'input window, operand 5']
    #allocation14 [shape = 's32[2]{0}', space=sflag, size = 0x8, scoped, tag = 'scoped memory for dinov2_forward.3']
    #allocation15 [shape = 'u8[3072]{0}', space=vmem, size = 0xc00, scoped, tag = 'input window, operand 6']
    #allocation16 [shape = 'u8[65536]{0}', space=vmem, size = 0x10000, scoped, tag = 'input window, operand 7']
    #allocation17 [shape = 's32[2]{0}', space=sflag, size = 0x8, scoped, tag = 'scoped memory for dinov2_forward.3']
    #allocation18 [shape = 'u8[1024]{0}', space=vmem, size = 0x400, scoped, tag = 'input window, operand 8']
    #allocation19 [shape = 'u8[1024]{0}', space=vmem, size = 0x400, scoped, tag = 'input window, operand 9']
    #allocation20 [shape = 's32[2]{0}', space=sflag, size = 0x8, scoped, tag = 'scoped memory for dinov2_forward.3']
    #allocation21 [shape = 'u8[1024]{0}', space=vmem, size = 0x400, scoped, tag = 'input window, operand 10']
    #allocation22 [shape = 'u8[1024]{0}', space=vmem, size = 0x400, scoped, tag = 'input window, operand 11']
    #allocation23 [shape = 's32[2]{0}', space=sflag, size = 0x8, scoped, tag = 'scoped memory for dinov2_forward.3']
    #allocation24 [shape = 'u8[262144]{0}', space=vmem, size = 0x40000, scoped, tag = 'input window, operand 12']
    #allocation25 [shape = 'u8[4096]{0}', space=vmem, size = 0x1000, scoped, tag = 'input window, operand 13']
    #allocation26 [shape = 's32[2]{0}', space=sflag, size = 0x8, scoped, tag = 'scoped memory for dinov2_forward.3']
    #allocation27 [shape = 'u8[262144]{0}', space=vmem, size = 0x40000, scoped, tag = 'input window, operand 14']
    #allocation28 [shape = 'u8[1024]{0}', space=vmem, size = 0x400, scoped, tag = 'input window, operand 15']
    #allocation29 [shape = 's32[2]{0}', space=sflag, size = 0x8, scoped, tag = 'scoped memory for dinov2_forward.3']
    #allocation30 [shape = 'u8[1024]{0}', space=vmem, size = 0x400, scoped, tag = 'input window, operand 16']
    #allocation31 [shape = 'u8[1024]{0}', space=vmem, size = 0x400, scoped, tag = 'output window, operand 0, single buffered']
    %22 = vsyncpa [#allocation5], 0
    %23 = vsyncpa [#allocation8], 0
    %24 = vsyncpa [#allocation11], 0
    %s25 = scalar_lea.sflag [#allocation11], 1
    %26 = vsyncpa %s25, 0
    %27 = vsyncpa [#allocation14], 0
    %s28 = scalar_lea.sflag [#allocation14], 1
    %29 = vsyncpa %s28, 0
    %30 = vsyncpa [#allocation17], 0
    %s31 = scalar_lea.sflag [#allocation17], 1
    %32 = vsyncpa %s31, 0
    %33 = vsyncpa [#allocation20], 0
    %s34 = scalar_lea.sflag [#allocation20], 1
    %35 = vsyncpa %s34, 0
    %36 = vsyncpa [#allocation23], 0
    %s37 = scalar_lea.sflag [#allocation23], 1
    %38 = vsyncpa %s37, 0
    %39 = vsyncpa [#allocation26], 0
    %s40 = scalar_lea.sflag [#allocation26], 1
    %41 = vsyncpa %s40, 0
    %42 = vsyncpa [#allocation29], 0
    %s43 = scalar_lea.sflag [#allocation29], 1
    %44 = vsyncpa %s43, 0
    %45 = vsyncpa [#allocation6], 0
    loop: start=0, step=1, limit=4
    $region2: #{dinov2_forward.3} parent=1 // loop_pre_header
      _
    $region3: #{dinov2_forward.3} parent=1 // loop_header
      %s47 = sphi 0, %s51
      %p48 = scmp.ge.s32.totalorder %s47, 4
      %s55 = sphi 0, %s55
      %s57 = sphi 0, %s55
      %s58 = sphi 0, %s57
      %s72 = sphi 0, %s58
      %s76 = sphi 0, %s76
      %s78 = sphi 0, %s76
      %s79 = sphi 0, %s78
      %s93 = sphi 0, %s79
      %s97 = sphi 0, %s97
      %s99 = sphi 0, %s97
      %s100 = sphi 0, %s99
      %s114 = sphi 0, %s100
      %s120 = sphi 0, %s122
      %s123 = sphi 0, %s120
      %s124 = sphi 0, %s123
      %s140 = sphi 0, %s124
      %s146 = sphi 0, %s148
      %s149 = sphi 0, %s146
      %s150 = sphi 0, %s149
      %s166 = sphi 0, %s150
      %s172 = sphi 0, %s174
      %s175 = sphi 0, %s172
      %s176 = sphi 0, %s175
      %s192 = sphi 0, %s176
      %s198 = sphi 0, %s200
      %s201 = sphi 0, %s198
      %s202 = sphi 0, %s201
      %s218 = sphi 0, %s202
      %s224 = sphi 0, %s226
      %s227 = sphi 0, %s224
      %s228 = sphi 0, %s227
      %s244 = sphi 0, %s228
      %s250 = sphi 0, %s252
      %s253 = sphi 0, %s250
      %s254 = sphi 0, %s253
      %s270 = sphi 0, %s254
      %s276 = sphi 0, %s278
      %s279 = sphi 0, %s276
      %s280 = sphi 0, %s279
      %s296 = sphi 0, %s280
      %s302 = sphi 0, %s304
      %s305 = sphi 0, %s302
      %s306 = sphi 0, %s305
      %s322 = sphi 0, %s306
      %s328 = sphi 0, %s330
      %s331 = sphi 0, %s328
      %s332 = sphi 0, %s331
      %s348 = sphi 0, %s332
      %s354 = sphi 0, %s356
      %s357 = sphi 0, %s354
      %s358 = sphi 0, %s357
      %s374 = sphi 0, %s358
      %s380 = sphi 0, %s382
      %s383 = sphi 0, %s380
      %s384 = sphi 0, %s383
      %s400 = sphi 0, %s384
      %s406 = sphi 0, %s408
      %s409 = sphi 0, %s406
      %s410 = sphi 0, %s409
      %s426 = sphi 0, %s410
      %s432 = sphi 0, %s434
      %s435 = sphi 0, %s432
      %s436 = sphi 0, %s435
      %s452 = sphi 0, %s436
      %s458 = sphi 0, %s460
      %s461 = sphi 0, %s458
      %s462 = sphi 0, %s461
      %s478 = sphi 0, %s462
      %s482 = sphi 0, %s482
      %s484 = sphi 0, %s482
      %s485 = sphi 0, %s484
      %s499 = sphi 0, %s485
    $region4: #{dinov2_forward.3} parent=1 // loop_header_branch
      %50 = sbr.rel (%p48) target = $region8
    $region5: #{dinov2_forward.3} parent=1 // loop_body
      %s52 = ssub.s32 %s47, 1
      %s53 = ssub.s32 %s47, 2
      %s54 = sadd.s32 %s47, 1
      %s56 = sadd.s32 %s55, 1
      %p59 = scmp.eq.s32.totalorder %s47, 1
      %p60 = scmp.ne.s32.totalorder %s55, %s57
      %p61 = scmp.eq.s32.totalorder %s47, 0
      %p62 = por %p60, %p61
      %p63 = scmp.ne.s32.totalorder %s55, %s57
      %p64 = scmp.eq.s32.totalorder %s52, 1
      %p65 = por %p63, %p64
      %p66 = scmp.ne.s32.totalorder %s57, %s58
      %p67 = scmp.eq.s32.totalorder %s52, 0
      %p68 = por %p66, %p67
      %p69 = scmp.ne.s32.totalorder %s57, %s58
      %p70 = scmp.eq.s32.totalorder %s53, 1
      %p71 = por %p69, %p70
      %p73 = scmp.ne.s32.totalorder %s58, %s72
      %p74 = scmp.eq.s32.totalorder %s53, 0
      %p75 = por %p73, %p74
      %s77 = sadd.s32 %s76, 1
      %p80 = scmp.eq.s32.totalorder %s47, 1
      %p81 = scmp.ne.s32.totalorder %s76, %s78
      %p82 = scmp.eq.s32.totalorder %s47, 0
      %p83 = por %p81, %p82
      %p84 = scmp.ne.s32.totalorder %s76, %s78
      %p85 = scmp.eq.s32.totalorder %s52, 1
      %p86 = por %p84, %p85
      %p87 = scmp.ne.s32.totalorder %s78, %s79
      %p88 = scmp.eq.s32.totalorder %s52, 0
      %p89 = por %p87, %p88
      %p90 = scmp.ne.s32.totalorder %s78, %s79
      %p91 = scmp.eq.s32.totalorder %s53, 1
      %p92 = por %p90, %p91
      %p94 = scmp.ne.s32.totalorder %s79, %s93
      %p95 = scmp.eq.s32.totalorder %s53, 0
      %p96 = por %p94, %p95
      %s98 = sadd.s32 %s97, 1
      %p101 = scmp.eq.s32.totalorder %s47, 1
      %p102 = scmp.ne.s32.totalorder %s97, %s99
      %p103 = scmp.eq.s32.totalorder %s47, 0
      %p104 = por %p102, %p103
      %p105 = scmp.ne.s32.totalorder %s97, %s99
      %p106 = scmp.eq.s32.totalorder %s52, 1
      %p107 = por %p105, %p106
      %p108 = scmp.ne.s32.totalorder %s99, %s100
      %p109 = scmp.eq.s32.totalorder %s52, 0
      %p110 = por %p108, %p109
      %p111 = scmp.ne.s32.totalorder %s99, %s100
      %p112 = scmp.eq.s32.totalorder %s53, 1
      %p113 = por %p111, %p112
      %p115 = scmp.ne.s32.totalorder %s100, %s114
      %p116 = scmp.eq.s32.totalorder %s53, 0
      %p117 = por %p115, %p116
      %s118 = ssub.s32 %s47, %s54
      %p119 = scmp.eq.s32.totalorder %s118, 0
      %s121 = sadd.s32 %s120, 1
      %s122 = scalar_select %p119, %s120, %s121
      %p125 = pneg %p119
      %p126 = scmp.eq.s32.totalorder %s47, 1
      %p127 = por %p125, %p126
      %p128 = scmp.ne.s32.totalorder %s120, %s123
      %p129 = scmp.eq.s32.totalorder %s47, 0
      %p130 = por %p128, %p129
      %p131 = scmp.ne.s32.totalorder %s120, %s123
      %p132 = scmp.eq.s32.totalorder %s52, 1
      %p133 = por %p131, %p132
      %p134 = scmp.ne.s32.totalorder %s123, %s124
      %p135 = scmp.eq.s32.totalorder %s52, 0
      %p136 = por %p134, %p135
      %p137 = scmp.ne.s32.totalorder %s123, %s124
      %p138 = scmp.eq.s32.totalorder %s53, 1
      %p139 = por %p137, %p138
      %p141 = scmp.ne.s32.totalorder %s124, %s140
      %p142 = scmp.eq.s32.totalorder %s53, 0
      %p143 = por %p141, %p142
      %s144 = ssub.s32 %s47, %s54
      %p145 = scmp.eq.s32.totalorder %s144, 0
      %s147 = sadd.s32 %s146, 1
      %s148 = scalar_select %p145, %s146, %s147
      %p151 = pneg %p145
      %p152 = scmp.eq.s32.totalorder %s47, 1
      %p153 = por %p151, %p152
      %p154 = scmp.ne.s32.totalorder %s146, %s149
      %p155 = scmp.eq.s32.totalorder %s47, 0
      %p156 = por %p154, %p155
      %p157 = scmp.ne.s32.totalorder %s146, %s149
      %p158 = scmp.eq.s32.totalorder %s52, 1
      %p159 = por %p157, %p158
      %p160 = scmp.ne.s32.totalorder %s149, %s150
      %p161 = scmp.eq.s32.totalorder %s52, 0
      %p162 = por %p160, %p161
      %p163 = scmp.ne.s32.totalorder %s149, %s150
      %p164 = scmp.eq.s32.totalorder %s53, 1
      %p165 = por %p163, %p164
      %p167 = scmp.ne.s32.totalorder %s150, %s166
      %p168 = scmp.eq.s32.totalorder %s53, 0
      %p169 = por %p167, %p168
      %s170 = ssub.s32 %s47, %s54
      %p171 = scmp.eq.s32.totalorder %s170, 0
      %s173 = sadd.s32 %s172, 1
      %s174 = scalar_select %p171, %s172, %s173
      %p177 = pneg %p171
      %p178 = scmp.eq.s32.totalorder %s47, 1
      %p179 = por %p177, %p178
      %p180 = scmp.ne.s32.totalorder %s172, %s175
      %p181 = scmp.eq.s32.totalorder %s47, 0
      %p182 = por %p180, %p181
      %p183 = scmp.ne.s32.totalorder %s172, %s175
      %p184 = scmp.eq.s32.totalorder %s52, 1
      %p185 = por %p183, %p184
      %p186 = scmp.ne.s32.totalorder %s175, %s176
      %p187 = scmp.eq.s32.totalorder %s52, 0
      %p188 = por %p186, %p187
      %p189 = scmp.ne.s32.totalorder %s175, %s176
      %p190 = scmp.eq.s32.totalorder %s53, 1
      %p191 = por %p189, %p190
      %p193 = scmp.ne.s32.totalorder %s176, %s192
      %p194 = scmp.eq.s32.totalorder %s53, 0
      %p195 = por %p193, %p194
      %s196 = ssub.s32 %s47, %s54
      %p197 = scmp.eq.s32.totalorder %s196, 0
      %s199 = sadd.s32 %s198, 1
      %s200 = scalar_select %p197, %s198, %s199
      %p203 = pneg %p197
      %p204 = scmp.eq.s32.totalorder %s47, 1
      %p205 = por %p203, %p204
      %p206 = scmp.ne.s32.totalorder %s198, %s201
      %p207 = scmp.eq.s32.totalorder %s47, 0
      %p208 = por %p206, %p207
      %p209 = scmp.ne.s32.totalorder %s198, %s201
      %p210 = scmp.eq.s32.totalorder %s52, 1
      %p211 = por %p209, %p210
      %p212 = scmp.ne.s32.totalorder %s201, %s202
      %p213 = scmp.eq.s32.totalorder %s52, 0
      %p214 = por %p212, %p213
      %p215 = scmp.ne.s32.totalorder %s201, %s202
      %p216 = scmp.eq.s32.totalorder %s53, 1
      %p217 = por %p215, %p216
      %p219 = scmp.ne.s32.totalorder %s202, %s218
      %p220 = scmp.eq.s32.totalorder %s53, 0
      %p221 = por %p219, %p220
      %s222 = ssub.s32 %s47, %s54
      %p223 = scmp.eq.s32.totalorder %s222, 0
      %s225 = sadd.s32 %s224, 1
      %s226 = scalar_select %p223, %s224, %s225
      %p229 = pneg %p223
      %p230 = scmp.eq.s32.totalorder %s47, 1
      %p231 = por %p229, %p230
      %p232 = scmp.ne.s32.totalorder %s224, %s227
      %p233 = scmp.eq.s32.totalorder %s47, 0
      %p234 = por %p232, %p233
      %p235 = scmp.ne.s32.totalorder %s224, %s227
      %p236 = scmp.eq.s32.totalorder %s52, 1
      %p237 = por %p235, %p236
      %p238 = scmp.ne.s32.totalorder %s227, %s228
      %p239 = scmp.eq.s32.totalorder %s52, 0
      %p240 = por %p238, %p239
      %p241 = scmp.ne.s32.totalorder %s227, %s228
      %p242 = scmp.eq.s32.totalorder %s53, 1
      %p243 = por %p241, %p242
      %p245 = scmp.ne.s32.totalorder %s228, %s244
      %p246 = scmp.eq.s32.totalorder %s53, 0
      %p247 = por %p245, %p246
      %s248 = ssub.s32 %s47, %s54
      %p249 = scmp.eq.s32.totalorder %s248, 0
      %s251 = sadd.s32 %s250, 1
      %s252 = scalar_select %p249, %s250, %s251
      %p255 = pneg %p249
      %p256 = scmp.eq.s32.totalorder %s47, 1
      %p257 = por %p255, %p256
      %p258 = scmp.ne.s32.totalorder %s250, %s253
      %p259 = scmp.eq.s32.totalorder %s47, 0
      %p260 = por %p258, %p259
      %p261 = scmp.ne.s32.totalorder %s250, %s253
      %p262 = scmp.eq.s32.totalorder %s52, 1
      %p263 = por %p261, %p262
      %p264 = scmp.ne.s32.totalorder %s253, %s254
      %p265 = scmp.eq.s32.totalorder %s52, 0
      %p266 = por %p264, %p265
      %p267 = scmp.ne.s32.totalorder %s253, %s254
      %p268 = scmp.eq.s32.totalorder %s53, 1
      %p269 = por %p267, %p268
      %p271 = scmp.ne.s32.totalorder %s254, %s270
      %p272 = scmp.eq.s32.totalorder %s53, 0
      %p273 = por %p271, %p272
      %s274 = ssub.s32 %s47, %s54
      %p275 = scmp.eq.s32.totalorder %s274, 0
      %s277 = sadd.s32 %s276, 1
      %s278 = scalar_select %p275, %s276, %s277
      %p281 = pneg %p275
      %p282 = scmp.eq.s32.totalorder %s47, 1
      %p283 = por %p281, %p282
      %p284 = scmp.ne.s32.totalorder %s276, %s279
      %p285 = scmp.eq.s32.totalorder %s47, 0
      %p286 = por %p284, %p285
      %p287 = scmp.ne.s32.totalorder %s276, %s279
      %p288 = scmp.eq.s32.totalorder %s52, 1
      %p289 = por %p287, %p288
      %p290 = scmp.ne.s32.totalorder %s279, %s280
      %p291 = scmp.eq.s32.totalorder %s52, 0
      %p292 = por %p290, %p291
      %p293 = scmp.ne.s32.totalorder %s279, %s280
      %p294 = scmp.eq.s32.totalorder %s53, 1
      %p295 = por %p293, %p294
      %p297 = scmp.ne.s32.totalorder %s280, %s296
      %p298 = scmp.eq.s32.totalorder %s53, 0
      %p299 = por %p297, %p298
      %s300 = ssub.s32 %s47, %s54
      %p301 = scmp.eq.s32.totalorder %s300, 0
      %s303 = sadd.s32 %s302, 1
      %s304 = scalar_select %p301, %s302, %s303
      %p307 = pneg %p301
      %p308 = scmp.eq.s32.totalorder %s47, 1
      %p309 = por %p307, %p308
      %p310 = scmp.ne.s32.totalorder %s302, %s305
      %p311 = scmp.eq.s32.totalorder %s47, 0
      %p312 = por %p310, %p311
      %p313 = scmp.ne.s32.totalorder %s302, %s305
      %p314 = scmp.eq.s32.totalorder %s52, 1
      %p315 = por %p313, %p314
      %p316 = scmp.ne.s32.totalorder %s305, %s306
      %p317 = scmp.eq.s32.totalorder %s52, 0
      %p318 = por %p316, %p317
      %p319 = scmp.ne.s32.totalorder %s305, %s306
      %p320 = scmp.eq.s32.totalorder %s53, 1
      %p321 = por %p319, %p320
      %p323 = scmp.ne.s32.totalorder %s306, %s322
      %p324 = scmp.eq.s32.totalorder %s53, 0
      %p325 = por %p323, %p324
      %s326 = ssub.s32 %s47, %s54
      %p327 = scmp.eq.s32.totalorder %s326, 0
      %s329 = sadd.s32 %s328, 1
      %s330 = scalar_select %p327, %s328, %s329
      %p333 = pneg %p327
      %p334 = scmp.eq.s32.totalorder %s47, 1
      %p335 = por %p333, %p334
      %p336 = scmp.ne.s32.totalorder %s328, %s331
      %p337 = scmp.eq.s32.totalorder %s47, 0
      %p338 = por %p336, %p337
      %p339 = scmp.ne.s32.totalorder %s328, %s331
      %p340 = scmp.eq.s32.totalorder %s52, 1
      %p341 = por %p339, %p340
      %p342 = scmp.ne.s32.totalorder %s331, %s332
      %p343 = scmp.eq.s32.totalorder %s52, 0
      %p344 = por %p342, %p343
      %p345 = scmp.ne.s32.totalorder %s331, %s332
      %p346 = scmp.eq.s32.totalorder %s53, 1
      %p347 = por %p345, %p346
      %p349 = scmp.ne.s32.totalorder %s332, %s348
      %p350 = scmp.eq.s32.totalorder %s53, 0
      %p351 = por %p349, %p350
      %s352 = ssub.s32 %s47, %s54
      %p353 = scmp.eq.s32.totalorder %s352, 0
      %s355 = sadd.s32 %s354, 1
      %s356 = scalar_select %p353, %s354, %s355
      %p359 = pneg %p353
      %p360 = scmp.eq.s32.totalorder %s47, 1
      %p361 = por %p359, %p360
      %p362 = scmp.ne.s32.totalorder %s354, %s357
      %p363 = scmp.eq.s32.totalorder %s47, 0
      %p364 = por %p362, %p363
      %p365 = scmp.ne.s32.totalorder %s354, %s357
      %p366 = scmp.eq.s32.totalorder %s52, 1
      %p367 = por %p365, %p366
      %p368 = scmp.ne.s32.totalorder %s357, %s358
      %p369 = scmp.eq.s32.totalorder %s52, 0
      %p370 = por %p368, %p369
      %p371 = scmp.ne.s32.totalorder %s357, %s358
      %p372 = scmp.eq.s32.totalorder %s53, 1
      %p373 = por %p371, %p372
      %p375 = scmp.ne.s32.totalorder %s358, %s374
      %p376 = scmp.eq.s32.totalorder %s53, 0
      %p377 = por %p375, %p376
      %s378 = ssub.s32 %s47, %s54
      %p379 = scmp.eq.s32.totalorder %s378, 0
      %s381 = sadd.s32 %s380, 1
      %s382 = scalar_select %p379, %s380, %s381
      %p385 = pneg %p379
      %p386 = scmp.eq.s32.totalorder %s47, 1
      %p387 = por %p385, %p386
      %p388 = scmp.ne.s32.totalorder %s380, %s383
      %p389 = scmp.eq.s32.totalorder %s47, 0
      %p390 = por %p388, %p389
      %p391 = scmp.ne.s32.totalorder %s380, %s383
      %p392 = scmp.eq.s32.totalorder %s52, 1
      %p393 = por %p391, %p392
      %p394 = scmp.ne.s32.totalorder %s383, %s384
      %p395 = scmp.eq.s32.totalorder %s52, 0
      %p396 = por %p394, %p395
      %p397 = scmp.ne.s32.totalorder %s383, %s384
      %p398 = scmp.eq.s32.totalorder %s53, 1
      %p399 = por %p397, %p398
      %p401 = scmp.ne.s32.totalorder %s384, %s400
      %p402 = scmp.eq.s32.totalorder %s53, 0
      %p403 = por %p401, %p402
      %s404 = ssub.s32 %s47, %s54
      %p405 = scmp.eq.s32.totalorder %s404, 0
      %s407 = sadd.s32 %s406, 1
      %s408 = scalar_select %p405, %s406, %s407
      %p411 = pneg %p405
      %p412 = scmp.eq.s32.totalorder %s47, 1
      %p413 = por %p411, %p412
      %p414 = scmp.ne.s32.totalorder %s406, %s409
      %p415 = scmp.eq.s32.totalorder %s47, 0
      %p416 = por %p414, %p415
      %p417 = scmp.ne.s32.totalorder %s406, %s409
      %p418 = scmp.eq.s32.totalorder %s52, 1
      %p419 = por %p417, %p418
      %p420 = scmp.ne.s32.totalorder %s409, %s410
      %p421 = scmp.eq.s32.totalorder %s52, 0
      %p422 = por %p420, %p421
      %p423 = scmp.ne.s32.totalorder %s409, %s410
      %p424 = scmp.eq.s32.totalorder %s53, 1
      %p425 = por %p423, %p424
      %p427 = scmp.ne.s32.totalorder %s410, %s426
      %p428 = scmp.eq.s32.totalorder %s53, 0
      %p429 = por %p427, %p428
      %s430 = ssub.s32 %s47, %s54
      %p431 = scmp.eq.s32.totalorder %s430, 0
      %s433 = sadd.s32 %s432, 1
      %s434 = scalar_select %p431, %s432, %s433
      %p437 = pneg %p431
      %p438 = scmp.eq.s32.totalorder %s47, 1
      %p439 = por %p437, %p438
      %p440 = scmp.ne.s32.totalorder %s432, %s435
      %p441 = scmp.eq.s32.totalorder %s47, 0
      %p442 = por %p440, %p441
      %p443 = scmp.ne.s32.totalorder %s432, %s435
      %p444 = scmp.eq.s32.totalorder %s52, 1
      %p445 = por %p443, %p444
      %p446 = scmp.ne.s32.totalorder %s435, %s436
      %p447 = scmp.eq.s32.totalorder %s52, 0
      %p448 = por %p446, %p447
      %p449 = scmp.ne.s32.totalorder %s435, %s436
      %p450 = scmp.eq.s32.totalorder %s53, 1
      %p451 = por %p449, %p450
      %p453 = scmp.ne.s32.totalorder %s436, %s452
      %p454 = scmp.eq.s32.totalorder %s53, 0
      %p455 = por %p453, %p454
      %s456 = ssub.s32 %s47, %s54
      %p457 = scmp.eq.s32.totalorder %s456, 0
      %s459 = sadd.s32 %s458, 1
      %s460 = scalar_select %p457, %s458, %s459
      %p463 = pneg %p457
      %p464 = scmp.eq.s32.totalorder %s47, 1
      %p465 = por %p463, %p464
      %p466 = scmp.ne.s32.totalorder %s458, %s461
      %p467 = scmp.eq.s32.totalorder %s47, 0
      %p468 = por %p466, %p467
      %p469 = scmp.ne.s32.totalorder %s458, %s461
      %p470 = scmp.eq.s32.totalorder %s52, 1
      %p471 = por %p469, %p470
      %p472 = scmp.ne.s32.totalorder %s461, %s462
      %p473 = scmp.eq.s32.totalorder %s52, 0
      %p474 = por %p472, %p473
      %p475 = scmp.ne.s32.totalorder %s461, %s462
      %p476 = scmp.eq.s32.totalorder %s53, 1
      %p477 = por %p475, %p476
      %p479 = scmp.ne.s32.totalorder %s462, %s478
      %p480 = scmp.eq.s32.totalorder %s53, 0
      %p481 = por %p479, %p480
      %s483 = sadd.s32 %s482, 1
      %p486 = scmp.eq.s32.totalorder %s47, 1
      %p487 = scmp.ne.s32.totalorder %s482, %s484
      %p488 = scmp.eq.s32.totalorder %s47, 0
      %p489 = por %p487, %p488
      %p490 = scmp.ne.s32.totalorder %s482, %s484
      %p491 = scmp.eq.s32.totalorder %s52, 1
      %p492 = por %p490, %p491
      %p493 = scmp.ne.s32.totalorder %s484, %s485
      %p494 = scmp.eq.s32.totalorder %s52, 0
      %p495 = por %p493, %p494
      %p496 = scmp.ne.s32.totalorder %s484, %s485
      %p497 = scmp.eq.s32.totalorder %s53, 1
      %p498 = por %p496, %p497
      %p500 = scmp.ne.s32.totalorder %s485, %s499
      %p501 = scmp.eq.s32.totalorder %s53, 0
      %p502 = por %p500, %p501
      %p503 = scmp.le.s32.totalorder 1, %s47
      %p504 = scmp.lt.s32.totalorder %s47, 3
      %p505 = pnand %p503, %p504
      %p506 = pneg %p505
      // Predicated region
      $region9: #{dinov2_forward.3} parent=5 // pred_check
        _
      $region10: #{dinov2_forward.3} parent=5 // pred_check_branch
        %508 = sbr.rel (%p505) target = $region12
      $region11: #{dinov2_forward.3} parent=5 // pred_region
        %s509 = ssub.s32 %s47, 1
        // Predicated region
        $region13: #{dinov2_forward.3} parent=11 // pred_check
          %p510 = pneg %p68
        $region14: #{dinov2_forward.3} parent=11 // pred_check_branch
          %512 = sbr.rel (%p510) target = $region16
        $region15: #{dinov2_forward.3} parent=11 // pred_region
          %s514 = ssub.s32 256, 256
          %515 = vsyncadd [#allocation5], %s514
          %s516 = sshll.u32 [#allocation4], 4
          %s517 = int_to_ptr.vmem [resolvable:$true] %s516
          %522 = dma.hbm_to_vmem [thread:$0]  %s0, 256, %s517, [#allocation5], 128, 128, 8
        $region16: #{dinov2_forward.3} parent=11 // pred_fallthru
          _
        // Predicated region
        $region17: #{dinov2_forward.3} parent=11 // pred_check
          %p523 = pneg %p89
        $region18: #{dinov2_forward.3} parent=11 // pred_check_branch
          %525 = sbr.rel (%p523) target = $region20
        $region19: #{dinov2_forward.3} parent=11 // pred_region
          %s527 = ssub.s32 16, 16
          %528 = vsyncadd [#allocation8], %s527
          %s530 = sshll.u32 [#allocation7], 4
          %s531 = int_to_ptr.vmem [resolvable:$true] %s530
          %533 = dma.hbm_to_vmem [thread:$0]  %s1, 16, %s531, [#allocation8]
        $region20: #{dinov2_forward.3} parent=11 // pred_fallthru
          _
        // Predicated region
        $region21: #{dinov2_forward.3} parent=11 // pred_check
          %p534 = pneg %p110
        $region22: #{dinov2_forward.3} parent=11 // pred_check_branch
          %536 = sbr.rel (%p534) target = $region24
        $region23: #{dinov2_forward.3} parent=11 // pred_region
          %s538 = ssub.s32 16, 16
          %539 = vsyncadd [#allocation8], %s538
          %s541 = sshll.u32 [#allocation9], 4
          %s542 = int_to_ptr.vmem [resolvable:$true] %s541
          %544 = dma.hbm_to_vmem [thread:$0]  %s2, 16, %s542, [#allocation8]
        $region24: #{dinov2_forward.3} parent=11 // pred_fallthru
          _
      $region12: #{dinov2_forward.3} parent=5 // pred_fallthru
        _
      %p545 = scmp.lt.s32.totalorder %s47, 2
      // Predicated region
      $region25: #{dinov2_forward.3} parent=5 // pred_check
        %p546 = pneg %p545
      $region26: #{dinov2_forward.3} parent=5 // pred_check_branch
        %548 = sbr.rel (%p546) target = $region28
      $region27: #{dinov2_forward.3} parent=5 // pred_region
        // Predicated region
        $region29: #{dinov2_forward.3} parent=27 // pred_check
          %p549 = pneg %p130
        $region30: #{dinov2_forward.3} parent=27 // pred_check_branch
          %551 = sbr.rel (%p549) target = $region32
        $region31: #{dinov2_forward.3} parent=27 // pred_region
          %s552 = sand.u32 %s47, 1
          %s553 = scalar_lea.sflag [#allocation11], %s552
          %s554 = sand.u32 %s120, 1
          %s555 = scalar_lea.vmem [#allocation10], %s554
          %s557 = ssub.s32 16, 16
          %558 = vsyncadd %s553, %s557
          %s559 = smul.addr %s47, 16
          %s560 = scalar_lea.hbm %s3, %s559
          %s562 = sshll.u32 %s555, 4
          %s563 = int_to_ptr.vmem [resolvable:$true] %s562
          %565 = dma.hbm_to_vmem [thread:$0]  %s560, 16, %s563, %s553
        $region32: #{dinov2_forward.3} parent=27 // pred_fallthru
          _
        // Predicated region
        $region33: #{dinov2_forward.3} parent=27 // pred_check
          %p566 = pneg %p156
        $region34: #{dinov2_forward.3} parent=27 // pred_check_branch
          %568 = sbr.rel (%p566) target = $region36
        $region35: #{dinov2_forward.3} parent=27 // pred_region
          %s569 = sand.u32 %s47, 1
          %s570 = scalar_lea.sflag [#allocation11], %s569
          %s571 = sand.u32 %s146, 1
          %s572 = scalar_lea.vmem [#allocation12], %s571
          %s574 = ssub.s32 16, 16
          %575 = vsyncadd %s570, %s574
          %s576 = smul.addr %s47, 16
          %s577 = scalar_lea.hbm %s4, %s576
          %s579 = sshll.u32 %s572, 4
          %s580 = int_to_ptr.vmem [resolvable:$true] %s579
          %582 = dma.hbm_to_vmem [thread:$0]  %s577, 16, %s580, %s570
        $region36: #{dinov2_forward.3} parent=27 // pred_fallthru
          _
        // Predicated region
        $region37: #{dinov2_forward.3} parent=27 // pred_check
          %p583 = pneg %p182
        $region38: #{dinov2_forward.3} parent=27 // pred_check_branch
          %585 = sbr.rel (%p583) target = $region40
        $region39: #{dinov2_forward.3} parent=27 // pred_region
          %s586 = sand.u32 %s47, 1
          %s587 = scalar_lea.sflag [#allocation14], %s586
          %s588 = sand.u32 %s172, 1
          %s589 = smul.addr %s588, 192
          %s590 = scalar_lea.vmem [#allocation13], %s589
          %s592 = ssub.s32 3072, 3072
          %593 = vsyncadd %s587, %s592
          %s594 = smul.addr %s47, 48
          %s595 = smul.addr %s594, 64
          %s596 = scalar_lea.hbm %s5, %s595
          %s597 = sshll.u32 %s590, 4
          %s598 = int_to_ptr.vmem [resolvable:$true] %s597
          %603 = dma.hbm_to_vmem [thread:$0]  %s596, 3072, %s598, %s587, 192, 192, 12
        $region40: #{dinov2_forward.3} parent=27 // pred_fallthru
          _
        // Predicated region
        $region41: #{dinov2_forward.3} parent=27 // pred_check
          %p604 = pneg %p208
        $region42: #{dinov2_forward.3} parent=27 // pred_check_branch
          %606 = sbr.rel (%p604) target = $region44
        $region43: #{dinov2_forward.3} parent=27 // pred_region
          %s607 = sand.u32 %s47, 1
          %s608 = scalar_lea.sflag [#allocation14], %s607
          %s609 = sand.u32 %s198, 1
          %s610 = smul.addr %s609, 3
          %s611 = scalar_lea.vmem [#allocation15], %s610
          %s613 = ssub.s32 48, 48
          %614 = vsyncadd %s608, %s613
          %s615 = smul.addr %s47, 3
          %s616 = smul.addr %s615, 16
          %s617 = scalar_lea.hbm %s6, %s616
          %s619 = sshll.u32 %s611, 4
          %s620 = int_to_ptr.vmem [resolvable:$true] %s619
          %622 = dma.hbm_to_vmem [thread:$0]  %s617, 48, %s620, %s608
        $region44: #{dinov2_forward.3} parent=27 // pred_fallthru
          _
        // Predicated region
        $region45: #{dinov2_forward.3} parent=27 // pred_check
          %p623 = pneg %p234
        $region46: #{dinov2_forward.3} parent=27 // pred_check_branch
          %625 = sbr.rel (%p623) target = $region48
        $region47: #{dinov2_forward.3} parent=27 // pred_region
          %s626 = sand.u32 %s47, 1
          %s627 = scalar_lea.sflag [#allocation17], %s626
          %s628 = sand.u32 %s224, 1
          %s629 = smul.addr %s628, 64
          %s630 = scalar_lea.vmem [#allocation16], %s629
          %s632 = ssub.s32 1024, 1024
          %633 = vsyncadd %s627, %s632
          %s634 = smul.addr %s47, 16
          %s635 = smul.addr %s634, 64
          %s636 = scalar_lea.hbm %s7, %s635
          %s637 = sshll.u32 %s630, 4
          %s638 = int_to_ptr.vmem [resolvable:$true] %s637
          %643 = dma.hbm_to_vmem [thread:$0]  %s636, 1024, %s638, %s627, 64, 64, 4
        $region48: #{dinov2_forward.3} parent=27 // pred_fallthru
          _
        // Predicated region
        $region49: #{dinov2_forward.3} parent=27 // pred_check
          %p644 = pneg %p260
        $region50: #{dinov2_forward.3} parent=27 // pred_check_branch
          %646 = sbr.rel (%p644) target = $region52
        $region51: #{dinov2_forward.3} parent=27 // pred_region
          %s647 = sand.u32 %s47, 1
          %s648 = scalar_lea.sflag [#allocation17], %s647
          %s649 = sand.u32 %s250, 1
          %s650 = scalar_lea.vmem [#allocation18], %s649
          %s652 = ssub.s32 16, 16
          %653 = vsyncadd %s648, %s652
          %s654 = smul.addr %s47, 16
          %s655 = scalar_lea.hbm %s8, %s654
          %s657 = sshll.u32 %s650, 4
          %s658 = int_to_ptr.vmem [resolvable:$true] %s657
          %660 = dma.hbm_to_vmem [thread:$0]  %s655, 16, %s658, %s648
        $region52: #{dinov2_forward.3} parent=27 // pred_fallthru
          _
        // Predicated region
        $region53: #{dinov2_forward.3} parent=27 // pred_check
          %p661 = pneg %p286
        $region54: #{dinov2_forward.3} parent=27 // pred_check_branch
          %663 = sbr.rel (%p661) target = $region56
        $region55: #{dinov2_forward.3} parent=27 // pred_region
          %s664 = sand.u32 %s47, 1
          %s665 = scalar_lea.sflag [#allocation20], %s664
          %s666 = sand.u32 %s276, 1
          %s667 = scalar_lea.vmem [#allocation19], %s666
          %s669 = ssub.s32 16, 16
          %670 = vsyncadd %s665, %s669
          %s671 = smul.addr %s47, 16
          %s672 = scalar_lea.hbm %s9, %s671
          %s674 = sshll.u32 %s667, 4
          %s675 = int_to_ptr.vmem [resolvable:$true] %s674
          %677 = dma.hbm_to_vmem [thread:$0]  %s672, 16, %s675, %s665
        $region56: #{dinov2_forward.3} parent=27 // pred_fallthru
          _
        // Predicated region
        $region57: #{dinov2_forward.3} parent=27 // pred_check
          %p678 = pneg %p312
        $region58: #{dinov2_forward.3} parent=27 // pred_check_branch
          %680 = sbr.rel (%p678) target = $region60
        $region59: #{dinov2_forward.3} parent=27 // pred_region
          %s681 = sand.u32 %s47, 1
          %s682 = scalar_lea.sflag [#allocation20], %s681
          %s683 = sand.u32 %s302, 1
          %s684 = scalar_lea.vmem [#allocation21], %s683
          %s686 = ssub.s32 16, 16
          %687 = vsyncadd %s682, %s686
          %s688 = smul.addr %s47, 16
          %s689 = scalar_lea.hbm %s10, %s688
          %s691 = sshll.u32 %s684, 4
          %s692 = int_to_ptr.vmem [resolvable:$true] %s691
          %694 = dma.hbm_to_vmem [thread:$0]  %s689, 16, %s692, %s682
        $region60: #{dinov2_forward.3} parent=27 // pred_fallthru
          _
        // Predicated region
        $region61: #{dinov2_forward.3} parent=27 // pred_check
          %p695 = pneg %p338
        $region62: #{dinov2_forward.3} parent=27 // pred_check_branch
          %697 = sbr.rel (%p695) target = $region64
        $region63: #{dinov2_forward.3} parent=27 // pred_region
          %s698 = sand.u32 %s47, 1
          %s699 = scalar_lea.sflag [#allocation23], %s698
          %s700 = sand.u32 %s328, 1
          %s701 = scalar_lea.vmem [#allocation22], %s700
          %s703 = ssub.s32 16, 16
          %704 = vsyncadd %s699, %s703
          %s705 = smul.addr %s47, 16
          %s706 = scalar_lea.hbm %s11, %s705
          %s708 = sshll.u32 %s701, 4
          %s709 = int_to_ptr.vmem [resolvable:$true] %s708
          %711 = dma.hbm_to_vmem [thread:$0]  %s706, 16, %s709, %s699
        $region64: #{dinov2_forward.3} parent=27 // pred_fallthru
          _
        // Predicated region
        $region65: #{dinov2_forward.3} parent=27 // pred_check
          %p712 = pneg %p364
        $region66: #{dinov2_forward.3} parent=27 // pred_check_branch
          %714 = sbr.rel (%p712) target = $region68
        $region67: #{dinov2_forward.3} parent=27 // pred_region
          %s715 = sand.u32 %s47, 1
          %s716 = scalar_lea.sflag [#allocation23], %s715
          %s717 = sand.u32 %s354, 1
          %s718 = smul.addr %s717, 256
          %s719 = scalar_lea.vmem [#allocation24], %s718
          %s721 = ssub.s32 4096, 4096
          %722 = vsyncadd %s716, %s721
          %s723 = smul.addr %s47, 64
          %s724 = smul.addr %s723, 64
          %s725 = scalar_lea.hbm %s12, %s724
          %s726 = sshll.u32 %s719, 4
          %s727 = int_to_ptr.vmem [resolvable:$true] %s726
          %732 = dma.hbm_to_vmem [thread:$0]  %s725, 4096, %s727, %s716, 256, 256, 16
        $region68: #{dinov2_forward.3} parent=27 // pred_fallthru
          _
        // Predicated region
        $region69: #{dinov2_forward.3} parent=27 // pred_check
          %p733 = pneg %p390
        $region70: #{dinov2_forward.3} parent=27 // pred_check_branch
          %735 = sbr.rel (%p733) target = $region72
        $region71: #{dinov2_forward.3} parent=27 // pred_region
          %s736 = sand.u32 %s47, 1
          %s737 = scalar_lea.sflag [#allocation26], %s736
          %s738 = sand.u32 %s380, 1
          %s739 = smul.addr %s738, 4
          %s740 = scalar_lea.vmem [#allocation25], %s739
          %s742 = ssub.s32 64, 64
          %743 = vsyncadd %s737, %s742
          %s744 = smul.addr %s47, 4
          %s745 = smul.addr %s744, 16
          %s746 = scalar_lea.hbm %s13, %s745
          %s748 = sshll.u32 %s740, 4
          %s749 = int_to_ptr.vmem [resolvable:$true] %s748
          %751 = dma.hbm_to_vmem [thread:$0]  %s746, 64, %s749, %s737
        $region72: #{dinov2_forward.3} parent=27 // pred_fallthru
          _
        // Predicated region
        $region73: #{dinov2_forward.3} parent=27 // pred_check
          %p752 = pneg %p416
        $region74: #{dinov2_forward.3} parent=27 // pred_check_branch
          %754 = sbr.rel (%p752) target = $region76
        $region75: #{dinov2_forward.3} parent=27 // pred_region
          %s755 = sand.u32 %s47, 1
          %s756 = scalar_lea.sflag [#allocation26], %s755
          %s757 = sand.u32 %s406, 1
          %s758 = smul.addr %s757, 256
          %s759 = scalar_lea.vmem [#allocation27], %s758
          %s761 = ssub.s32 4096, 4096
          %762 = vsyncadd %s756, %s761
          %s763 = smul.addr %s47, 64
          %s764 = smul.addr %s763, 64
          %s765 = scalar_lea.hbm %s14, %s764
          %s766 = sshll.u32 %s759, 4
          %s767 = int_to_ptr.vmem [resolvable:$true] %s766
          %772 = dma.hbm_to_vmem [thread:$0]  %s765, 4096, %s767, %s756, 64, 64, 4
        $region76: #{dinov2_forward.3} parent=27 // pred_fallthru
          _
        // Predicated region
        $region77: #{dinov2_forward.3} parent=27 // pred_check
          %p773 = pneg %p442
        $region78: #{dinov2_forward.3} parent=27 // pred_check_branch
          %775 = sbr.rel (%p773) target = $region80
        $region79: #{dinov2_forward.3} parent=27 // pred_region
          %s776 = sand.u32 %s47, 1
          %s777 = scalar_lea.sflag [#allocation29], %s776
          %s778 = sand.u32 %s432, 1
          %s779 = scalar_lea.vmem [#allocation28], %s778
          %s781 = ssub.s32 16, 16
          %782 = vsyncadd %s777, %s781
          %s783 = smul.addr %s47, 16
          %s784 = scalar_lea.hbm %s15, %s783
          %s786 = sshll.u32 %s779, 4
          %s787 = int_to_ptr.vmem [resolvable:$true] %s786
          %789 = dma.hbm_to_vmem [thread:$0]  %s784, 16, %s787, %s777
        $region80: #{dinov2_forward.3} parent=27 // pred_fallthru
          _
        // Predicated region
        $region81: #{dinov2_forward.3} parent=27 // pred_check
          %p790 = pneg %p468
        $region82: #{dinov2_forward.3} parent=27 // pred_check_branch
          %792 = sbr.rel (%p790) target = $region84
        $region83: #{dinov2_forward.3} parent=27 // pred_region
          %s793 = sand.u32 %s47, 1
          %s794 = scalar_lea.sflag [#allocation29], %s793
          %s795 = sand.u32 %s458, 1
          %s796 = scalar_lea.vmem [#allocation30], %s795
          %s798 = ssub.s32 16, 16
          %799 = vsyncadd %s794, %s798
          %s800 = smul.addr %s47, 16
          %s801 = scalar_lea.hbm %s16, %s800
          %s803 = sshll.u32 %s796, 4
          %s804 = int_to_ptr.vmem [resolvable:$true] %s803
          %806 = dma.hbm_to_vmem [thread:$0]  %s801, 16, %s804, %s794
        $region84: #{dinov2_forward.3} parent=27 // pred_fallthru
          _
      $region28: #{dinov2_forward.3} parent=5 // pred_fallthru
        _
      %p807 = scmp.le.s32.totalorder 1, %s47
      %p808 = scmp.lt.s32.totalorder %s47, 3
      %p809 = pnand %p807, %p808
      %p810 = pneg %p809
      // Predicated region
      $region85: #{dinov2_forward.3} parent=5 // pred_check
        _
      $region86: #{dinov2_forward.3} parent=5 // pred_check_branch
        %812 = sbr.rel (%p809) target = $region88
      $region87: #{dinov2_forward.3} parent=5 // pred_region
        %s813 = ssub.s32 %s47, 1
        // Predicated region
        $region89: #{dinov2_forward.3} parent=87 // pred_check
          %p814 = pneg %p68
        $region90: #{dinov2_forward.3} parent=87 // pred_check_branch
          %816 = sbr.rel (%p814) target = $region92
        $region91: #{dinov2_forward.3} parent=87 // pred_region
          %817 = dma.done [#allocation5], 256
        $region92: #{dinov2_forward.3} parent=87 // pred_fallthru
          _
        // Predicated region
        $region93: #{dinov2_forward.3} parent=87 // pred_check
          %p818 = pneg %p89
        $region94: #{dinov2_forward.3} parent=87 // pred_check_branch
          %820 = sbr.rel (%p818) target = $region96
        $region95: #{dinov2_forward.3} parent=87 // pred_region
          %821 = dma.done [#allocation8], 16
        $region96: #{dinov2_forward.3} parent=87 // pred_fallthru
          _
        // Predicated region
        $region97: #{dinov2_forward.3} parent=87 // pred_check
          %p822 = pneg %p110
        $region98: #{dinov2_forward.3} parent=87 // pred_check_branch
          %824 = sbr.rel (%p822) target = $region100
        $region99: #{dinov2_forward.3} parent=87 // pred_region
          %825 = dma.done [#allocation8], 16
        $region100: #{dinov2_forward.3} parent=87 // pred_fallthru
          _
        %s826 = sand.u32 %s52, 1
        %s827 = scalar_lea.sflag [#allocation11], %s826
        %s828 = sand.u32 %s123, 1
        %s829 = scalar_lea.vmem [#allocation10], %s828
        // Predicated region
        $region101: #{dinov2_forward.3} parent=87 // pred_check
          %p830 = pneg %p136
        $region102: #{dinov2_forward.3} parent=87 // pred_check_branch
          %832 = sbr.rel (%p830) target = $region104
        $region103: #{dinov2_forward.3} parent=87 // pred_region
          %833 = dma.done %s827, 16
        $region104: #{dinov2_forward.3} parent=87 // pred_fallthru
          _
        %s834 = sand.u32 %s52, 1
        %s835 = scalar_lea.sflag [#allocation11], %s834
        %s836 = sand.u32 %s149, 1
        %s837 = scalar_lea.vmem [#allocation12], %s836
        // Predicated region
        $region105: #{dinov2_forward.3} parent=87 // pred_check
          %p838 = pneg %p162
        $region106: #{dinov2_forward.3} parent=87 // pred_check_branch
          %840 = sbr.rel (%p838) target = $region108
        $region107: #{dinov2_forward.3} parent=87 // pred_region
          %841 = dma.done %s835, 16
        $region108: #{dinov2_forward.3} parent=87 // pred_fallthru
          _
        %s842 = sand.u32 %s52, 1
        %s843 = scalar_lea.sflag [#allocation14], %s842
        %s844 = sand.u32 %s175, 1
        %s845 = smul.addr %s844, 192
        %s846 = scalar_lea.vmem [#allocation13], %s845
        // Predicated region
        $region109: #{dinov2_forward.3} parent=87 // pred_check
          %p847 = pneg %p188
        $region110: #{dinov2_forward.3} parent=87 // pred_check_branch
          %849 = sbr.rel (%p847) target = $region112
        $region111: #{dinov2_forward.3} parent=87 // pred_region
          %850 = dma.done %s843, 3072
        $region112: #{dinov2_forward.3} parent=87 // pred_fallthru
          _
        %s851 = sand.u32 %s52, 1
        %s852 = scalar_lea.sflag [#allocation14], %s851
        %s853 = sand.u32 %s201, 1
        %s854 = smul.addr %s853, 3
        %s855 = scalar_lea.vmem [#allocation15], %s854
        // Predicated region
        $region113: #{dinov2_forward.3} parent=87 // pred_check
          %p856 = pneg %p214
        $region114: #{dinov2_forward.3} parent=87 // pred_check_branch
          %858 = sbr.rel (%p856) target = $region116
        $region115: #{dinov2_forward.3} parent=87 // pred_region
          %859 = dma.done %s852, 48
        $region116: #{dinov2_forward.3} parent=87 // pred_fallthru
          _
        %s860 = sand.u32 %s52, 1
        %s861 = scalar_lea.sflag [#allocation17], %s860
        %s862 = sand.u32 %s227, 1
        %s863 = smul.addr %s862, 64
        %s864 = scalar_lea.vmem [#allocation16], %s863
        // Predicated region
        $region117: #{dinov2_forward.3} parent=87 // pred_check
          %p865 = pneg %p240
        $region118: #{dinov2_forward.3} parent=87 // pred_check_branch
          %867 = sbr.rel (%p865) target = $region120
        $region119: #{dinov2_forward.3} parent=87 // pred_region
          %868 = dma.done %s861, 1024
        $region120: #{dinov2_forward.3} parent=87 // pred_fallthru
          _
        %s869 = sand.u32 %s52, 1
        %s870 = scalar_lea.sflag [#allocation17], %s869
        %s871 = sand.u32 %s253, 1
        %s872 = scalar_lea.vmem [#allocation18], %s871
        // Predicated region
        $region121: #{dinov2_forward.3} parent=87 // pred_check
          %p873 = pneg %p266
        $region122: #{dinov2_forward.3} parent=87 // pred_check_branch
          %875 = sbr.rel (%p873) target = $region124
        $region123: #{dinov2_forward.3} parent=87 // pred_region
          %876 = dma.done %s870, 16
        $region124: #{dinov2_forward.3} parent=87 // pred_fallthru
          _
        %s877 = sand.u32 %s52, 1
        %s878 = scalar_lea.sflag [#allocation20], %s877
        %s879 = sand.u32 %s279, 1
        %s880 = scalar_lea.vmem [#allocation19], %s879
        // Predicated region
        $region125: #{dinov2_forward.3} parent=87 // pred_check
          %p881 = pneg %p292
        $region126: #{dinov2_forward.3} parent=87 // pred_check_branch
          %883 = sbr.rel (%p881) target = $region128
        $region127: #{dinov2_forward.3} parent=87 // pred_region
          %884 = dma.done %s878, 16
        $region128: #{dinov2_forward.3} parent=87 // pred_fallthru
          _
        %s885 = sand.u32 %s52, 1
        %s886 = scalar_lea.sflag [#allocation20], %s885
        %s887 = sand.u32 %s305, 1
        %s888 = scalar_lea.vmem [#allocation21], %s887
        // Predicated region
        $region129: #{dinov2_forward.3} parent=87 // pred_check
          %p889 = pneg %p318
        $region130: #{dinov2_forward.3} parent=87 // pred_check_branch
          %891 = sbr.rel (%p889) target = $region132
        $region131: #{dinov2_forward.3} parent=87 // pred_region
          %892 = dma.done %s886, 16
        $region132: #{dinov2_forward.3} parent=87 // pred_fallthru
          _
        %s893 = sand.u32 %s52, 1
        %s894 = scalar_lea.sflag [#allocation23], %s893
        %s895 = sand.u32 %s331, 1
        %s896 = scalar_lea.vmem [#allocation22], %s895
        // Predicated region
        $region133: #{dinov2_forward.3} parent=87 // pred_check
          %p897 = pneg %p344
        $region134: #{dinov2_forward.3} parent=87 // pred_check_branch
          %899 = sbr.rel (%p897) target = $region136
        $region135: #{dinov2_forward.3} parent=87 // pred_region
          %900 = dma.done %s894, 16
        $region136: #{dinov2_forward.3} parent=87 // pred_fallthru
          _
        %s901 = sand.u32 %s52, 1
        %s902 = scalar_lea.sflag [#allocation23], %s901
        %s903 = sand.u32 %s357, 1
        %s904 = smul.addr %s903, 256
        %s905 = scalar_lea.vmem [#allocation24], %s904
        // Predicated region
        $region137: #{dinov2_forward.3} parent=87 // pred_check
          %p906 = pneg %p370
        $region138: #{dinov2_forward.3} parent=87 // pred_check_branch
          %908 = sbr.rel (%p906) target = $region140
        $region139: #{dinov2_forward.3} parent=87 // pred_region
          %909 = dma.done %s902, 4096
        $region140: #{dinov2_forward.3} parent=87 // pred_fallthru
          _
        %s910 = sand.u32 %s52, 1
        %s911 = scalar_lea.sflag [#allocation26], %s910
        %s912 = sand.u32 %s383, 1
        %s913 = smul.addr %s912, 4
        %s914 = scalar_lea.vmem [#allocation25], %s913
        // Predicated region
        $region141: #{dinov2_forward.3} parent=87 // pred_check
          %p915 = pneg %p396
        $region142: #{dinov2_forward.3} parent=87 // pred_check_branch
          %917 = sbr.rel (%p915) target = $region144
        $region143: #{dinov2_forward.3} parent=87 // pred_region
          %918 = dma.done %s911, 64
        $region144: #{dinov2_forward.3} parent=87 // pred_fallthru
          _
        %s919 = sand.u32 %s52, 1
        %s920 = scalar_lea.sflag [#allocation26], %s919
        %s921 = sand.u32 %s409, 1
        %s922 = smul.addr %s921, 256
        %s923 = scalar_lea.vmem [#allocation27], %s922
        // Predicated region
        $region145: #{dinov2_forward.3} parent=87 // pred_check
          %p924 = pneg %p422
        $region146: #{dinov2_forward.3} parent=87 // pred_check_branch
          %926 = sbr.rel (%p924) target = $region148
        $region147: #{dinov2_forward.3} parent=87 // pred_region
          %927 = dma.done %s920, 4096
        $region148: #{dinov2_forward.3} parent=87 // pred_fallthru
          _
        %s928 = sand.u32 %s52, 1
        %s929 = scalar_lea.sflag [#allocation29], %s928
        %s930 = sand.u32 %s435, 1
        %s931 = scalar_lea.vmem [#allocation28], %s930
        // Predicated region
        $region149: #{dinov2_forward.3} parent=87 // pred_check
          %p932 = pneg %p448
        $region150: #{dinov2_forward.3} parent=87 // pred_check_branch
          %934 = sbr.rel (%p932) target = $region152
        $region151: #{dinov2_forward.3} parent=87 // pred_region
          %935 = dma.done %s929, 16
        $region152: #{dinov2_forward.3} parent=87 // pred_fallthru
          _
        %s936 = sand.u32 %s52, 1
        %s937 = scalar_lea.sflag [#allocation29], %s936
        %s938 = sand.u32 %s461, 1
        %s939 = scalar_lea.vmem [#allocation30], %s938
        // Predicated region
        $region153: #{dinov2_forward.3} parent=87 // pred_check
          %p940 = pneg %p474
        $region154: #{dinov2_forward.3} parent=87 // pred_check_branch
          %942 = sbr.rel (%p940) target = $region156
        $region155: #{dinov2_forward.3} parent=87 // pred_region
          %943 = dma.done %s937, 16
        $region156: #{dinov2_forward.3} parent=87 // pred_fallthru
          _
        %p944 = pneg %p68
        %p945 = pneg %p65
        %p946 = pneg %p89
        %p947 = pneg %p86
        %p948 = pneg %p110
        %p949 = pneg %p107
        %s950 = sand.u32 %s52, 1
        %s951 = scalar_lea.sflag [#allocation11], %s950
        %s952 = sand.u32 %s123, 1
        %s953 = scalar_lea.vmem [#allocation10], %s952
        %p954 = pneg %p136
        %p955 = pneg %p133
        %s956 = sand.u32 %s52, 1
        %s957 = scalar_lea.sflag [#allocation11], %s956
        %s958 = sand.u32 %s149, 1
        %s959 = scalar_lea.vmem [#allocation12], %s958
        %p960 = pneg %p162
        %p961 = pneg %p159
        %s962 = sand.u32 %s52, 1
        %s963 = scalar_lea.sflag [#allocation14], %s962
        %s964 = sand.u32 %s175, 1
        %s965 = smul.addr %s964, 192
        %s966 = scalar_lea.vmem [#allocation13], %s965
        %p967 = pneg %p188
        %p968 = pneg %p185
        %s969 = sand.u32 %s52, 1
        %s970 = scalar_lea.sflag [#allocation14], %s969
        %s971 = sand.u32 %s201, 1
        %s972 = smul.addr %s971, 3
        %s973 = scalar_lea.vmem [#allocation15], %s972
        %p974 = pneg %p214
        %p975 = pneg %p211
        %s976 = sand.u32 %s52, 1
        %s977 = scalar_lea.sflag [#allocation17], %s976
        %s978 = sand.u32 %s227, 1
        %s979 = smul.addr %s978, 64
        %s980 = scalar_lea.vmem [#allocation16], %s979
        %p981 = pneg %p240
        %p982 = pneg %p237
        %s983 = sand.u32 %s52, 1
        %s984 = scalar_lea.sflag [#allocation17], %s983
        %s985 = sand.u32 %s253, 1
        %s986 = scalar_lea.vmem [#allocation18], %s985
        %p987 = pneg %p266
        %p988 = pneg %p263
        %s989 = sand.u32 %s52, 1
        %s990 = scalar_lea.sflag [#allocation20], %s989
        %s991 = sand.u32 %s279, 1
        %s992 = scalar_lea.vmem [#allocation19], %s991
        %p993 = pneg %p292
        %p994 = pneg %p289
        %s995 = sand.u32 %s52, 1
        %s996 = scalar_lea.sflag [#allocation20], %s995
        %s997 = sand.u32 %s305, 1
        %s998 = scalar_lea.vmem [#allocation21], %s997
        %p999 = pneg %p318
        %p1000 = pneg %p315
        %s1001 = sand.u32 %s52, 1
        %s1002 = scalar_lea.sflag [#allocation23], %s1001
        %s1003 = sand.u32 %s331, 1
        %s1004 = scalar_lea.vmem [#allocation22], %s1003
        %p1005 = pneg %p344
        %p1006 = pneg %p341
        %s1007 = sand.u32 %s52, 1
        %s1008 = scalar_lea.sflag [#allocation23], %s1007
        %s1009 = sand.u32 %s357, 1
        %s1010 = smul.addr %s1009, 256
        %s1011 = scalar_lea.vmem [#allocation24], %s1010
        %p1012 = pneg %p370
        %p1013 = pneg %p367
        %s1014 = sand.u32 %s52, 1
        %s1015 = scalar_lea.sflag [#allocation26], %s1014
        %s1016 = sand.u32 %s383, 1
        %s1017 = smul.addr %s1016, 4
        %s1018 = scalar_lea.vmem [#allocation25], %s1017
        %p1019 = pneg %p396
        %p1020 = pneg %p393
        %s1021 = sand.u32 %s52, 1
        %s1022 = scalar_lea.sflag [#allocation26], %s1021
        %s1023 = sand.u32 %s409, 1
        %s1024 = smul.addr %s1023, 256
        %s1025 = scalar_lea.vmem [#allocation27], %s1024
        %p1026 = pneg %p422
        %p1027 = pneg %p419
        %s1028 = sand.u32 %s52, 1
        %s1029 = scalar_lea.sflag [#allocation29], %s1028
        %s1030 = sand.u32 %s435, 1
        %s1031 = scalar_lea.vmem [#allocation28], %s1030
        %p1032 = pneg %p448
        %p1033 = pneg %p445
        %s1034 = sand.u32 %s52, 1
        %s1035 = scalar_lea.sflag [#allocation29], %s1034
        %s1036 = sand.u32 %s461, 1
        %s1037 = scalar_lea.vmem [#allocation30], %s1036
        %p1038 = pneg %p474
        %p1039 = pneg %p471
        %p1040 = pneg %p495
        %p1041 = pneg %p492
        %p1043 = scmp.eq.s32.totalorder %s52, 0
        // Predicated region
        $region157: #{dinov2_forward.3} parent=87 // pred_check
          %p1044 = pneg %p1043
        $region158: #{dinov2_forward.3} parent=87 // pred_check_branch
          %1046 = sbr.rel (%p1044) target = $region160
        $region159: #{dinov2_forward.3} parent=87 // pred_region
          %v1047 = vld [vmem:[#allocation4] sm:$0xff]
          %v1048 = vld [vmem:[#allocation4 + $0x8] sm:$0xff]
          %1049 = vst [vmem:[#allocation2] sm:$0xff] %v1047
          %1050 = vst [vmem:[#allocation2 + $0x8] sm:$0xff] %v1048
        $region160: #{dinov2_forward.3} parent=87 // pred_fallthru
          _
        %v1051 = vld [vmem:[#allocation2] sm:$0xff]
        %v1052 = vld [vmem:[#allocation2 + $0x8] sm:$0xff]
        %v1053 = vld [vmem:[%s829] sm:$0x1]
        %v1054 = vld [vmem:[%s837] sm:$0x1]
        %1055 = vadd.xlane.f32.xlu0 %v1051
        %v1056 = vpop.xlane.xlu0 %1055
        %1057 = vadd.xlane.f32.xlu0 %v1052
        %v1058 = vpop.xlane.xlu0 %1057
        %v1059 = vrcp.pop 128.0
        %v1060 = vmul.f32 %v1056, %v1059
        %v1061 = vmul.f32 %v1058, %v1059
        %v1062 = vsub.f32 %v1051, %v1060
        %v1063 = vsub.f32 %v1052, %v1061
        %v1064 = vmul.f32 %v1062, %v1062
        %v1065 = vmul.f32 %v1063, %v1063
        %1066 = vadd.xlane.f32.xlu0 %v1064
        %v1067 = vpop.xlane.xlu0 %1066
        %1068 = vadd.xlane.f32.xlu0 %v1065
        %v1069 = vpop.xlane.xlu0 %1068
        %v1070 = vmul.f32 %v1067, %v1059
        %v1071 = vmul.f32 %v1069, %v1059
        %v1072 = vadd.f32 %v1070, 1e-06
        %v1073 = vadd.f32 %v1071, 1e-06
        %v1074 = vrsqrt.pop %v1072
        %v1075 = vrsqrt.pop %v1073
        %v1076 = vmul.f32 %v1062, %v1074
        %v1077 = vmul.f32 %v1063, %v1075
        %v1079 = vlaneseq
        %v1080 = vshrl.u32 %v1079, 7
        %v1081 = vsub.s32 0, %v1080
        %v1082 = vrot.slane %v1053, %v1081
        %v1084 = vmul.f32 %v1076, %v1082
        %v1085 = vmul.f32 %v1077, %v1082
        %v1087 = vlaneseq
        %v1088 = vshrl.u32 %v1087, 7
        %v1089 = vsub.s32 0, %v1088
        %v1090 = vrot.slane %v1054, %v1089
        %v1092 = vadd.f32 %v1084, %v1090
        %v1093 = vadd.f32 %v1085, %v1090
        %v1094 = vpack.c.bf16 %v1093, %v1092
        %v1095 = vld [vmem:[%s846] sm:$0xff]
        %v1096 = vld [vmem:[%s846 + $0x8] sm:$0xf]
        %v1097 = vld [vmem:[%s846 + $0xc] sm:$0xff]
        %v1098 = vld [vmem:[%s846 + $0x14] sm:$0xf]
        %v1099 = vld [vmem:[%s846 + $0x18] sm:$0xff]
        %v1100 = vld [vmem:[%s846 + $0x20] sm:$0xf]
        %v1101 = vld [vmem:[%s846 + $0x24] sm:$0xff]
        %v1102 = vld [vmem:[%s846 + $0x2c] sm:$0xf]
        %v1103 = vld [vmem:[%s846 + $0x30] sm:$0xff]
        %v1104 = vld [vmem:[%s846 + $0x38] sm:$0xf]
        %v1105 = vld [vmem:[%s846 + $0x3c] sm:$0xff]
        %v1106 = vld [vmem:[%s846 + $0x44] sm:$0xf]
        %v1107 = vld [vmem:[%s846 + $0x48] sm:$0xff]
        %v1108 = vld [vmem:[%s846 + $0x50] sm:$0xf]
        %v1109 = vld [vmem:[%s846 + $0x54] sm:$0xff]
        %v1110 = vld [vmem:[%s846 + $0x5c] sm:$0xf]
        %v1111 = vld [vmem:[%s846 + $0x60] sm:$0xff]
        %v1112 = vld [vmem:[%s846 + $0x68] sm:$0xf]
        %v1113 = vld [vmem:[%s846 + $0x6c] sm:$0xff]
        %v1114 = vld [vmem:[%s846 + $0x74] sm:$0xf]
        %v1115 = vld [vmem:[%s846 + $0x78] sm:$0xff]
        %v1116 = vld [vmem:[%s846 + $0x80] sm:$0xf]
        %v1117 = vld [vmem:[%s846 + $0x84] sm:$0xff]
        %v1118 = vld [vmem:[%s846 + $0x8c] sm:$0xf]
        %v1119 = vld [vmem:[%s846 + $0x90] sm:$0xff]
        %v1120 = vld [vmem:[%s846 + $0x98] sm:$0xf]
        %v1121 = vld [vmem:[%s846 + $0x9c] sm:$0xff]
        %v1122 = vld [vmem:[%s846 + $0xa4] sm:$0xf]
        %v1123 = vld [vmem:[%s846 + $0xa8] sm:$0xff]
        %v1124 = vld [vmem:[%s846 + $0xb0] sm:$0xf]
        %v1125 = vld [vmem:[%s846 + $0xb4] sm:$0xff]
        %v1126 = vld [vmem:[%s846 + $0xbc] sm:$0xf]
        %v1127 = vld [vmem:[%s855] sm:$0x7]
        %v1129 = vlaneseq
        %v1130 = vshrl.u32 %v1129, 7
        %v1131 = vsub.s32 0, %v1130
        %v1132 = vrot.slane %v1127, %v1131
        %v1133 = vlaneseq
        %v1134 = vshrl.u32 %v1133, 7
        %v1135 = vsub.s32 1, %v1134
        %v1136 = vrot.slane %v1127, %v1135
        %v1137 = vlaneseq
        %v1138 = vshrl.u32 %v1137, 7
        %v1139 = vsub.s32 2, %v1138
        %v1140 = vrot.slane %v1127, %v1139
        %v1176 = vunpack.c.l.b16 %v1095
        %v1177 = vunpack.c.h.b16 %v1095
        %v1178 = vunpack.c.l.b16 %v1096
        %v1179 = vunpack.c.l.b16 %v1097
        %v1180 = vunpack.c.h.b16 %v1097
        %v1181 = vunpack.c.l.b16 %v1098
        %v1182 = vunpack.c.l.b16 %v1099
        %v1183 = vunpack.c.h.b16 %v1099
        %v1184 = vunpack.c.l.b16 %v1100
        %v1185 = vunpack.c.l.b16 %v1101
        %v1186 = vunpack.c.h.b16 %v1101
        %v1187 = vunpack.c.l.b16 %v1102
        %v1188 = vunpack.c.l.b16 %v1103
        %v1189 = vunpack.c.h.b16 %v1103
        %v1190 = vunpack.c.l.b16 %v1104
        %v1191 = vunpack.c.l.b16 %v1105
        %v1192 = vunpack.c.h.b16 %v1105
        %v1193 = vunpack.c.l.b16 %v1106
        %v1194 = vunpack.c.l.b16 %v1107
        %v1195 = vunpack.c.h.b16 %v1107
        %v1196 = vunpack.c.l.b16 %v1108
        %v1197 = vunpack.c.l.b16 %v1109
        %v1198 = vunpack.c.h.b16 %v1109
        %v1199 = vunpack.c.l.b16 %v1110
        %v1200 = vunpack.c.l.b16 %v1111
        %v1201 = vunpack.c.h.b16 %v1111
        %v1202 = vunpack.c.l.b16 %v1112
        %v1203 = vunpack.c.l.b16 %v1113
        %v1204 = vunpack.c.h.b16 %v1113
        %v1205 = vunpack.c.l.b16 %v1114
        %v1206 = vunpack.c.l.b16 %v1115
        %v1207 = vunpack.c.h.b16 %v1115
        %v1208 = vunpack.c.l.b16 %v1116
        %v1209 = vunpack.c.l.b16 %v1117
        %v1210 = vunpack.c.h.b16 %v1117
        %v1211 = vunpack.c.l.b16 %v1118
        %v1212 = vunpack.c.l.b16 %v1119
        %v1213 = vunpack.c.h.b16 %v1119
        %v1214 = vunpack.c.l.b16 %v1120
        %v1215 = vunpack.c.l.b16 %v1121
        %v1216 = vunpack.c.h.b16 %v1121
        %v1217 = vunpack.c.l.b16 %v1122
        %v1218 = vunpack.c.l.b16 %v1123
        %v1219 = vunpack.c.h.b16 %v1123
        %v1220 = vunpack.c.l.b16 %v1124
        %v1221 = vunpack.c.l.b16 %v1125
        %v1222 = vunpack.c.h.b16 %v1125
        %v1223 = vunpack.c.l.b16 %v1126
        %v1224 = vpack.c.b16 %v1179, %v1176
        %v1225 = vpack.c.b16 %v1180, %v1177
        %v1226 = vpack.c.b16 %v1181, %v1178
        %v1227 = vpack.c.b16 %v1185, %v1182
        %v1228 = vpack.c.b16 %v1186, %v1183
        %v1229 = vpack.c.b16 %v1187, %v1184
        %v1230 = vpack.c.b16 %v1191, %v1188
        %v1231 = vpack.c.b16 %v1192, %v1189
        %v1232 = vpack.c.b16 %v1193, %v1190
        %v1233 = vpack.c.b16 %v1197, %v1194
        %v1234 = vpack.c.b16 %v1198, %v1195
        %v1235 = vpack.c.b16 %v1199, %v1196
        %v1236 = vpack.c.b16 %v1203, %v1200
        %v1237 = vpack.c.b16 %v1204, %v1201
        %v1238 = vpack.c.b16 %v1205, %v1202
        %v1239 = vpack.c.b16 %v1209, %v1206
        %v1240 = vpack.c.b16 %v1210, %v1207
        %v1241 = vpack.c.b16 %v1211, %v1208
        %v1242 = vpack.c.b16 %v1215, %v1212
        %v1243 = vpack.c.b16 %v1216, %v1213
        %v1244 = vpack.c.b16 %v1217, %v1214
        %v1245 = vpack.c.b16 %v1221, %v1218
        %v1246 = vpack.c.b16 %v1222, %v1219
        %v1247 = vpack.c.b16 %v1223, %v1220
        %1272 = vmatprep.subr.bf16.mxu0 %v1225
        %1273 = vmatpush1.bf16.msra.mxu0 %v1224
        %1274 = vmatprep.subr.bf16.mxu0 %v1228
        %1275 = vmatpush1.bf16.msra.mxu0 %v1227
        %1276 = vmatprep.subr.bf16.mxu0 %v1231
        %1277 = vmatpush1.bf16.msra.mxu0 %v1230
        %1278 = vmatprep.subr.bf16.mxu0 %v1234
        %1279 = vmatpush1.bf16.msra.mxu0 %v1233
        %1280 = vmatprep.subr.bf16.mxu0 %v1237
        %1281 = vmatpush1.bf16.msra.mxu0 %v1236
        %1282 = vmatprep.subr.bf16.mxu0 %v1240
        %1283 = vmatpush1.bf16.msra.mxu0 %v1239
        %1284 = vmatprep.subr.bf16.mxu0 %v1243
        %1285 = vmatpush1.bf16.msra.mxu0 %v1242
        %1286 = vmatprep.subr.bf16.mxu0 %v1246
        %1287 = vmatpush1.bf16.msra.mxu0 %v1245
        %1288 = vmatprep.subr.bf16.mxu0 0
        %1289 = vmatpush1.bf16.msra.mxu0 0
        %1290 = vmatprep.subr.bf16.mxu0 0
        %1291 = vmatpush1.bf16.msra.mxu0 0
        %1292 = vmatprep.subr.bf16.mxu0 0
        %1293 = vmatpush1.bf16.msra.mxu0 0
        %1294 = vmatprep.subr.bf16.mxu0 0
        %1295 = vmatpush1.bf16.msra.mxu0 0
        %1296 = vmatprep.subr.bf16.mxu0 0
        %1297 = vmatpush1.bf16.msra.mxu0 0
        %1298 = vmatprep.subr.bf16.mxu0 0
        %1299 = vmatpush1.bf16.msra.mxu0 0
        %1300 = vmatprep.subr.bf16.mxu0 0
        %1301 = vmatpush1.bf16.msra.mxu0 0
        %1302 = vmatprep.subr.bf16.mxu0 0
        %1303 = vmatpush1.bf16.msra.mxu0 0
        %1304 = vmatprep.mubr.bf16.mxu0 0
        %1305 = vmatmul.mubr.bf16.gmra.mrb[0].mxu0 %v1094
        %v1306 = vpop.f32.mrb[0].mxu0
        %v1307 = vadd.f32 %v1132, %v1306
        %v1308 = vpop.f32.mrb[0].mxu0
        %v1309 = vadd.f32 %v1136, %v1308
        %v1310 = vpop.f32.mrb[0].mxu0
        %v1311 = vadd.f32 %v1132, %v1310
        %v1312 = vpop.f32.mrb[0].mxu0
        %v1313 = vadd.f32 %v1136, %v1312
        %1314 = vdwg.mxu0
        %1315 = vmatprep.subr.bf16.mxu0 0
        %1316 = vmatpush1.bf16.msra.mxu0 %v1226
        %1317 = vmatprep.subr.bf16.mxu0 0
        %1318 = vmatpush1.bf16.msra.mxu0 %v1229
        %1319 = vmatprep.subr.bf16.mxu0 0
        %1320 = vmatpush1.bf16.msra.mxu0 %v1232
        %1321 = vmatprep.subr.bf16.mxu0 0
        %1322 = vmatpush1.bf16.msra.mxu0 %v1235
        %1323 = vmatprep.subr.bf16.mxu0 0
        %1324 = vmatpush1.bf16.msra.mxu0 %v1238
        %1325 = vmatprep.subr.bf16.mxu0 0
        %1326 = vmatpush1.bf16.msra.mxu0 %v1241
        %1327 = vmatprep.subr.bf16.mxu0 0
        %1328 = vmatpush1.bf16.msra.mxu0 %v1244
        %1329 = vmatprep.subr.bf16.mxu0 0
        %1330 = vmatpush1.bf16.msra.mxu0 %v1247
        %1331 = vmatprep.subr.bf16.mxu0 0
        %1332 = vmatpush1.bf16.msra.mxu0 0
        %1333 = vmatprep.subr.bf16.mxu0 0
        %1334 = vmatpush1.bf16.msra.mxu0 0
        %1335 = vmatprep.subr.bf16.mxu0 0
        %1336 = vmatpush1.bf16.msra.mxu0 0
        %1337 = vmatprep.subr.bf16.mxu0 0
        %1338 = vmatpush1.bf16.msra.mxu0 0
        %1339 = vmatprep.subr.bf16.mxu0 0
        %1340 = vmatpush1.bf16.msra.mxu0 0
        %1341 = vmatprep.subr.bf16.mxu0 0
        %1342 = vmatpush1.bf16.msra.mxu0 0
        %1343 = vmatprep.subr.bf16.mxu0 0
        %1344 = vmatpush1.bf16.msra.mxu0 0
        %1345 = vmatprep.subr.bf16.mxu0 0
        %1346 = vmatpush1.bf16.msra.mxu0 0
        %1347 = vmatprep.mubr.bf16.mxu0 0
        %1348 = vmatmul.mubr.bf16.gmra.mrb[0].mxu0 %v1094
        %v1349 = vpop.f32.mrb[0].mxu0
        %v1350 = vadd.f32 %v1140, %v1349
        %v1351 = vpop.f32.mrb[0].mxu0
        %v1352 = vpop.f32.mrb[0].mxu0
        %v1353 = vadd.f32 %v1140, %v1352
        %v1354 = vpop.f32.mrb[0].mxu0
        %1355 = vdwg.mxu0
        %v1356 = vmul.f32 %v1307, 0.125
        %v1357 = vmul.f32 %v1311, 0.125
        %v1358 = vlaneseq
        %v1359 = vand.u32 %v1358, 127
        %vm1360 = vcmp.lt.s32.totalorder %v1359, 5
        %v1361 = vsel %vm1360, 0.0, -1e+30
        %v1362 = vpack.c.bf16 %v1356, %v1356
        %v1363 = vpack.c.bf16 %v1309, %v1309
        %vm1364 = vcmask 523264
        %v1366 = vsel %vm1364, %v1362, 0
        %v1369 = vsel %vm1364, %v1363, 0
        %1371 = vmatprep.subr.bf16.mxu0 0
        %1372 = vmatpush1.bf16.xpose.msra.mxu0 %v1369
        %1373 = vmatprep.subr.bf16.mxu0 0
        %1374 = vmatpush1.bf16.xpose.msra.mxu0 0
        %1375 = vmatprep.subr.bf16.mxu0 0
        %1376 = vmatpush1.bf16.xpose.msra.mxu0 0
        %1377 = vmatprep.subr.bf16.mxu0 0
        %1378 = vmatpush1.bf16.xpose.msra.mxu0 0
        %1379 = vmatprep.subr.bf16.mxu0 0
        %1380 = vmatpush1.bf16.xpose.msra.mxu0 0
        %1381 = vmatprep.subr.bf16.mxu0 0
        %1382 = vmatpush1.bf16.xpose.msra.mxu0 0
        %1383 = vmatprep.subr.bf16.mxu0 0
        %1384 = vmatpush1.bf16.xpose.msra.mxu0 0
        %1385 = vmatprep.subr.bf16.mxu0 0
        %1386 = vmatpush1.bf16.xpose.msra.mxu0 0
        %1387 = vmatprep.subr.bf16.mxu0 0
        %1388 = vmatpush1.bf16.xpose.msra.mxu0 0
        %1389 = vmatprep.subr.bf16.mxu0 0
        %1390 = vmatpush1.bf16.xpose.msra.mxu0 0
        %1391 = vmatprep.subr.bf16.mxu0 0
        %1392 = vmatpush1.bf16.xpose.msra.mxu0 0
        %1393 = vmatprep.subr.bf16.mxu0 0
        %1394 = vmatpush1.bf16.xpose.msra.mxu0 0
        %1395 = vmatprep.subr.bf16.mxu0 0
        %1396 = vmatpush1.bf16.xpose.msra.mxu0 0
        %1397 = vmatprep.subr.bf16.mxu0 0
        %1398 = vmatpush1.bf16.xpose.msra.mxu0 0
        %1399 = vmatprep.subr.bf16.mxu0 0
        %1400 = vmatpush1.bf16.xpose.msra.mxu0 0
        %1401 = vmatprep.subr.bf16.mxu0 0
        %1402 = vmatpush1.bf16.xpose.msra.mxu0 0
        %1403 = vmatprep.mubr.bf16.mxu0 0
        %1404 = vmatmul.mubr.bf16.gmra.mrb[0].mxu0 %v1366
        %v1405 = vpop.f32.mrb[0].mxu0
        %v1406 = vadd.f32 %v1361, %v1405
        %v1407 = vpop.f32.mrb[0].mxu0
        %v1408 = vpop.f32.mrb[0].mxu0
        %v1409 = vpop.f32.mrb[0].mxu0
        %1410 = vdwg.mxu0
        %vm1411 = vcmask 64512
        %v1412 = vsel %vm1411, %v1406, -inf
        %1413 = vmax.xlane.f32.xlu0 %v1412
        %v1414 = vpop.xlane.xlu0 %1413
        %v1415 = vsub.f32 %v1406, %v1414
        %v1416 = vmul.f32 %v1415, 1.442695
        %v1417 = vpow.pop %v1416
        %v1418 = vsel %vm1411, %v1417, 0.0
        %1419 = vadd.xlane.f32.xlu0 %v1418
        %v1420 = vpop.xlane.xlu0 %1419
        %v1421 = vrcp.pop %v1420
        %v1422 = vmul.f32 %v1417, %v1421
        %v1423 = vpack.c.bf16 %v1422, %v1422
        %v1424 = vpack.c.bf16 %v1350, %v1350
        %v1426 = vsel %vm1411, %v1423, 0
        %vm1428 = vcmask 1043456
        %v1430 = vsel %vm1428, %v1424, 0
        %1432 = vmatprep.subr.bf16.mxu0 0
        %1433 = vmatpush1.bf16.msra.mxu0 %v1430
        %1434 = vmatprep.subr.bf16.mxu0 0
        %1435 = vmatpush1.bf16.msra.mxu0 0
        %1436 = vmatprep.subr.bf16.mxu0 0
        %1437 = vmatpush1.bf16.msra.mxu0 0
        %1438 = vmatprep.subr.bf16.mxu0 0
        %1439 = vmatpush1.bf16.msra.mxu0 0
        %1440 = vmatprep.subr.bf16.mxu0 0
        %1441 = vmatpush1.bf16.msra.mxu0 0
        %1442 = vmatprep.subr.bf16.mxu0 0
        %1443 = vmatpush1.bf16.msra.mxu0 0
        %1444 = vmatprep.subr.bf16.mxu0 0
        %1445 = vmatpush1.bf16.msra.mxu0 0
        %1446 = vmatprep.subr.bf16.mxu0 0
        %1447 = vmatpush1.bf16.msra.mxu0 0
        %1448 = vmatprep.subr.bf16.mxu0 0
        %1449 = vmatpush1.bf16.msra.mxu0 0
        %1450 = vmatprep.subr.bf16.mxu0 0
        %1451 = vmatpush1.bf16.msra.mxu0 0
        %1452 = vmatprep.subr.bf16.mxu0 0
        %1453 = vmatpush1.bf16.msra.mxu0 0
        %1454 = vmatprep.subr.bf16.mxu0 0
        %1455 = vmatpush1.bf16.msra.mxu0 0
        %1456 = vmatprep.subr.bf16.mxu0 0
        %1457 = vmatpush1.bf16.msra.mxu0 0
        %1458 = vmatprep.subr.bf16.mxu0 0
        %1459 = vmatpush1.bf16.msra.mxu0 0
        %1460 = vmatprep.subr.bf16.mxu0 0
        %1461 = vmatpush1.bf16.msra.mxu0 0
        %1462 = vmatprep.subr.bf16.mxu0 0
        %1463 = vmatpush1.bf16.msra.mxu0 0
        %1464 = vmatprep.mubr.bf16.mxu0 0
        %1465 = vmatmul.mubr.bf16.gmra.mrb[0].mxu0 %v1426
        %v1466 = vpop.f32.mrb[0].mxu0
        %v1467 = vadd.f32 0.0, %v1466
        %v1468 = vpop.f32.mrb[0].mxu0
        %v1469 = vpop.f32.mrb[0].mxu0
        %v1470 = vpop.f32.mrb[0].mxu0
        %1471 = vdwg.mxu0
        %1472 = vst.msk [vmem:[#allocation3] sm:$0xff] %vm1364, %v1467
        %1474 = vrot.lane.b32.xlu0 %v1362, 64
        %v1475 = vpop.permute.xlu0 %1474
        %1477 = vrot.lane.b32.xlu0 %v1363, 64
        %v1478 = vpop.permute.xlu0 %1477
        %v1480 = vsel %vm1364, %v1475, 0
        %v1483 = vsel %vm1364, %v1478, 0
        %1485 = vmatprep.subr.bf16.mxu0 0
        %1486 = vmatpush1.bf16.xpose.msra.mxu0 %v1483
        %1487 = vmatprep.subr.bf16.mxu0 0
        %1488 = vmatpush1.bf16.xpose.msra.mxu0 0
        %1489 = vmatprep.subr.bf16.mxu0 0
        %1490 = vmatpush1.bf16.xpose.msra.mxu0 0
        %1491 = vmatprep.subr.bf16.mxu0 0
        %1492 = vmatpush1.bf16.xpose.msra.mxu0 0
        %1493 = vmatprep.subr.bf16.mxu0 0
        %1494 = vmatpush1.bf16.xpose.msra.mxu0 0
        %1495 = vmatprep.subr.bf16.mxu0 0
        %1496 = vmatpush1.bf16.xpose.msra.mxu0 0
        %1497 = vmatprep.subr.bf16.mxu0 0
        %1498 = vmatpush1.bf16.xpose.msra.mxu0 0
        %1499 = vmatprep.subr.bf16.mxu0 0
        %1500 = vmatpush1.bf16.xpose.msra.mxu0 0
        %1501 = vmatprep.subr.bf16.mxu0 0
        %1502 = vmatpush1.bf16.xpose.msra.mxu0 0
        %1503 = vmatprep.subr.bf16.mxu0 0
        %1504 = vmatpush1.bf16.xpose.msra.mxu0 0
        %1505 = vmatprep.subr.bf16.mxu0 0
        %1506 = vmatpush1.bf16.xpose.msra.mxu0 0
        %1507 = vmatprep.subr.bf16.mxu0 0
        %1508 = vmatpush1.bf16.xpose.msra.mxu0 0
        %1509 = vmatprep.subr.bf16.mxu0 0
        %1510 = vmatpush1.bf16.xpose.msra.mxu0 0
        %1511 = vmatprep.subr.bf16.mxu0 0
        %1512 = vmatpush1.bf16.xpose.msra.mxu0 0
        %1513 = vmatprep.subr.bf16.mxu0 0
        %1514 = vmatpush1.bf16.xpose.msra.mxu0 0
        %1515 = vmatprep.subr.bf16.mxu0 0
        %1516 = vmatpush1.bf16.xpose.msra.mxu0 0
        %1517 = vmatprep.mubr.bf16.mxu0 0
        %1518 = vmatmul.mubr.bf16.gmra.mrb[0].mxu0 %v1480
        %v1519 = vpop.f32.mrb[0].mxu0
        %v1520 = vadd.f32 %v1361, %v1519
        %v1521 = vpop.f32.mrb[0].mxu0
        %v1522 = vpop.f32.mrb[0].mxu0
        %v1523 = vpop.f32.mrb[0].mxu0
        %1524 = vdwg.mxu0
        %v1525 = vsel %vm1411, %v1520, -inf
        %1526 = vmax.xlane.f32.xlu0 %v1525
        %v1527 = vpop.xlane.xlu0 %1526
        %v1528 = vsub.f32 %v1520, %v1527
        %v1529 = vmul.f32 %v1528, 1.442695
        %v1530 = vpow.pop %v1529
        %v1531 = vsel %vm1411, %v1530, 0.0
        %1532 = vadd.xlane.f32.xlu0 %v1531
        %v1533 = vpop.xlane.xlu0 %1532
        %v1534 = vrcp.pop %v1533
        %v1535 = vmul.f32 %v1530, %v1534
        %v1536 = vpack.c.bf16 %v1535, %v1535
        %1538 = vrot.lane.b32.xlu0 %v1424, 64
        %v1539 = vpop.permute.xlu0 %1538
        %v1541 = vsel %vm1411, %v1536, 0
        %v1544 = vsel %vm1428, %v1539, 0
        %1546 = vmatprep.subr.bf16.mxu0 0
        %1547 = vmatpush1.bf16.msra.mxu0 %v1544
        %1548 = vmatprep.subr.bf16.mxu0 0
        %1549 = vmatpush1.bf16.msra.mxu0 0
        %1550 = vmatprep.subr.bf16.mxu0 0
        %1551 = vmatpush1.bf16.msra.mxu0 0
        %1552 = vmatprep.subr.bf16.mxu0 0
        %1553 = vmatpush1.bf16.msra.mxu0 0
        %1554 = vmatprep.subr.bf16.mxu0 0
        %1555 = vmatpush1.bf16.msra.mxu0 0
        %1556 = vmatprep.subr.bf16.mxu0 0
        %1557 = vmatpush1.bf16.msra.mxu0 0
        %1558 = vmatprep.subr.bf16.mxu0 0
        %1559 = vmatpush1.bf16.msra.mxu0 0
        %1560 = vmatprep.subr.bf16.mxu0 0
        %1561 = vmatpush1.bf16.msra.mxu0 0
        %1562 = vmatprep.subr.bf16.mxu0 0
        %1563 = vmatpush1.bf16.msra.mxu0 0
        %1564 = vmatprep.subr.bf16.mxu0 0
        %1565 = vmatpush1.bf16.msra.mxu0 0
        %1566 = vmatprep.subr.bf16.mxu0 0
        %1567 = vmatpush1.bf16.msra.mxu0 0
        %1568 = vmatprep.subr.bf16.mxu0 0
        %1569 = vmatpush1.bf16.msra.mxu0 0
        %1570 = vmatprep.subr.bf16.mxu0 0
        %1571 = vmatpush1.bf16.msra.mxu0 0
        %1572 = vmatprep.subr.bf16.mxu0 0
        %1573 = vmatpush1.bf16.msra.mxu0 0
        %1574 = vmatprep.subr.bf16.mxu0 0
        %1575 = vmatpush1.bf16.msra.mxu0 0
        %1576 = vmatprep.subr.bf16.mxu0 0
        %1577 = vmatpush1.bf16.msra.mxu0 0
        %1578 = vmatprep.mubr.bf16.mxu0 0
        %1579 = vmatmul.mubr.bf16.gmra.mrb[0].mxu0 %v1541
        %v1580 = vpop.f32.mrb[0].mxu0
        %v1581 = vadd.f32 0.0, %v1580
        %v1582 = vpop.f32.mrb[0].mxu0
        %v1583 = vpop.f32.mrb[0].mxu0
        %v1584 = vpop.f32.mrb[0].mxu0
        %1585 = vdwg.mxu0
        %1587 = vrot.lane.b32.xlu0 %v1581, 64
        %v1588 = vpop.permute.xlu0 %1587
        %vm1590 = vcmask 1048064
        %1591 = vst.msk [vmem:[#allocation3] sm:$0xff] %vm1590, %v1588
        %v1592 = vpack.c.bf16 %v1357, %v1357
        %v1593 = vpack.c.bf16 %v1313, %v1313
        %v1595 = vsel %vm1364, %v1592, 0
        %v1598 = vsel %vm1364, %v1593, 0
        %1600 = vmatprep.subr.bf16.mxu0 0
        %1601 = vmatpush1.bf16.xpose.msra.mxu0 %v1598
        %1602 = vmatprep.subr.bf16.mxu0 0
        %1603 = vmatpush1.bf16.xpose.msra.mxu0 0
        %1604 = vmatprep.subr.bf16.mxu0 0
        %1605 = vmatpush1.bf16.xpose.msra.mxu0 0
        %1606 = vmatprep.subr.bf16.mxu0 0
        %1607 = vmatpush1.bf16.xpose.msra.mxu0 0
        %1608 = vmatprep.subr.bf16.mxu0 0
        %1609 = vmatpush1.bf16.xpose.msra.mxu0 0
        %1610 = vmatprep.subr.bf16.mxu0 0
        %1611 = vmatpush1.bf16.xpose.msra.mxu0 0
        %1612 = vmatprep.subr.bf16.mxu0 0
        %1613 = vmatpush1.bf16.xpose.msra.mxu0 0
        %1614 = vmatprep.subr.bf16.mxu0 0
        %1615 = vmatpush1.bf16.xpose.msra.mxu0 0
        %1616 = vmatprep.subr.bf16.mxu0 0
        %1617 = vmatpush1.bf16.xpose.msra.mxu0 0
        %1618 = vmatprep.subr.bf16.mxu0 0
        %1619 = vmatpush1.bf16.xpose.msra.mxu0 0
        %1620 = vmatprep.subr.bf16.mxu0 0
        %1621 = vmatpush1.bf16.xpose.msra.mxu0 0
        %1622 = vmatprep.subr.bf16.mxu0 0
        %1623 = vmatpush1.bf16.xpose.msra.mxu0 0
        %1624 = vmatprep.subr.bf16.mxu0 0
        %1625 = vmatpush1.bf16.xpose.msra.mxu0 0
        %1626 = vmatprep.subr.bf16.mxu0 0
        %1627 = vmatpush1.bf16.xpose.msra.mxu0 0
        %1628 = vmatprep.subr.bf16.mxu0 0
        %1629 = vmatpush1.bf16.xpose.msra.mxu0 0
        %1630 = vmatprep.subr.bf16.mxu0 0
        %1631 = vmatpush1.bf16.xpose.msra.mxu0 0
        %1632 = vmatprep.mubr.bf16.mxu0 0
        %1633 = vmatmul.mubr.bf16.gmra.mrb[0].mxu0 %v1595
        %v1634 = vpop.f32.mrb[0].mxu0
        %v1635 = vadd.f32 %v1361, %v1634
        %v1636 = vpop.f32.mrb[0].mxu0
        %v1637 = vpop.f32.mrb[0].mxu0
        %v1638 = vpop.f32.mrb[0].mxu0
        %1639 = vdwg.mxu0
        %v1640 = vsel %vm1411, %v1635, -inf
        %1641 = vmax.xlane.f32.xlu0 %v1640
        %v1642 = vpop.xlane.xlu0 %1641
        %v1643 = vsub.f32 %v1635, %v1642
        %v1644 = vmul.f32 %v1643, 1.442695
        %v1645 = vpow.pop %v1644
        %v1646 = vsel %vm1411, %v1645, 0.0
        %1647 = vadd.xlane.f32.xlu0 %v1646
        %v1648 = vpop.xlane.xlu0 %1647
        %v1649 = vrcp.pop %v1648
        %v1650 = vmul.f32 %v1645, %v1649
        %v1651 = vpack.c.bf16 %v1650, %v1650
        %v1652 = vpack.c.bf16 %v1353, %v1353
        %v1654 = vsel %vm1411, %v1651, 0
        %v1657 = vsel %vm1428, %v1652, 0
        %1659 = vmatprep.subr.bf16.mxu0 0
        %1660 = vmatpush1.bf16.msra.mxu0 %v1657
        %1661 = vmatprep.subr.bf16.mxu0 0
        %1662 = vmatpush1.bf16.msra.mxu0 0
        %1663 = vmatprep.subr.bf16.mxu0 0
        %1664 = vmatpush1.bf16.msra.mxu0 0
        %1665 = vmatprep.subr.bf16.mxu0 0
        %1666 = vmatpush1.bf16.msra.mxu0 0
        %1667 = vmatprep.subr.bf16.mxu0 0
        %1668 = vmatpush1.bf16.msra.mxu0 0
        %1669 = vmatprep.subr.bf16.mxu0 0
        %1670 = vmatpush1.bf16.msra.mxu0 0
        %1671 = vmatprep.subr.bf16.mxu0 0
        %1672 = vmatpush1.bf16.msra.mxu0 0
        %1673 = vmatprep.subr.bf16.mxu0 0
        %1674 = vmatpush1.bf16.msra.mxu0 0
        %1675 = vmatprep.subr.bf16.mxu0 0
        %1676 = vmatpush1.bf16.msra.mxu0 0
        %1677 = vmatprep.subr.bf16.mxu0 0
        %1678 = vmatpush1.bf16.msra.mxu0 0
        %1679 = vmatprep.subr.bf16.mxu0 0
        %1680 = vmatpush1.bf16.msra.mxu0 0
        %1681 = vmatprep.subr.bf16.mxu0 0
        %1682 = vmatpush1.bf16.msra.mxu0 0
        %1683 = vmatprep.subr.bf16.mxu0 0
        %1684 = vmatpush1.bf16.msra.mxu0 0
        %1685 = vmatprep.subr.bf16.mxu0 0
        %1686 = vmatpush1.bf16.msra.mxu0 0
        %1687 = vmatprep.subr.bf16.mxu0 0
        %1688 = vmatpush1.bf16.msra.mxu0 0
        %1689 = vmatprep.subr.bf16.mxu0 0
        %1690 = vmatpush1.bf16.msra.mxu0 0
        %1691 = vmatprep.mubr.bf16.mxu0 0
        %1692 = vmatmul.mubr.bf16.gmra.mrb[0].mxu0 %v1654
        %v1693 = vpop.f32.mrb[0].mxu0
        %v1694 = vadd.f32 0.0, %v1693
        %v1695 = vpop.f32.mrb[0].mxu0
        %v1696 = vpop.f32.mrb[0].mxu0
        %v1697 = vpop.f32.mrb[0].mxu0
        %1698 = vdwg.mxu0
        %1699 = vst.msk [vmem:[#allocation3 + $0x8] sm:$0xff] %vm1364, %v1694
        %1701 = vrot.lane.b32.xlu0 %v1592, 64
        %v1702 = vpop.permute.xlu0 %1701
        %1704 = vrot.lane.b32.xlu0 %v1593, 64
        %v1705 = vpop.permute.xlu0 %1704
        %v1707 = vsel %vm1364, %v1702, 0
        %v1710 = vsel %vm1364, %v1705, 0
        %1712 = vmatprep.subr.bf16.mxu0 0
        %1713 = vmatpush1.bf16.xpose.msra.mxu0 %v1710
        %1714 = vmatprep.subr.bf16.mxu0 0
        %1715 = vmatpush1.bf16.xpose.msra.mxu0 0
        %1716 = vmatprep.subr.bf16.mxu0 0
        %1717 = vmatpush1.bf16.xpose.msra.mxu0 0
        %1718 = vmatprep.subr.bf16.mxu0 0
        %1719 = vmatpush1.bf16.xpose.msra.mxu0 0
        %1720 = vmatprep.subr.bf16.mxu0 0
        %1721 = vmatpush1.bf16.xpose.msra.mxu0 0
        %1722 = vmatprep.subr.bf16.mxu0 0
        %1723 = vmatpush1.bf16.xpose.msra.mxu0 0
        %1724 = vmatprep.subr.bf16.mxu0 0
        %1725 = vmatpush1.bf16.xpose.msra.mxu0 0
        %1726 = vmatprep.subr.bf16.mxu0 0
        %1727 = vmatpush1.bf16.xpose.msra.mxu0 0
        %1728 = vmatprep.subr.bf16.mxu0 0
        %1729 = vmatpush1.bf16.xpose.msra.mxu0 0
        %1730 = vmatprep.subr.bf16.mxu0 0
        %1731 = vmatpush1.bf16.xpose.msra.mxu0 0
        %1732 = vmatprep.subr.bf16.mxu0 0
        %1733 = vmatpush1.bf16.xpose.msra.mxu0 0
        %1734 = vmatprep.subr.bf16.mxu0 0
        %1735 = vmatpush1.bf16.xpose.msra.mxu0 0
        %1736 = vmatprep.subr.bf16.mxu0 0
        %1737 = vmatpush1.bf16.xpose.msra.mxu0 0
        %1738 = vmatprep.subr.bf16.mxu0 0
        %1739 = vmatpush1.bf16.xpose.msra.mxu0 0
        %1740 = vmatprep.subr.bf16.mxu0 0
        %1741 = vmatpush1.bf16.xpose.msra.mxu0 0
        %1742 = vmatprep.subr.bf16.mxu0 0
        %1743 = vmatpush1.bf16.xpose.msra.mxu0 0
        %1744 = vmatprep.mubr.bf16.mxu0 0
        %1745 = vmatmul.mubr.bf16.gmra.mrb[0].mxu0 %v1707
        %v1746 = vpop.f32.mrb[0].mxu0
        %v1747 = vadd.f32 %v1361, %v1746
        %v1748 = vpop.f32.mrb[0].mxu0
        %v1749 = vpop.f32.mrb[0].mxu0
        %v1750 = vpop.f32.mrb[0].mxu0
        %1751 = vdwg.mxu0
        %v1752 = vsel %vm1411, %v1747, -inf
        %1753 = vmax.xlane.f32.xlu0 %v1752
        %v1754 = vpop.xlane.xlu0 %1753
        %v1755 = vsub.f32 %v1747, %v1754
        %v1756 = vmul.f32 %v1755, 1.442695
        %v1757 = vpow.pop %v1756
        %v1758 = vsel %vm1411, %v1757, 0.0
        %1759 = vadd.xlane.f32.xlu0 %v1758
        %v1760 = vpop.xlane.xlu0 %1759
        %v1761 = vrcp.pop %v1760
        %v1762 = vmul.f32 %v1757, %v1761
        %v1763 = vpack.c.bf16 %v1762, %v1762
        %1765 = vrot.lane.b32.xlu0 %v1652, 64
        %v1766 = vpop.permute.xlu0 %1765
        %v1768 = vsel %vm1411, %v1763, 0
        %v1771 = vsel %vm1428, %v1766, 0
        %1773 = vmatprep.subr.bf16.mxu0 0
        %1774 = vmatpush1.bf16.msra.mxu0 %v1771
        %1775 = vmatprep.subr.bf16.mxu0 0
        %1776 = vmatpush1.bf16.msra.mxu0 0
        %1777 = vmatprep.subr.bf16.mxu0 0
        %1778 = vmatpush1.bf16.msra.mxu0 0
        %1779 = vmatprep.subr.bf16.mxu0 0
        %1780 = vmatpush1.bf16.msra.mxu0 0
        %1781 = vmatprep.subr.bf16.mxu0 0
        %1782 = vmatpush1.bf16.msra.mxu0 0
        %1783 = vmatprep.subr.bf16.mxu0 0
        %1784 = vmatpush1.bf16.msra.mxu0 0
        %1785 = vmatprep.subr.bf16.mxu0 0
        %1786 = vmatpush1.bf16.msra.mxu0 0
        %1787 = vmatprep.subr.bf16.mxu0 0
        %1788 = vmatpush1.bf16.msra.mxu0 0
        %1789 = vmatprep.subr.bf16.mxu0 0
        %1790 = vmatpush1.bf16.msra.mxu0 0
        %1791 = vmatprep.subr.bf16.mxu0 0
        %1792 = vmatpush1.bf16.msra.mxu0 0
        %1793 = vmatprep.subr.bf16.mxu0 0
        %1794 = vmatpush1.bf16.msra.mxu0 0
        %1795 = vmatprep.subr.bf16.mxu0 0
        %1796 = vmatpush1.bf16.msra.mxu0 0
        %1797 = vmatprep.subr.bf16.mxu0 0
        %1798 = vmatpush1.bf16.msra.mxu0 0
        %1799 = vmatprep.subr.bf16.mxu0 0
        %1800 = vmatpush1.bf16.msra.mxu0 0
        %1801 = vmatprep.subr.bf16.mxu0 0
        %1802 = vmatpush1.bf16.msra.mxu0 0
        %1803 = vmatprep.subr.bf16.mxu0 0
        %1804 = vmatpush1.bf16.msra.mxu0 0
        %1805 = vmatprep.mubr.bf16.mxu0 0
        %1806 = vmatmul.mubr.bf16.gmra.mrb[0].mxu0 %v1768
        %v1807 = vpop.f32.mrb[0].mxu0
        %v1808 = vadd.f32 0.0, %v1807
        %v1809 = vpop.f32.mrb[0].mxu0
        %v1810 = vpop.f32.mrb[0].mxu0
        %v1811 = vpop.f32.mrb[0].mxu0
        %1812 = vdwg.mxu0
        %1814 = vrot.lane.b32.xlu0 %v1808, 64
        %v1815 = vpop.permute.xlu0 %1814
        %1817 = vst.msk [vmem:[#allocation3 + $0x8] sm:$0xff] %vm1590, %v1815
        %v1818 = vld [vmem:[#allocation3] sm:$0xff]
        %v1819 = vld [vmem:[#allocation3 + $0x8] sm:$0xff]
        %v1820 = vpack.c.bf16 %v1819, %v1818
        %v1821 = vld [vmem:[%s864] sm:$0xf]
        %v1822 = vld [vmem:[%s864 + $0x4] sm:$0xf]
        %v1823 = vld [vmem:[%s864 + $0x8] sm:$0xf]
        %v1824 = vld [vmem:[%s864 + $0xc] sm:$0xf]
        %v1825 = vld [vmem:[%s864 + $0x10] sm:$0xf]
        %v1826 = vld [vmem:[%s864 + $0x14] sm:$0xf]
        %v1827 = vld [vmem:[%s864 + $0x18] sm:$0xf]
        %v1828 = vld [vmem:[%s864 + $0x1c] sm:$0xf]
        %v1829 = vld [vmem:[%s864 + $0x20] sm:$0xf]
        %v1830 = vld [vmem:[%s864 + $0x24] sm:$0xf]
        %v1831 = vld [vmem:[%s864 + $0x28] sm:$0xf]
        %v1832 = vld [vmem:[%s864 + $0x2c] sm:$0xf]
        %v1833 = vld [vmem:[%s864 + $0x30] sm:$0xf]
        %v1834 = vld [vmem:[%s864 + $0x34] sm:$0xf]
        %v1835 = vld [vmem:[%s864 + $0x38] sm:$0xf]
        %v1836 = vld [vmem:[%s864 + $0x3c] sm:$0xf]
        %v1837 = vld [vmem:[%s872] sm:$0x1]
        %v1839 = vlaneseq
        %v1840 = vshrl.u32 %v1839, 7
        %v1841 = vsub.s32 0, %v1840
        %v1842 = vrot.slane %v1837, %v1841
        %v1860 = vunpack.c.l.b16 %v1821
        %v1861 = vunpack.c.l.b16 %v1822
        %v1862 = vunpack.c.l.b16 %v1823
        %v1863 = vunpack.c.l.b16 %v1824
        %v1864 = vunpack.c.l.b16 %v1825
        %v1865 = vunpack.c.l.b16 %v1826
        %v1866 = vunpack.c.l.b16 %v1827
        %v1867 = vunpack.c.l.b16 %v1828
        %v1868 = vunpack.c.l.b16 %v1829
        %v1869 = vunpack.c.l.b16 %v1830
        %v1870 = vunpack.c.l.b16 %v1831
        %v1871 = vunpack.c.l.b16 %v1832
        %v1872 = vunpack.c.l.b16 %v1833
        %v1873 = vunpack.c.l.b16 %v1834
        %v1874 = vunpack.c.l.b16 %v1835
        %v1875 = vunpack.c.l.b16 %v1836
        %v1876 = vpack.c.b16 %v1861, %v1860
        %v1877 = vpack.c.b16 %v1863, %v1862
        %v1878 = vpack.c.b16 %v1865, %v1864
        %v1879 = vpack.c.b16 %v1867, %v1866
        %v1880 = vpack.c.b16 %v1869, %v1868
        %v1881 = vpack.c.b16 %v1871, %v1870
        %v1882 = vpack.c.b16 %v1873, %v1872
        %v1883 = vpack.c.b16 %v1875, %v1874
        %1892 = vmatprep.subr.bf16.mxu0 0
        %1893 = vmatpush1.bf16.msra.mxu0 %v1876
        %1894 = vmatprep.subr.bf16.mxu0 0
        %1895 = vmatpush1.bf16.msra.mxu0 %v1877
        %1896 = vmatprep.subr.bf16.mxu0 0
        %1897 = vmatpush1.bf16.msra.mxu0 %v1878
        %1898 = vmatprep.subr.bf16.mxu0 0
        %1899 = vmatpush1.bf16.msra.mxu0 %v1879
        %1900 = vmatprep.subr.bf16.mxu0 0
        %1901 = vmatpush1.bf16.msra.mxu0 %v1880
        %1902 = vmatprep.subr.bf16.mxu0 0
        %1903 = vmatpush1.bf16.msra.mxu0 %v1881
        %1904 = vmatprep.subr.bf16.mxu0 0
        %1905 = vmatpush1.bf16.msra.mxu0 %v1882
        %1906 = vmatprep.subr.bf16.mxu0 0
        %1907 = vmatpush1.bf16.msra.mxu0 %v1883
        %1908 = vmatprep.subr.bf16.mxu0 0
        %1909 = vmatpush1.bf16.msra.mxu0 0
        %1910 = vmatprep.subr.bf16.mxu0 0
        %1911 = vmatpush1.bf16.msra.mxu0 0
        %1912 = vmatprep.subr.bf16.mxu0 0
        %1913 = vmatpush1.bf16.msra.mxu0 0
        %1914 = vmatprep.subr.bf16.mxu0 0
        %1915 = vmatpush1.bf16.msra.mxu0 0
        %1916 = vmatprep.subr.bf16.mxu0 0
        %1917 = vmatpush1.bf16.msra.mxu0 0
        %1918 = vmatprep.subr.bf16.mxu0 0
        %1919 = vmatpush1.bf16.msra.mxu0 0
        %1920 = vmatprep.subr.bf16.mxu0 0
        %1921 = vmatpush1.bf16.msra.mxu0 0
        %1922 = vmatprep.subr.bf16.mxu0 0
        %1923 = vmatpush1.bf16.msra.mxu0 0
        %1924 = vmatprep.mubr.bf16.mxu0 0
        %1925 = vmatmul.mubr.bf16.gmra.mrb[0].mxu0 %v1820
        %v1926 = vpop.f32.mrb[0].mxu0
        %v1927 = vadd.f32 %v1842, %v1926
        %v1928 = vpop.f32.mrb[0].mxu0
        %v1929 = vpop.f32.mrb[0].mxu0
        %v1930 = vadd.f32 %v1842, %v1929
        %v1931 = vpop.f32.mrb[0].mxu0
        %1932 = vdwg.mxu0
        %v1933 = vld [vmem:[%s880] sm:$0x1]
        %v1935 = vlaneseq
        %v1936 = vshrl.u32 %v1935, 7
        %v1937 = vsub.s32 0, %v1936
        %v1938 = vrot.slane %v1933, %v1937
        %v1940 = vmul.f32 %v1938, %v1927
        %v1941 = vmul.f32 %v1938, %v1930
        %v1942 = vadd.f32 %v1051, %v1940
        %v1943 = vadd.f32 %v1052, %v1941
        %v1944 = vld [vmem:[%s888] sm:$0x1]
        %v1945 = vld [vmem:[%s896] sm:$0x1]
        %1946 = vadd.xlane.f32.xlu0 %v1942
        %v1947 = vpop.xlane.xlu0 %1946
        %1948 = vadd.xlane.f32.xlu0 %v1943
        %v1949 = vpop.xlane.xlu0 %1948
        %v1950 = vmul.f32 %v1947, %v1059
        %v1951 = vmul.f32 %v1949, %v1059
        %v1952 = vsub.f32 %v1942, %v1950
        %v1953 = vsub.f32 %v1943, %v1951
        %v1954 = vmul.f32 %v1952, %v1952
        %v1955 = vmul.f32 %v1953, %v1953
        %1956 = vadd.xlane.f32.xlu0 %v1954
        %v1957 = vpop.xlane.xlu0 %1956
        %1958 = vadd.xlane.f32.xlu0 %v1955
        %v1959 = vpop.xlane.xlu0 %1958
        %v1960 = vmul.f32 %v1957, %v1059
        %v1961 = vmul.f32 %v1959, %v1059
        %v1962 = vadd.f32 %v1960, 1e-06
        %v1963 = vadd.f32 %v1961, 1e-06
        %v1964 = vrsqrt.pop %v1962
        %v1965 = vrsqrt.pop %v1963
        %v1966 = vmul.f32 %v1952, %v1964
        %v1967 = vmul.f32 %v1953, %v1965
        %v1969 = vlaneseq
        %v1970 = vshrl.u32 %v1969, 7
        %v1971 = vsub.s32 0, %v1970
        %v1972 = vrot.slane %v1944, %v1971
        %v1974 = vmul.f32 %v1966, %v1972
        %v1975 = vmul.f32 %v1967, %v1972
        %v1977 = vlaneseq
        %v1978 = vshrl.u32 %v1977, 7
        %v1979 = vsub.s32 0, %v1978
        %v1980 = vrot.slane %v1945, %v1979
        %v1982 = vadd.f32 %v1974, %v1980
        %v1983 = vadd.f32 %v1975, %v1980
        %v1984 = vpack.c.bf16 %v1983, %v1982
        %v1985 = vld [vmem:[%s905] sm:$0xff]
        %v1986 = vld [vmem:[%s905 + $0x8] sm:$0xff]
        %v1987 = vld [vmem:[%s905 + $0x10] sm:$0xff]
        %v1988 = vld [vmem:[%s905 + $0x18] sm:$0xff]
        %v1989 = vld [vmem:[%s905 + $0x20] sm:$0xff]
        %v1990 = vld [vmem:[%s905 + $0x28] sm:$0xff]
        %v1991 = vld [vmem:[%s905 + $0x30] sm:$0xff]
        %v1992 = vld [vmem:[%s905 + $0x38] sm:$0xff]
        %v1993 = vld [vmem:[%s905 + $0x40] sm:$0xff]
        %v1994 = vld [vmem:[%s905 + $0x48] sm:$0xff]
        %v1995 = vld [vmem:[%s905 + $0x50] sm:$0xff]
        %v1996 = vld [vmem:[%s905 + $0x58] sm:$0xff]
        %v1997 = vld [vmem:[%s905 + $0x60] sm:$0xff]
        %v1998 = vld [vmem:[%s905 + $0x68] sm:$0xff]
        %v1999 = vld [vmem:[%s905 + $0x70] sm:$0xff]
        %v2000 = vld [vmem:[%s905 + $0x78] sm:$0xff]
        %v2001 = vld [vmem:[%s905 + $0x80] sm:$0xff]
        %v2002 = vld [vmem:[%s905 + $0x88] sm:$0xff]
        %v2003 = vld [vmem:[%s905 + $0x90] sm:$0xff]
        %v2004 = vld [vmem:[%s905 + $0x98] sm:$0xff]
        %v2005 = vld [vmem:[%s905 + $0xa0] sm:$0xff]
        %v2006 = vld [vmem:[%s905 + $0xa8] sm:$0xff]
        %v2007 = vld [vmem:[%s905 + $0xb0] sm:$0xff]
        %v2008 = vld [vmem:[%s905 + $0xb8] sm:$0xff]
        %v2009 = vld [vmem:[%s905 + $0xc0] sm:$0xff]
        %v2010 = vld [vmem:[%s905 + $0xc8] sm:$0xff]
        %v2011 = vld [vmem:[%s905 + $0xd0] sm:$0xff]
        %v2012 = vld [vmem:[%s905 + $0xd8] sm:$0xff]
        %v2013 = vld [vmem:[%s905 + $0xe0] sm:$0xff]
        %v2014 = vld [vmem:[%s905 + $0xe8] sm:$0xff]
        %v2015 = vld [vmem:[%s905 + $0xf0] sm:$0xff]
        %v2016 = vld [vmem:[%s905 + $0xf8] sm:$0xff]
        %v2017 = vld [vmem:[%s914] sm:$0xf]
        %v2019 = vlaneseq
        %v2020 = vshrl.u32 %v2019, 7
        %v2021 = vsub.s32 0, %v2020
        %v2022 = vrot.slane %v2017, %v2021
        %v2023 = vlaneseq
        %v2024 = vshrl.u32 %v2023, 7
        %v2025 = vsub.s32 1, %v2024
        %v2026 = vrot.slane %v2017, %v2025
        %v2027 = vlaneseq
        %v2028 = vshrl.u32 %v2027, 7
        %v2029 = vsub.s32 2, %v2028
        %v2030 = vrot.slane %v2017, %v2029
        %v2031 = vlaneseq
        %v2032 = vshrl.u32 %v2031, 7
        %v2033 = vsub.s32 3, %v2032
        %v2034 = vrot.slane %v2017, %v2033
        %v2071 = vunpack.c.l.b16 %v1985
        %v2072 = vunpack.c.h.b16 %v1985
        %v2073 = vunpack.c.l.b16 %v1986
        %v2074 = vunpack.c.h.b16 %v1986
        %v2075 = vunpack.c.l.b16 %v1987
        %v2076 = vunpack.c.h.b16 %v1987
        %v2077 = vunpack.c.l.b16 %v1988
        %v2078 = vunpack.c.h.b16 %v1988
        %v2079 = vunpack.c.l.b16 %v1989
        %v2080 = vunpack.c.h.b16 %v1989
        %v2081 = vunpack.c.l.b16 %v1990
        %v2082 = vunpack.c.h.b16 %v1990
        %v2083 = vunpack.c.l.b16 %v1991
        %v2084 = vunpack.c.h.b16 %v1991
        %v2085 = vunpack.c.l.b16 %v1992
        %v2086 = vunpack.c.h.b16 %v1992
        %v2087 = vunpack.c.l.b16 %v1993
        %v2088 = vunpack.c.h.b16 %v1993
        %v2089 = vunpack.c.l.b16 %v1994
        %v2090 = vunpack.c.h.b16 %v1994
        %v2091 = vunpack.c.l.b16 %v1995
        %v2092 = vunpack.c.h.b16 %v1995
        %v2093 = vunpack.c.l.b16 %v1996
        %v2094 = vunpack.c.h.b16 %v1996
        %v2095 = vunpack.c.l.b16 %v1997
        %v2096 = vunpack.c.h.b16 %v1997
        %v2097 = vunpack.c.l.b16 %v1998
        %v2098 = vunpack.c.h.b16 %v1998
        %v2099 = vunpack.c.l.b16 %v1999
        %v2100 = vunpack.c.h.b16 %v1999
        %v2101 = vunpack.c.l.b16 %v2000
        %v2102 = vunpack.c.h.b16 %v2000
        %v2103 = vunpack.c.l.b16 %v2001
        %v2104 = vunpack.c.h.b16 %v2001
        %v2105 = vunpack.c.l.b16 %v2002
        %v2106 = vunpack.c.h.b16 %v2002
        %v2107 = vunpack.c.l.b16 %v2003
        %v2108 = vunpack.c.h.b16 %v2003
        %v2109 = vunpack.c.l.b16 %v2004
        %v2110 = vunpack.c.h.b16 %v2004
        %v2111 = vunpack.c.l.b16 %v2005
        %v2112 = vunpack.c.h.b16 %v2005
        %v2113 = vunpack.c.l.b16 %v2006
        %v2114 = vunpack.c.h.b16 %v2006
        %v2115 = vunpack.c.l.b16 %v2007
        %v2116 = vunpack.c.h.b16 %v2007
        %v2117 = vunpack.c.l.b16 %v2008
        %v2118 = vunpack.c.h.b16 %v2008
        %v2119 = vunpack.c.l.b16 %v2009
        %v2120 = vunpack.c.h.b16 %v2009
        %v2121 = vunpack.c.l.b16 %v2010
        %v2122 = vunpack.c.h.b16 %v2010
        %v2123 = vunpack.c.l.b16 %v2011
        %v2124 = vunpack.c.h.b16 %v2011
        %v2125 = vunpack.c.l.b16 %v2012
        %v2126 = vunpack.c.h.b16 %v2012
        %v2127 = vunpack.c.l.b16 %v2013
        %v2128 = vunpack.c.h.b16 %v2013
        %v2129 = vunpack.c.l.b16 %v2014
        %v2130 = vunpack.c.h.b16 %v2014
        %v2131 = vunpack.c.l.b16 %v2015
        %v2132 = vunpack.c.h.b16 %v2015
        %v2133 = vunpack.c.l.b16 %v2016
        %v2134 = vunpack.c.h.b16 %v2016
        %v2135 = vpack.c.b16 %v2075, %v2071
        %v2136 = vpack.c.b16 %v2076, %v2072
        %v2137 = vpack.c.b16 %v2077, %v2073
        %v2138 = vpack.c.b16 %v2078, %v2074
        %v2139 = vpack.c.b16 %v2083, %v2079
        %v2140 = vpack.c.b16 %v2084, %v2080
        %v2141 = vpack.c.b16 %v2085, %v2081
        %v2142 = vpack.c.b16 %v2086, %v2082
        %v2143 = vpack.c.b16 %v2091, %v2087
        %v2144 = vpack.c.b16 %v2092, %v2088
        %v2145 = vpack.c.b16 %v2093, %v2089
        %v2146 = vpack.c.b16 %v2094, %v2090
        %v2147 = vpack.c.b16 %v2099, %v2095
        %v2148 = vpack.c.b16 %v2100, %v2096
        %v2149 = vpack.c.b16 %v2101, %v2097
        %v2150 = vpack.c.b16 %v2102, %v2098
        %v2151 = vpack.c.b16 %v2107, %v2103
        %v2152 = vpack.c.b16 %v2108, %v2104
        %v2153 = vpack.c.b16 %v2109, %v2105
        %v2154 = vpack.c.b16 %v2110, %v2106
        %v2155 = vpack.c.b16 %v2115, %v2111
        %v2156 = vpack.c.b16 %v2116, %v2112
        %v2157 = vpack.c.b16 %v2117, %v2113
        %v2158 = vpack.c.b16 %v2118, %v2114
        %v2159 = vpack.c.b16 %v2123, %v2119
        %v2160 = vpack.c.b16 %v2124, %v2120
        %v2161 = vpack.c.b16 %v2125, %v2121
        %v2162 = vpack.c.b16 %v2126, %v2122
        %v2163 = vpack.c.b16 %v2131, %v2127
        %v2164 = vpack.c.b16 %v2132, %v2128
        %v2165 = vpack.c.b16 %v2133, %v2129
        %v2166 = vpack.c.b16 %v2134, %v2130
        %2199 = vmatprep.subr.bf16.mxu0 %v2136
        %2200 = vmatpush1.bf16.msra.mxu0 %v2135
        %2201 = vmatprep.subr.bf16.mxu0 %v2140
        %2202 = vmatpush1.bf16.msra.mxu0 %v2139
        %2203 = vmatprep.subr.bf16.mxu0 %v2144
        %2204 = vmatpush1.bf16.msra.mxu0 %v2143
        %2205 = vmatprep.subr.bf16.mxu0 %v2148
        %2206 = vmatpush1.bf16.msra.mxu0 %v2147
        %2207 = vmatprep.subr.bf16.mxu0 %v2152
        %2208 = vmatpush1.bf16.msra.mxu0 %v2151
        %2209 = vmatprep.subr.bf16.mxu0 %v2156
        %2210 = vmatpush1.bf16.msra.mxu0 %v2155
        %2211 = vmatprep.subr.bf16.mxu0 %v2160
        %2212 = vmatpush1.bf16.msra.mxu0 %v2159
        %2213 = vmatprep.subr.bf16.mxu0 %v2164
        %2214 = vmatpush1.bf16.msra.mxu0 %v2163
        %2215 = vmatprep.subr.bf16.mxu0 0
        %2216 = vmatpush1.bf16.msra.mxu0 0
        %2217 = vmatprep.subr.bf16.mxu0 0
        %2218 = vmatpush1.bf16.msra.mxu0 0
        %2219 = vmatprep.subr.bf16.mxu0 0
        %2220 = vmatpush1.bf16.msra.mxu0 0
        %2221 = vmatprep.subr.bf16.mxu0 0
        %2222 = vmatpush1.bf16.msra.mxu0 0
        %2223 = vmatprep.subr.bf16.mxu0 0
        %2224 = vmatpush1.bf16.msra.mxu0 0
        %2225 = vmatprep.subr.bf16.mxu0 0
        %2226 = vmatpush1.bf16.msra.mxu0 0
        %2227 = vmatprep.subr.bf16.mxu0 0
        %2228 = vmatpush1.bf16.msra.mxu0 0
        %2229 = vmatprep.subr.bf16.mxu0 0
        %2230 = vmatpush1.bf16.msra.mxu0 0
        %2231 = vmatprep.mubr.bf16.mxu0 0
        %2232 = vmatmul.mubr.bf16.gmra.mrb[0].mxu0 %v1984
        %v2233 = vpop.f32.mrb[0].mxu0
        %v2234 = vadd.f32 %v2022, %v2233
        %v2235 = vpop.f32.mrb[0].mxu0
        %v2236 = vadd.f32 %v2026, %v2235
        %v2237 = vpop.f32.mrb[0].mxu0
        %v2238 = vadd.f32 %v2022, %v2237
        %v2239 = vpop.f32.mrb[0].mxu0
        %v2240 = vadd.f32 %v2026, %v2239
        %2241 = vdwg.mxu0
        %2242 = vmatprep.subr.bf16.mxu0 %v2138
        %2243 = vmatpush1.bf16.msra.mxu0 %v2137
        %2244 = vmatprep.subr.bf16.mxu0 %v2142
        %2245 = vmatpush1.bf16.msra.mxu0 %v2141
        %2246 = vmatprep.subr.bf16.mxu0 %v2146
        %2247 = vmatpush1.bf16.msra.mxu0 %v2145
        %2248 = vmatprep.subr.bf16.mxu0 %v2150
        %2249 = vmatpush1.bf16.msra.mxu0 %v2149
        %2250 = vmatprep.subr.bf16.mxu0 %v2154
        %2251 = vmatpush1.bf16.msra.mxu0 %v2153
        %2252 = vmatprep.subr.bf16.mxu0 %v2158
        %2253 = vmatpush1.bf16.msra.mxu0 %v2157
        %2254 = vmatprep.subr.bf16.mxu0 %v2162
        %2255 = vmatpush1.bf16.msra.mxu0 %v2161
        %2256 = vmatprep.subr.bf16.mxu0 %v2166
        %2257 = vmatpush1.bf16.msra.mxu0 %v2165
        %2258 = vmatprep.subr.bf16.mxu0 0
        %2259 = vmatpush1.bf16.msra.mxu0 0
        %2260 = vmatprep.subr.bf16.mxu0 0
        %2261 = vmatpush1.bf16.msra.mxu0 0
        %2262 = vmatprep.subr.bf16.mxu0 0
        %2263 = vmatpush1.bf16.msra.mxu0 0
        %2264 = vmatprep.subr.bf16.mxu0 0
        %2265 = vmatpush1.bf16.msra.mxu0 0
        %2266 = vmatprep.subr.bf16.mxu0 0
        %2267 = vmatpush1.bf16.msra.mxu0 0
        %2268 = vmatprep.subr.bf16.mxu0 0
        %2269 = vmatpush1.bf16.msra.mxu0 0
        %2270 = vmatprep.subr.bf16.mxu0 0
        %2271 = vmatpush1.bf16.msra.mxu0 0
        %2272 = vmatprep.subr.bf16.mxu0 0
        %2273 = vmatpush1.bf16.msra.mxu0 0
        %2274 = vmatprep.mubr.bf16.mxu0 0
        %2275 = vmatmul.mubr.bf16.gmra.mrb[0].mxu0 %v1984
        %v2276 = vpop.f32.mrb[0].mxu0
        %v2277 = vadd.f32 %v2030, %v2276
        %v2278 = vpop.f32.mrb[0].mxu0
        %v2279 = vadd.f32 %v2034, %v2278
        %v2280 = vpop.f32.mrb[0].mxu0
        %v2281 = vadd.f32 %v2030, %v2280
        %v2282 = vpop.f32.mrb[0].mxu0
        %v2283 = vadd.f32 %v2034, %v2282
        %2284 = vdwg.mxu0
        %v2285 = vmul.f32 %v2234, 0.5
        %v2286 = vmul.f32 %v2236, 0.5
        %v2287 = vmul.f32 %v2277, 0.5
        %v2288 = vmul.f32 %v2279, 0.5
        %v2289 = vmul.f32 %v2238, 0.5
        %v2290 = vmul.f32 %v2240, 0.5
        %v2291 = vmul.f32 %v2281, 0.5
        %v2292 = vmul.f32 %v2283, 0.5
        %v2293 = vmul.f32 %v2234, 0.70710677
        %v2294 = vmul.f32 %v2236, 0.70710677
        %v2295 = vmul.f32 %v2277, 0.70710677
        %v2296 = vmul.f32 %v2279, 0.70710677
        %v2297 = vmul.f32 %v2238, 0.70710677
        %v2298 = vmul.f32 %v2240, 0.70710677
        %v2299 = vmul.f32 %v2281, 0.70710677
        %v2300 = vmul.f32 %v2283, 0.70710677
        %vm2301 = vcmp.ge.f32.partialorder %v2293, 0.0
        %vm2302 = vcmp.ge.f32.partialorder %v2294, 0.0
        %vm2303 = vcmp.ge.f32.partialorder %v2295, 0.0
        %vm2304 = vcmp.ge.f32.partialorder %v2296, 0.0
        %vm2305 = vcmp.ge.f32.partialorder %v2297, 0.0
        %vm2306 = vcmp.ge.f32.partialorder %v2298, 0.0
        %vm2307 = vcmp.ge.f32.partialorder %v2299, 0.0
        %vm2308 = vcmp.ge.f32.partialorder %v2300, 0.0
        %v2309 = vsel %vm2301, 1.0, -1.0
        %v2310 = vsel %vm2302, 1.0, -1.0
        %v2311 = vsel %vm2303, 1.0, -1.0
        %v2312 = vsel %vm2304, 1.0, -1.0
        %v2313 = vsel %vm2305, 1.0, -1.0
        %v2314 = vsel %vm2306, 1.0, -1.0
        %v2315 = vsel %vm2307, 1.0, -1.0
        %v2316 = vsel %vm2308, 1.0, -1.0
        %v2317 = vand.u32 2147483647, %v2293
        %v2318 = vand.u32 2147483647, %v2294
        %v2319 = vand.u32 2147483647, %v2295
        %v2320 = vand.u32 2147483647, %v2296
        %v2321 = vand.u32 2147483647, %v2297
        %v2322 = vand.u32 2147483647, %v2298
        %v2323 = vand.u32 2147483647, %v2299
        %v2324 = vand.u32 2147483647, %v2300
        %v2325 = vmul.f32 %v2317, 0.3275911
        %v2326 = vmul.f32 %v2318, 0.3275911
        %v2327 = vmul.f32 %v2319, 0.3275911
        %v2328 = vmul.f32 %v2320, 0.3275911
        %v2329 = vmul.f32 %v2321, 0.3275911
        %v2330 = vmul.f32 %v2322, 0.3275911
        %v2331 = vmul.f32 %v2323, 0.3275911
        %v2332 = vmul.f32 %v2324, 0.3275911
        %v2333 = vadd.f32 %v2325, 1.0
        %v2334 = vadd.f32 %v2326, 1.0
        %v2335 = vadd.f32 %v2327, 1.0
        %v2336 = vadd.f32 %v2328, 1.0
        %v2337 = vadd.f32 %v2329, 1.0
        %v2338 = vadd.f32 %v2330, 1.0
        %v2339 = vadd.f32 %v2331, 1.0
        %v2340 = vadd.f32 %v2332, 1.0
        %v2341 = vrcp.pop %v2333
        %v2342 = vrcp.pop %v2334
        %v2343 = vrcp.pop %v2335
        %v2344 = vrcp.pop %v2336
        %v2345 = vrcp.pop %v2337
        %v2346 = vrcp.pop %v2338
        %v2347 = vrcp.pop %v2339
        %v2348 = vrcp.pop %v2340
        %v2349 = vmul.f32 %v2341, 1.0614054
        %v2350 = vmul.f32 %v2342, 1.0614054
        %v2351 = vmul.f32 %v2343, 1.0614054
        %v2352 = vmul.f32 %v2344, 1.0614054
        %v2353 = vmul.f32 %v2345, 1.0614054
        %v2354 = vmul.f32 %v2346, 1.0614054
        %v2355 = vmul.f32 %v2347, 1.0614054
        %v2356 = vmul.f32 %v2348, 1.0614054
        %v2357 = vadd.f32 %v2349, -1.4531521
        %v2358 = vadd.f32 %v2350, -1.4531521
        %v2359 = vadd.f32 %v2351, -1.4531521
        %v2360 = vadd.f32 %v2352, -1.4531521
        %v2361 = vadd.f32 %v2353, -1.4531521
        %v2362 = vadd.f32 %v2354, -1.4531521
        %v2363 = vadd.f32 %v2355, -1.4531521
        %v2364 = vadd.f32 %v2356, -1.4531521
        %v2365 = vmul.f32 %v2357, %v2341
        %v2366 = vmul.f32 %v2358, %v2342
        %v2367 = vmul.f32 %v2359, %v2343
        %v2368 = vmul.f32 %v2360, %v2344
        %v2369 = vmul.f32 %v2361, %v2345
        %v2370 = vmul.f32 %v2362, %v2346
        %v2371 = vmul.f32 %v2363, %v2347
        %v2372 = vmul.f32 %v2364, %v2348
        %v2373 = vadd.f32 %v2365, 1.4214138
        %v2374 = vadd.f32 %v2366, 1.4214138
        %v2375 = vadd.f32 %v2367, 1.4214138
        %v2376 = vadd.f32 %v2368, 1.4214138
        %v2377 = vadd.f32 %v2369, 1.4214138
        %v2378 = vadd.f32 %v2370, 1.4214138
        %v2379 = vadd.f32 %v2371, 1.4214138
        %v2380 = vadd.f32 %v2372, 1.4214138
        %v2381 = vmul.f32 %v2373, %v2341
        %v2382 = vmul.f32 %v2374, %v2342
        %v2383 = vmul.f32 %v2375, %v2343
        %v2384 = vmul.f32 %v2376, %v2344
        %v2385 = vmul.f32 %v2377, %v2345
        %v2386 = vmul.f32 %v2378, %v2346
        %v2387 = vmul.f32 %v2379, %v2347
        %v2388 = vmul.f32 %v2380, %v2348
        %v2389 = vadd.f32 %v2381, -0.28449672
        %v2390 = vadd.f32 %v2382, -0.28449672
        %v2391 = vadd.f32 %v2383, -0.28449672
        %v2392 = vadd.f32 %v2384, -0.28449672
        %v2393 = vadd.f32 %v2385, -0.28449672
        %v2394 = vadd.f32 %v2386, -0.28449672
        %v2395 = vadd.f32 %v2387, -0.28449672
        %v2396 = vadd.f32 %v2388, -0.28449672
        %v2397 = vmul.f32 %v2389, %v2341
        %v2398 = vmul.f32 %v2390, %v2342
        %v2399 = vmul.f32 %v2391, %v2343
        %v2400 = vmul.f32 %v2392, %v2344
        %v2401 = vmul.f32 %v2393, %v2345
        %v2402 = vmul.f32 %v2394, %v2346
        %v2403 = vmul.f32 %v2395, %v2347
        %v2404 = vmul.f32 %v2396, %v2348
        %v2405 = vadd.f32 %v2397, 0.2548296
        %v2406 = vadd.f32 %v2398, 0.2548296
        %v2407 = vadd.f32 %v2399, 0.2548296
        %v2408 = vadd.f32 %v2400, 0.2548296
        %v2409 = vadd.f32 %v2401, 0.2548296
        %v2410 = vadd.f32 %v2402, 0.2548296
        %v2411 = vadd.f32 %v2403, 0.2548296
        %v2412 = vadd.f32 %v2404, 0.2548296
        %v2413 = vmul.f32 %v2405, %v2341
        %v2414 = vmul.f32 %v2406, %v2342
        %v2415 = vmul.f32 %v2407, %v2343
        %v2416 = vmul.f32 %v2408, %v2344
        %v2417 = vmul.f32 %v2409, %v2345
        %v2418 = vmul.f32 %v2410, %v2346
        %v2419 = vmul.f32 %v2411, %v2347
        %v2420 = vmul.f32 %v2412, %v2348
        %v2421 = vsub.f32 0.0, %v2317
        %v2422 = vsub.f32 0.0, %v2318
        %v2423 = vsub.f32 0.0, %v2319
        %v2424 = vsub.f32 0.0, %v2320
        %v2425 = vsub.f32 0.0, %v2321
        %v2426 = vsub.f32 0.0, %v2322
        %v2427 = vsub.f32 0.0, %v2323
        %v2428 = vsub.f32 0.0, %v2324
        %v2429 = vmul.f32 %v2421, %v2317
        %v2430 = vmul.f32 %v2422, %v2318
        %v2431 = vmul.f32 %v2423, %v2319
        %v2432 = vmul.f32 %v2424, %v2320
        %v2433 = vmul.f32 %v2425, %v2321
        %v2434 = vmul.f32 %v2426, %v2322
        %v2435 = vmul.f32 %v2427, %v2323
        %v2436 = vmul.f32 %v2428, %v2324
        %v2437 = vmul.f32 %v2429, 1.442695
        %v2438 = vpow.pop %v2437
        %v2439 = vmul.f32 %v2430, 1.442695
        %v2440 = vpow.pop %v2439
        %v2441 = vmul.f32 %v2431, 1.442695
        %v2442 = vpow.pop %v2441
        %v2443 = vmul.f32 %v2432, 1.442695
        %v2444 = vpow.pop %v2443
        %v2445 = vmul.f32 %v2433, 1.442695
        %v2446 = vpow.pop %v2445
        %v2447 = vmul.f32 %v2434, 1.442695
        %v2448 = vpow.pop %v2447
        %v2449 = vmul.f32 %v2435, 1.442695
        %v2450 = vpow.pop %v2449
        %v2451 = vmul.f32 %v2436, 1.442695
        %v2452 = vpow.pop %v2451
        %v2453 = vmul.f32 %v2413, %v2438
        %v2454 = vmul.f32 %v2414, %v2440
        %v2455 = vmul.f32 %v2415, %v2442
        %v2456 = vmul.f32 %v2416, %v2444
        %v2457 = vmul.f32 %v2417, %v2446
        %v2458 = vmul.f32 %v2418, %v2448
        %v2459 = vmul.f32 %v2419, %v2450
        %v2460 = vmul.f32 %v2420, %v2452
        %v2461 = vsub.f32 1.0, %v2453
        %v2462 = vsub.f32 1.0, %v2454
        %v2463 = vsub.f32 1.0, %v2455
        %v2464 = vsub.f32 1.0, %v2456
        %v2465 = vsub.f32 1.0, %v2457
        %v2466 = vsub.f32 1.0, %v2458
        %v2467 = vsub.f32 1.0, %v2459
        %v2468 = vsub.f32 1.0, %v2460
        %v2469 = vmul.f32 %v2309, %v2461
        %v2470 = vmul.f32 %v2310, %v2462
        %v2471 = vmul.f32 %v2311, %v2463
        %v2472 = vmul.f32 %v2312, %v2464
        %v2473 = vmul.f32 %v2313, %v2465
        %v2474 = vmul.f32 %v2314, %v2466
        %v2475 = vmul.f32 %v2315, %v2467
        %v2476 = vmul.f32 %v2316, %v2468
        %v2477 = vadd.f32 %v2469, 1.0
        %v2478 = vadd.f32 %v2470, 1.0
        %v2479 = vadd.f32 %v2471, 1.0
        %v2480 = vadd.f32 %v2472, 1.0
        %v2481 = vadd.f32 %v2473, 1.0
        %v2482 = vadd.f32 %v2474, 1.0
        %v2483 = vadd.f32 %v2475, 1.0
        %v2484 = vadd.f32 %v2476, 1.0
        %v2485 = vmul.f32 %v2285, %v2477
        %v2486 = vmul.f32 %v2286, %v2478
        %v2487 = vmul.f32 %v2287, %v2479
        %v2488 = vmul.f32 %v2288, %v2480
        %v2489 = vmul.f32 %v2289, %v2481
        %v2490 = vmul.f32 %v2290, %v2482
        %v2491 = vmul.f32 %v2291, %v2483
        %v2492 = vmul.f32 %v2292, %v2484
        %v2493 = vpack.c.bf16 %v2489, %v2485
        %v2494 = vpack.c.bf16 %v2490, %v2486
        %v2495 = vpack.c.bf16 %v2491, %v2487
        %v2496 = vpack.c.bf16 %v2492, %v2488
        %v2497 = vld [vmem:[%s923] sm:$0xf]
        %v2498 = vld [vmem:[%s923 + $0x4] sm:$0xf]
        %v2499 = vld [vmem:[%s923 + $0x8] sm:$0xf]
        %v2500 = vld [vmem:[%s923 + $0xc] sm:$0xf]
        %v2501 = vld [vmem:[%s923 + $0x10] sm:$0xf]
        %v2502 = vld [vmem:[%s923 + $0x14] sm:$0xf]
        %v2503 = vld [vmem:[%s923 + $0x18] sm:$0xf]
        %v2504 = vld [vmem:[%s923 + $0x1c] sm:$0xf]
        %v2505 = vld [vmem:[%s923 + $0x20] sm:$0xf]
        %v2506 = vld [vmem:[%s923 + $0x24] sm:$0xf]
        %v2507 = vld [vmem:[%s923 + $0x28] sm:$0xf]
        %v2508 = vld [vmem:[%s923 + $0x2c] sm:$0xf]
        %v2509 = vld [vmem:[%s923 + $0x30] sm:$0xf]
        %v2510 = vld [vmem:[%s923 + $0x34] sm:$0xf]
        %v2511 = vld [vmem:[%s923 + $0x38] sm:$0xf]
        %v2512 = vld [vmem:[%s923 + $0x3c] sm:$0xf]
        %v2513 = vld [vmem:[%s923 + $0x40] sm:$0xf]
        %v2514 = vld [vmem:[%s923 + $0x44] sm:$0xf]
        %v2515 = vld [vmem:[%s923 + $0x48] sm:$0xf]
        %v2516 = vld [vmem:[%s923 + $0x4c] sm:$0xf]
        %v2517 = vld [vmem:[%s923 + $0x50] sm:$0xf]
        %v2518 = vld [vmem:[%s923 + $0x54] sm:$0xf]
        %v2519 = vld [vmem:[%s923 + $0x58] sm:$0xf]
        %v2520 = vld [vmem:[%s923 + $0x5c] sm:$0xf]
        %v2521 = vld [vmem:[%s923 + $0x60] sm:$0xf]
        %v2522 = vld [vmem:[%s923 + $0x64] sm:$0xf]
        %v2523 = vld [vmem:[%s923 + $0x68] sm:$0xf]
        %v2524 = vld [vmem:[%s923 + $0x6c] sm:$0xf]
        %v2525 = vld [vmem:[%s923 + $0x70] sm:$0xf]
        %v2526 = vld [vmem:[%s923 + $0x74] sm:$0xf]
        %v2527 = vld [vmem:[%s923 + $0x78] sm:$0xf]
        %v2528 = vld [vmem:[%s923 + $0x7c] sm:$0xf]
        %v2529 = vld [vmem:[%s923 + $0x80] sm:$0xf]
        %v2530 = vld [vmem:[%s923 + $0x84] sm:$0xf]
        %v2531 = vld [vmem:[%s923 + $0x88] sm:$0xf]
        %v2532 = vld [vmem:[%s923 + $0x8c] sm:$0xf]
        %v2533 = vld [vmem:[%s923 + $0x90] sm:$0xf]
        %v2534 = vld [vmem:[%s923 + $0x94] sm:$0xf]
        %v2535 = vld [vmem:[%s923 + $0x98] sm:$0xf]
        %v2536 = vld [vmem:[%s923 + $0x9c] sm:$0xf]
        %v2537 = vld [vmem:[%s923 + $0xa0] sm:$0xf]
        %v2538 = vld [vmem:[%s923 + $0xa4] sm:$0xf]
        %v2539 = vld [vmem:[%s923 + $0xa8] sm:$0xf]
        %v2540 = vld [vmem:[%s923 + $0xac] sm:$0xf]
        %v2541 = vld [vmem:[%s923 + $0xb0] sm:$0xf]
        %v2542 = vld [vmem:[%s923 + $0xb4] sm:$0xf]
        %v2543 = vld [vmem:[%s923 + $0xb8] sm:$0xf]
        %v2544 = vld [vmem:[%s923 + $0xbc] sm:$0xf]
        %v2545 = vld [vmem:[%s923 + $0xc0] sm:$0xf]
        %v2546 = vld [vmem:[%s923 + $0xc4] sm:$0xf]
        %v2547 = vld [vmem:[%s923 + $0xc8] sm:$0xf]
        %v2548 = vld [vmem:[%s923 + $0xcc] sm:$0xf]
        %v2549 = vld [vmem:[%s923 + $0xd0] sm:$0xf]
        %v2550 = vld [vmem:[%s923 + $0xd4] sm:$0xf]
        %v2551 = vld [vmem:[%s923 + $0xd8] sm:$0xf]
        %v2552 = vld [vmem:[%s923 + $0xdc] sm:$0xf]
        %v2553 = vld [vmem:[%s923 + $0xe0] sm:$0xf]
        %v2554 = vld [vmem:[%s923 + $0xe4] sm:$0xf]
        %v2555 = vld [vmem:[%s923 + $0xe8] sm:$0xf]
        %v2556 = vld [vmem:[%s923 + $0xec] sm:$0xf]
        %v2557 = vld [vmem:[%s923 + $0xf0] sm:$0xf]
        %v2558 = vld [vmem:[%s923 + $0xf4] sm:$0xf]
        %v2559 = vld [vmem:[%s923 + $0xf8] sm:$0xf]
        %v2560 = vld [vmem:[%s923 + $0xfc] sm:$0xf]
        %v2561 = vld [vmem:[%s931] sm:$0x1]
        %v2563 = vlaneseq
        %v2564 = vshrl.u32 %v2563, 7
        %v2565 = vsub.s32 0, %v2564
        %v2566 = vrot.slane %v2561, %v2565
        %v2632 = vunpack.c.l.b16 %v2497
        %v2633 = vunpack.c.l.b16 %v2498
        %v2634 = vunpack.c.l.b16 %v2499
        %v2635 = vunpack.c.l.b16 %v2500
        %v2636 = vunpack.c.l.b16 %v2501
        %v2637 = vunpack.c.l.b16 %v2502
        %v2638 = vunpack.c.l.b16 %v2503
        %v2639 = vunpack.c.l.b16 %v2504
        %v2640 = vunpack.c.l.b16 %v2505
        %v2641 = vunpack.c.l.b16 %v2506
        %v2642 = vunpack.c.l.b16 %v2507
        %v2643 = vunpack.c.l.b16 %v2508
        %v2644 = vunpack.c.l.b16 %v2509
        %v2645 = vunpack.c.l.b16 %v2510
        %v2646 = vunpack.c.l.b16 %v2511
        %v2647 = vunpack.c.l.b16 %v2512
        %v2648 = vunpack.c.l.b16 %v2513
        %v2649 = vunpack.c.l.b16 %v2514
        %v2650 = vunpack.c.l.b16 %v2515
        %v2651 = vunpack.c.l.b16 %v2516
        %v2652 = vunpack.c.l.b16 %v2517
        %v2653 = vunpack.c.l.b16 %v2518
        %v2654 = vunpack.c.l.b16 %v2519
        %v2655 = vunpack.c.l.b16 %v2520
        %v2656 = vunpack.c.l.b16 %v2521
        %v2657 = vunpack.c.l.b16 %v2522
        %v2658 = vunpack.c.l.b16 %v2523
        %v2659 = vunpack.c.l.b16 %v2524
        %v2660 = vunpack.c.l.b16 %v2525
        %v2661 = vunpack.c.l.b16 %v2526
        %v2662 = vunpack.c.l.b16 %v2527
        %v2663 = vunpack.c.l.b16 %v2528
        %v2664 = vunpack.c.l.b16 %v2529
        %v2665 = vunpack.c.l.b16 %v2530
        %v2666 = vunpack.c.l.b16 %v2531
        %v2667 = vunpack.c.l.b16 %v2532
        %v2668 = vunpack.c.l.b16 %v2533
        %v2669 = vunpack.c.l.b16 %v2534
        %v2670 = vunpack.c.l.b16 %v2535
        %v2671 = vunpack.c.l.b16 %v2536
        %v2672 = vunpack.c.l.b16 %v2537
        %v2673 = vunpack.c.l.b16 %v2538
        %v2674 = vunpack.c.l.b16 %v2539
        %v2675 = vunpack.c.l.b16 %v2540
        %v2676 = vunpack.c.l.b16 %v2541
        %v2677 = vunpack.c.l.b16 %v2542
        %v2678 = vunpack.c.l.b16 %v2543
        %v2679 = vunpack.c.l.b16 %v2544
        %v2680 = vunpack.c.l.b16 %v2545
        %v2681 = vunpack.c.l.b16 %v2546
        %v2682 = vunpack.c.l.b16 %v2547
        %v2683 = vunpack.c.l.b16 %v2548
        %v2684 = vunpack.c.l.b16 %v2549
        %v2685 = vunpack.c.l.b16 %v2550
        %v2686 = vunpack.c.l.b16 %v2551
        %v2687 = vunpack.c.l.b16 %v2552
        %v2688 = vunpack.c.l.b16 %v2553
        %v2689 = vunpack.c.l.b16 %v2554
        %v2690 = vunpack.c.l.b16 %v2555
        %v2691 = vunpack.c.l.b16 %v2556
        %v2692 = vunpack.c.l.b16 %v2557
        %v2693 = vunpack.c.l.b16 %v2558
        %v2694 = vunpack.c.l.b16 %v2559
        %v2695 = vunpack.c.l.b16 %v2560
        %v2696 = vpack.c.b16 %v2633, %v2632
        %v2697 = vpack.c.b16 %v2635, %v2634
        %v2698 = vpack.c.b16 %v2637, %v2636
        %v2699 = vpack.c.b16 %v2639, %v2638
        %v2700 = vpack.c.b16 %v2641, %v2640
        %v2701 = vpack.c.b16 %v2643, %v2642
        %v2702 = vpack.c.b16 %v2645, %v2644
        %v2703 = vpack.c.b16 %v2647, %v2646
        %v2704 = vpack.c.b16 %v2649, %v2648
        %v2705 = vpack.c.b16 %v2651, %v2650
        %v2706 = vpack.c.b16 %v2653, %v2652
        %v2707 = vpack.c.b16 %v2655, %v2654
        %v2708 = vpack.c.b16 %v2657, %v2656
        %v2709 = vpack.c.b16 %v2659, %v2658
        %v2710 = vpack.c.b16 %v2661, %v2660
        %v2711 = vpack.c.b16 %v2663, %v2662
        %v2712 = vpack.c.b16 %v2665, %v2664
        %v2713 = vpack.c.b16 %v2667, %v2666
        %v2714 = vpack.c.b16 %v2669, %v2668
        %v2715 = vpack.c.b16 %v2671, %v2670
        %v2716 = vpack.c.b16 %v2673, %v2672
        %v2717 = vpack.c.b16 %v2675, %v2674
        %v2718 = vpack.c.b16 %v2677, %v2676
        %v2719 = vpack.c.b16 %v2679, %v2678
        %v2720 = vpack.c.b16 %v2681, %v2680
        %v2721 = vpack.c.b16 %v2683, %v2682
        %v2722 = vpack.c.b16 %v2685, %v2684
        %v2723 = vpack.c.b16 %v2687, %v2686
        %v2724 = vpack.c.b16 %v2689, %v2688
        %v2725 = vpack.c.b16 %v2691, %v2690
        %v2726 = vpack.c.b16 %v2693, %v2692
        %v2727 = vpack.c.b16 %v2695, %v2694
        %2760 = vmatprep.subr.bf16.mxu0 0
        %2761 = vmatpush1.bf16.msra.mxu0 %v2696
        %2762 = vmatprep.subr.bf16.mxu0 0
        %2763 = vmatpush1.bf16.msra.mxu0 %v2697
        %2764 = vmatprep.subr.bf16.mxu0 0
        %2765 = vmatpush1.bf16.msra.mxu0 %v2698
        %2766 = vmatprep.subr.bf16.mxu0 0
        %2767 = vmatpush1.bf16.msra.mxu0 %v2699
        %2768 = vmatprep.subr.bf16.mxu0 0
        %2769 = vmatpush1.bf16.msra.mxu0 %v2700
        %2770 = vmatprep.subr.bf16.mxu0 0
        %2771 = vmatpush1.bf16.msra.mxu0 %v2701
        %2772 = vmatprep.subr.bf16.mxu0 0
        %2773 = vmatpush1.bf16.msra.mxu0 %v2702
        %2774 = vmatprep.subr.bf16.mxu0 0
        %2775 = vmatpush1.bf16.msra.mxu0 %v2703
        %2776 = vmatprep.subr.bf16.mxu0 0
        %2777 = vmatpush1.bf16.msra.mxu0 %v2704
        %2778 = vmatprep.subr.bf16.mxu0 0
        %2779 = vmatpush1.bf16.msra.mxu0 %v2705
        %2780 = vmatprep.subr.bf16.mxu0 0
        %2781 = vmatpush1.bf16.msra.mxu0 %v2706
        %2782 = vmatprep.subr.bf16.mxu0 0
        %2783 = vmatpush1.bf16.msra.mxu0 %v2707
        %2784 = vmatprep.subr.bf16.mxu0 0
        %2785 = vmatpush1.bf16.msra.mxu0 %v2708
        %2786 = vmatprep.subr.bf16.mxu0 0
        %2787 = vmatpush1.bf16.msra.mxu0 %v2709
        %2788 = vmatprep.subr.bf16.mxu0 0
        %2789 = vmatpush1.bf16.msra.mxu0 %v2710
        %2790 = vmatprep.subr.bf16.mxu0 0
        %2791 = vmatpush1.bf16.msra.mxu0 %v2711
        %2792 = vmatprep.mubr.bf16.mxu0 %v2494
        %2793 = vmatmul.mubr.bf16.gmra.mrb[0].mxu0 %v2493
        %v2794 = vpop.f32.mrb[0].mxu0
        %v2795 = vadd.f32 %v2566, %v2794
        %v2796 = vpop.f32.mrb[0].mxu0
        %v2797 = vpop.f32.mrb[0].mxu0
        %v2798 = vadd.f32 %v2566, %v2797
        %v2799 = vpop.f32.mrb[0].mxu0
        %2800 = vdwg.mxu0
        %2801 = vmatprep.subr.bf16.mxu0 0
        %2802 = vmatpush1.bf16.msra.mxu0 %v2712
        %2803 = vmatprep.subr.bf16.mxu0 0
        %2804 = vmatpush1.bf16.msra.mxu0 %v2713
        %2805 = vmatprep.subr.bf16.mxu0 0
        %2806 = vmatpush1.bf16.msra.mxu0 %v2714
        %2807 = vmatprep.subr.bf16.mxu0 0
        %2808 = vmatpush1.bf16.msra.mxu0 %v2715
        %2809 = vmatprep.subr.bf16.mxu0 0
        %2810 = vmatpush1.bf16.msra.mxu0 %v2716
        %2811 = vmatprep.subr.bf16.mxu0 0
        %2812 = vmatpush1.bf16.msra.mxu0 %v2717
        %2813 = vmatprep.subr.bf16.mxu0 0
        %2814 = vmatpush1.bf16.msra.mxu0 %v2718
        %2815 = vmatprep.subr.bf16.mxu0 0
        %2816 = vmatpush1.bf16.msra.mxu0 %v2719
        %2817 = vmatprep.subr.bf16.mxu0 0
        %2818 = vmatpush1.bf16.msra.mxu0 %v2720
        %2819 = vmatprep.subr.bf16.mxu0 0
        %2820 = vmatpush1.bf16.msra.mxu0 %v2721
        %2821 = vmatprep.subr.bf16.mxu0 0
        %2822 = vmatpush1.bf16.msra.mxu0 %v2722
        %2823 = vmatprep.subr.bf16.mxu0 0
        %2824 = vmatpush1.bf16.msra.mxu0 %v2723
        %2825 = vmatprep.subr.bf16.mxu0 0
        %2826 = vmatpush1.bf16.msra.mxu0 %v2724
        %2827 = vmatprep.subr.bf16.mxu0 0
        %2828 = vmatpush1.bf16.msra.mxu0 %v2725
        %2829 = vmatprep.subr.bf16.mxu0 0
        %2830 = vmatpush1.bf16.msra.mxu0 %v2726
        %2831 = vmatprep.subr.bf16.mxu0 0
        %2832 = vmatpush1.bf16.msra.mxu0 %v2727
        %2833 = vmatprep.mubr.bf16.mxu0 %v2496
        %2834 = vmatmul.mubr.bf16.gmra.mrb[0].mxu0 %v2495
        %v2835 = vpop.f32.mrb[0].mxu0
        %v2836 = vadd.f32 %v2795, %v2835
        %v2837 = vpop.f32.mrb[0].mxu0
        %v2838 = vpop.f32.mrb[0].mxu0
        %v2839 = vadd.f32 %v2798, %v2838
        %v2840 = vpop.f32.mrb[0].mxu0
        %2841 = vdwg.mxu0
        %v2842 = vld [vmem:[%s939] sm:$0x1]
        %v2844 = vlaneseq
        %v2845 = vshrl.u32 %v2844, 7
        %v2846 = vsub.s32 0, %v2845
        %v2847 = vrot.slane %v2842, %v2846
        %v2849 = vmul.f32 %v2847, %v2836
        %v2850 = vmul.f32 %v2847, %v2839
        %v2851 = vadd.f32 %v1942, %v2849
        %v2852 = vadd.f32 %v1943, %v2850
        %2853 = vst [vmem:[#allocation2] sm:$0xff] %v2851
        %2854 = vst [vmem:[#allocation2 + $0x8] sm:$0xff] %v2852
        %p2855 = scmp.eq.s32.totalorder %s52, 1
        // Predicated region
        $region161: #{dinov2_forward.3} parent=87 // pred_check
          %p2856 = pneg %p2855
        $region162: #{dinov2_forward.3} parent=87 // pred_check_branch
          %2858 = sbr.rel (%p2856) target = $region164
        $region163: #{dinov2_forward.3} parent=87 // pred_region
          %v2860 = vrot.slane %v2852, 7
          %vm2862 = vcmask 1040384
          %v2863 = vsel %vm2862, %v2851, %v2860
          %v2864 = vld [vmem:[#allocation7] sm:$0x1]
          %v2865 = vld [vmem:[#allocation9] sm:$0x1]
          %vm2866 = vcmask 1041408
          %v2867 = vsel %vm2866, %v2863, 0.0
          %2868 = vadd.xlane.f32.xlu0 %v2867
          %v2869 = vpop.xlane.xlu0 %2868
          %v2870 = vmul.f32 %v2869, %v1059
          %v2871 = vsub.f32 %v2863, %v2870
          %v2872 = vmul.f32 %v2871, %v2871
          %v2873 = vsel %vm2866, %v2872, 0.0
          %2874 = vadd.xlane.f32.xlu0 %v2873
          %v2875 = vpop.xlane.xlu0 %2874
          %v2876 = vmul.f32 %v2875, %v1059
          %v2877 = vadd.f32 %v2876, 1e-06
          %v2878 = vrsqrt.pop %v2877
          %v2879 = vmul.f32 %v2871, %v2878
          %v2881 = vlaneseq
          %v2882 = vshrl.u32 %v2881, 7
          %v2883 = vsub.s32 0, %v2882
          %v2884 = vrot.slane %v2864, %v2883
          %v2886 = vmul.f32 %v2879, %v2884
          %v2888 = vlaneseq
          %v2889 = vshrl.u32 %v2888, 7
          %v2890 = vsub.s32 0, %v2889
          %v2891 = vrot.slane %v2865, %v2890
          %v2893 = vadd.f32 %v2886, %v2891
          %2894 = vst [vmem:[#allocation31] sm:$0x3] %v2893
        $region164: #{dinov2_forward.3} parent=87 // pred_fallthru
          _
        // Predicated region
        $region165: #{dinov2_forward.3} parent=87 // pred_check
          %p2895 = pneg %p492
        $region166: #{dinov2_forward.3} parent=87 // pred_check_branch
          %2897 = sbr.rel (%p2895) target = $region168
        $region167: #{dinov2_forward.3} parent=87 // pred_region
          %s2899 = ssub.s32 32, 32
          %2900 = vsyncadd [#allocation6], %s2899
          %s2902 = sshll.u32 [#allocation31], 4
          %s2903 = int_to_ptr.vmem [resolvable:$true] %s2902
          %2905 = dma.vmem_to_hbm [thread:$0]  %s2903, 32, %s17, [#allocation6]
        $region168: #{dinov2_forward.3} parent=87 // pred_fallthru
          _
        // Predicated region
        $region169: #{dinov2_forward.3} parent=87 // pred_check
          %p2906 = pneg %p492
        $region170: #{dinov2_forward.3} parent=87 // pred_check_branch
          %2908 = sbr.rel (%p2906) target = $region172
        $region171: #{dinov2_forward.3} parent=87 // pred_region
          %2909 = dma.done [#allocation6], 32
        $region172: #{dinov2_forward.3} parent=87 // pred_fallthru
          _
      $region88: #{dinov2_forward.3} parent=5 // pred_fallthru
        _
      %p2910 = scmp.le.s32.totalorder 2, %s47
      // Predicated region
      $region173: #{dinov2_forward.3} parent=5 // pred_check
        %p2911 = pneg %p2910
      $region174: #{dinov2_forward.3} parent=5 // pred_check_branch
        %2913 = sbr.rel (%p2911) target = $region176
      $region175: #{dinov2_forward.3} parent=5 // pred_region
        %s2914 = ssub.s32 %s47, 2
      $region176: #{dinov2_forward.3} parent=5 // pred_fallthru
        _
    $region6: #{dinov2_forward.3} parent=1 // loop_footer
      %s51 = sadd.s32 1, %s47
    $region7: #{dinov2_forward.3} parent=1 // loop_footer_branch
      %46 = sbr.rel target = $region3
    $region8: #{dinov2_forward.3} parent=1 // loop_exit
      _
    %2915 = vsyncpa [#allocation5], 1
    %s2916 = scalar_lea.sflag [#allocation5], 1
    %2917 = vsyncpa %s2916, 1
    %2918 = vsyncpa [#allocation8], 1
    %2919 = vsyncpa [#allocation11], 1
    %s2920 = scalar_lea.sflag [#allocation11], 1
    %2921 = vsyncpa %s2920, 1
    %2922 = vsyncpa [#allocation14], 1
    %s2923 = scalar_lea.sflag [#allocation14], 1
    %2924 = vsyncpa %s2923, 1
    %2925 = vsyncpa [#allocation17], 1
    %s2926 = scalar_lea.sflag [#allocation17], 1
    %2927 = vsyncpa %s2926, 1
    %2928 = vsyncpa [#allocation20], 1
    %s2929 = scalar_lea.sflag [#allocation20], 1
    %2930 = vsyncpa %s2929, 1
    %2931 = vsyncpa [#allocation23], 1
    %s2932 = scalar_lea.sflag [#allocation23], 1
    %2933 = vsyncpa %s2932, 1
    %2934 = vsyncpa [#allocation26], 1
    %s2935 = scalar_lea.sflag [#allocation26], 1
    %2936 = vsyncpa %s2935, 1
    %2937 = vsyncpa [#allocation29], 1
    %s2938 = scalar_lea.sflag [#allocation29], 1
    %2939 = vsyncpa %s2938, 1
    %2940 = vsyncpa [#allocation6], 1
    %s2941 = scalar_lea.sflag [#allocation6], 1
    %2942 = vsyncpa %s2941, 1

</llo_original>
